<compile_context>
chip_gen: v5e
topology: v5e:2x2
jax: 0.10.0
libtpu: 0.0.40
codegen_flags: <defaults>
</compile_context>

<pallas_src>
import functools
import math

import jax
import jax.numpy as jnp
from jax import lax
from jax.experimental import pallas as pl
from jax.experimental.pallas import tpu as pltpu

_MASK_VALUE = -1e30  # finite "minus infinity" for the causal mask


def _mha_kernel(x_ref, wqkv_ref, wm_ref, bm_ref, o_ref, *, num_heads, head_size, seq_len):
    """x_ref:    (Bblk, T, C)
       wqkv_ref: (3, C, F)       -- [Q (scale folded in), K, V] projection columns
       wm_ref:   (nH, H, c_pad)  -- merge weight, output dim zero-padded to 128-multiple
       bm_ref:   (1, c_pad)      -- merge bias (f32), zero-padded
       o_ref:    (Bblk, T, c_pad) -- lane-dense (c_pad % 128 == 0) output block
    """
    x = x_ref[...]
    in_dtype = x.dtype

    # Q/K/V projections: three MXU matmuls on the stacked weight. Leading-axis ref
    # indexing is cheap and avoids lane-boundary-crossing slices of a 3F-wide result.
    dims = (((2,), (0,)), ((), ()))
    q = lax.dot_general(x, wqkv_ref[0], dims, preferred_element_type=jnp.float32)
    k = lax.dot_general(x, wqkv_ref[1], dims, preferred_element_type=jnp.float32)
    v = lax.dot_general(x, wqkv_ref[2], dims, preferred_element_type=jnp.float32)

    # Causal mask, built once per grid step (hoisted out of the head loop).
    row = lax.broadcasted_iota(jnp.int32, (seq_len, seq_len), 0)
    col = lax.broadcasted_iota(jnp.int32, (seq_len, seq_len), 1)
    causal = (row >= col)[None, :, :]                               # (1, T, T)

    # Accumulate every head directly into the merge projection (no concatenate, only
    # one head output live at a time). Start from the broadcast bias (done once).
    acc = jnp.broadcast_to(bm_ref[...], o_ref.shape).astype(jnp.float32)

    # TODO(synk): switch to lax.fori_loop(..., unroll=True) if num_heads grows large
    # enough for vreg pressure to matter (requires dynamic lane-offset slices of q/k/v).
    for h in range(num_heads):                      # static unroll over heads
        sl = slice(h * head_size, (h + 1) * head_size)
        qh = q[..., sl].astype(in_dtype)            # bf16-native MXU operands when the
        kh = k[..., sl].astype(in_dtype)            # module runs in bf16 (identity f32)
        vh = v[..., sl].astype(in_dtype)

        # Scores: contract last dims directly (no explicit transpose of k).
        att = jnp.einsum('bqd,bkd->bqk', qh, kh,
                         preferred_element_type=jnp.float32)        # (Bblk, T, T)
        att = jnp.where(causal, att, _MASK_VALUE)

        # Softmax in f32; exact normalization applied AFTER P@V (only T*H wide).
        att = att - jnp.max(att, axis=-1, keepdims=True)
        p = jnp.exp(att)
        l = jnp.sum(p, axis=-1, keepdims=True)
        oh = jnp.einsum('bqk,bkd->bqd', p.astype(in_dtype), vh,
                        preferred_element_type=jnp.float32) / l     # (Bblk, T, H)
        # dropout on probs: eval-mode identity

        # Merge projection for this head, accumulated in f32; full-lane-width result.
        acc = acc + lax.dot_general(oh.astype(wm_ref.dtype), wm_ref[h], dims,
                                    preferred_element_type=jnp.float32)

    # dropout after merge: eval-mode identity
    o_ref[...] = acc.astype(o_ref.dtype)            # lane-dense, unmasked store


def _num_tensorcores():
    """Best-effort detection: v7x-class chips have 2 TensorCores, earlier gens have 1."""
    try:
        kind = str(getattr(jax.devices()[0], "device_kind", "")).lower()
        if "v7" in kind or "7x" in kind:
            return 2
    except Exception:
        pass
    return 1


def _pick_batch_block(batch, num_tensorcores, max_block=8):
    """Largest divisor of `batch` (<= max_block). On single-TC chips prefer ONE grid
    step (the grid is a serial loop there); on multi-TC chips leave >= num_tensorcores
    steps so every core gets work."""
    divisors = [d for d in range(1, min(batch, max_block) + 1) if batch % d == 0]
    if num_tensorcores > 1:
        multi = [d for d in divisors if batch // d >= num_tensorcores]
        if multi:
            return max(multi)
    return max(divisors)


def multi_head_attention(x, w_q, w_k, w_v, w_merge, b_merge, *, num_heads, head_size):
    """Eval-mode MultiHeadAttention forward.

    Args:
      x:        (B, T, C) input, C = n_embed.
      w_q/w_k/w_v: (num_heads, head_size, C) per-head nn.Linear weights (out, in).
      w_merge:  (C_out, F) merge nn.Linear weight (out, in), F = num_heads*head_size.
      b_merge:  (C_out,) merge bias.
    Returns:
      (B, T, C_out).
    """
    x = jnp.asarray(x)
    B, T, C = x.shape
    feat = num_heads * head_size
    c_out = w_merge.shape[0]
    assert w_merge.shape[1] == feat, "merge weight input dim must equal num_heads*head_size"
    scale = C ** (-0.5)   # matches the PyTorch module: scale by n_embed**-0.5 (intentional)

    # ---- host-side weight prep (pure layout work, runs once under jit) ----
    def to_cols(w):  # (nH, H, C) -> (C, nH*H), head order matching torch.cat
        w = jnp.asarray(w)
        return jnp.transpose(w, (2, 0, 1)).reshape(C, feat)

    # Stacked (3, C, F): softmax scale folded into the Q columns.
    w_qkv = jnp.stack([to_cols(w_q) * scale, to_cols(w_k), to_cols(w_v)],
                      axis=0).astype(x.dtype)                        # (3, C, F)

    # Merge weight as per-head (nH, H, c_pad) with the output dim zero-padded to a
    # multiple of 128 so the kernel's output store is lane-dense / unmasked.
    c_pad = ((c_out + 127) // 128) * 128
    wm = jnp.transpose(jnp.asarray(w_merge), (1, 0)).reshape(num_heads, head_size, c_out)
    wm = jnp.pad(wm, ((0, 0), (0, 0), (0, c_pad - c_out))).astype(x.dtype)
    bm = jnp.pad(jnp.asarray(b_merge), (0, c_pad - c_out)).reshape(1, c_pad).astype(jnp.float32)

    bblk = _pick_batch_block(B, _num_tensorcores())
    grid = (B // bblk,)

    kernel = functools.partial(_mha_kernel, num_heads=num_heads,
                               head_size=head_size, seq_len=T)

    out_padded = pl.pallas_call(
        kernel,
        out_shape=jax.ShapeDtypeStruct((B, T, c_pad), x.dtype),
        grid_spec=pltpu.PrefetchScalarGridSpec(
            num_scalar_prefetch=0,
            grid=grid,
            in_specs=[
                pl.BlockSpec((bblk, T, C), lambda b: (b, 0, 0)),
                pl.BlockSpec((3, C, feat), lambda b: (0, 0, 0)),
                pl.BlockSpec((num_heads, head_size, c_pad), lambda b: (0, 0, 0)),
                pl.BlockSpec((1, c_pad), lambda b: (0, 0)),
            ],
            out_specs=pl.BlockSpec((bblk, T, c_pad), lambda b: (b, 0, 0)),
        ),
        compiler_params=pltpu.CompilerParams(
            dimension_semantics=("parallel",)),
    )(x, w_qkv, wm, bm)

    # Un-pad the lane-padded output (cheap XLA slice outside the kernel).
    return out_padded[..., :c_out]


def _reference(x, w_q, w_k, w_v, w_merge, b_merge, *, num_heads, head_size):
    B, T, C = x.shape
    scale = C ** (-0.5)
    mask = jnp.tril(jnp.ones((T, T), dtype=bool))
    outs = []
    for h in range(num_heads):
        q = jnp.einsum("btc,hc->bth", x, w_q[h])
        k = jnp.einsum("btc,hc->bth", x, w_k[h])
        v = jnp.einsum("btc,hc->bth", x, w_v[h])
        att = jnp.einsum("bth,bsh->bts", q, k) * scale
        att = jnp.where(mask, att, -jnp.inf)
        p = jax.nn.softmax(att, axis=-1)
        outs.append(jnp.einsum("bts,bsh->bth", p, v))
    cat = jnp.concatenate(outs, axis=-1)
    return jnp.einsum("btf,of->bto", cat, w_merge) + b_merge


if __name__ == "__main__":
    # Small shapes consistent with the module: n_embed = 96 (smallest selectbox option),
    # block_size = T = 16, num_heads = 6, head_size = 16 (6*16 = 96), batch = 4, eval mode.
    B, T = 4, 16
    n_embed = 96
    num_heads, head_size = 6, 16

    key = jax.random.PRNGKey(0)
    kx, kq, kk, kv, km, kb = jax.random.split(key, 6)

    x = jax.random.normal(kx, (B, T, n_embed), dtype=jnp.float32)
    bound = 1.0 / math.sqrt(n_embed)
    w_q = jax.random.uniform(kq, (num_heads, head_size, n_embed), jnp.float32, -bound, bound)
    w_k = jax.random.uniform(kk, (num_heads, head_size, n_embed), jnp.float32, -bound, bound)
    w_v = jax.random.uniform(kv, (num_heads, head_size, n_embed), jnp.float32, -bound, bound)
    w_merge = jax.random.uniform(km, (n_embed, n_embed), jnp.float32, -bound, bound)
    b_merge = jax.random.uniform(kb, (n_embed,), jnp.float32, -bound, bound)

    out = multi_head_attention(x, w_q, w_k, w_v, w_merge, b_merge,
                               num_heads=num_heads, head_size=head_size)
    out = jax.block_until_ready(out)

    ref = _reference(x, w_q, w_k, w_v, w_merge, b_merge,
                     num_heads=num_heads, head_size=head_size)
    assert out.shape == (B, T, n_embed)
    # Tolerance covers MXU-vs-XLA f32 matmul accumulation-order differences.
    max_err = jnp.max(jnp.abs(out - ref))
    assert jnp.allclose(out, ref, atol=5e-3, rtol=5e-3), f"mismatch vs reference, max err {max_err}"

    print("KERNEL_OK")
</pallas_src>

<mosaic_0001>
module attributes {stable_mosaic.version = 11 : i64} {
  func.func @_mha_kernel(%arg0: i32, %arg1: memref<4x16x96xf32, #tpu.memory_space<vmem>>, %arg2: memref<3x96x96xf32, #tpu.memory_space<vmem>>, %arg3: memref<6x16x128xf32, #tpu.memory_space<vmem>>, %arg4: memref<1x128xf32, #tpu.memory_space<vmem>>, %arg5: memref<4x16x128xf32, #tpu.memory_space<vmem>>) attributes {dimension_semantics = [#tpu.dimension_semantics<parallel>], iteration_bounds = array<i64: 1>, scalar_prefetch = 0 : i64, scratch_operands = 0 : i64, tpu.core_type = #tpu.core_type<tc>, window_params = [{transform_indices = @transform_0, window_bounds = array<i64: 4, 16, 96>}, {pipeline_mode = #tpu.pipeline_mode<synchronous>, transform_indices = @transform_1, window_bounds = array<i64: 3, 96, 96>}, {pipeline_mode = #tpu.pipeline_mode<synchronous>, transform_indices = @transform_2, window_bounds = array<i64: 6, 16, 128>}, {pipeline_mode = #tpu.pipeline_mode<synchronous>, transform_indices = @transform_3, window_bounds = array<i64: 1, 128>}, {transform_indices = @transform_4, window_bounds = array<i64: 4, 16, 128>}]} {
    %c0 = arith.constant 0 : index
    %c0_0 = arith.constant 0 : index
    %c0_1 = arith.constant 0 : index
    %0 = vector.load %arg1[%c0, %c0_0, %c0_1] : memref<4x16x96xf32, #tpu.memory_space<vmem>>, vector<4x16x96xf32>
    %c0_2 = arith.constant 0 : index
    %c0_3 = arith.constant 0 : index
    %c0_4 = arith.constant 0 : index
    %1 = vector.load %arg2[%c0_2, %c0_3, %c0_4] : memref<3x96x96xf32, #tpu.memory_space<vmem>>, vector<1x96x96xf32>
    %2 = vector.shape_cast %1 : vector<1x96x96xf32> to vector<96x96xf32>
    %cst = arith.constant dense<0.000000e+00> : vector<4x16x96xf32>
    %3 = tpu.matmul %0, %2, %cst {dimension_numbers = #tpu.dot_dimension_numbers<[2], [0], [0, 1], [1], [0, 0, 0, 1, 1, 1], [], []>} : vector<4x16x96xf32>, vector<96x96xf32>, vector<4x16x96xf32> -> vector<4x16x96xf32>
    %c1 = arith.constant 1 : index
    %c0_5 = arith.constant 0 : index
    %c0_6 = arith.constant 0 : index
    %4 = vector.load %arg2[%c1, %c0_5, %c0_6] : memref<3x96x96xf32, #tpu.memory_space<vmem>>, vector<1x96x96xf32>
    %5 = vector.shape_cast %4 : vector<1x96x96xf32> to vector<96x96xf32>
    %cst_7 = arith.constant dense<0.000000e+00> : vector<4x16x96xf32>
    %6 = tpu.matmul %0, %5, %cst_7 {dimension_numbers = #tpu.dot_dimension_numbers<[2], [0], [0, 1], [1], [0, 0, 0, 1, 1, 1], [], []>} : vector<4x16x96xf32>, vector<96x96xf32>, vector<4x16x96xf32> -> vector<4x16x96xf32>
    %c2 = arith.constant 2 : index
    %c0_8 = arith.constant 0 : index
    %c0_9 = arith.constant 0 : index
    %7 = vector.load %arg2[%c2, %c0_8, %c0_9] : memref<3x96x96xf32, #tpu.memory_space<vmem>>, vector<1x96x96xf32>
    %8 = vector.shape_cast %7 : vector<1x96x96xf32> to vector<96x96xf32>
    %cst_10 = arith.constant dense<0.000000e+00> : vector<4x16x96xf32>
    %9 = tpu.matmul %0, %8, %cst_10 {dimension_numbers = #tpu.dot_dimension_numbers<[2], [0], [0, 1], [1], [0, 0, 0, 1, 1, 1], [], []>} : vector<4x16x96xf32>, vector<96x96xf32>, vector<4x16x96xf32> -> vector<4x16x96xf32>
    %10 = tpu.iota {dimensions = array<i32: 0>} : vector<16x16xi32>
    %11 = tpu.iota {dimensions = array<i32: 1>} : vector<16x16xi32>
    %12 = arith.cmpi sge, %10, %11 : vector<16x16xi32>
    %13 = vector.shape_cast %12 : vector<16x16xi1> to vector<1x16x16xi1>
    %c0_11 = arith.constant 0 : index
    %c0_12 = arith.constant 0 : index
    %14 = vector.load %arg4[%c0_11, %c0_12] : memref<1x128xf32, #tpu.memory_space<vmem>>, vector<1x128xf32>
    %15 = vector.shape_cast %14 : vector<1x128xf32> to vector<1x1x128xf32>
    %16 = vector.broadcast %15 : vector<1x1x128xf32> to vector<4x16x128xf32>
    %17 = vector.extract_strided_slice %3 {offsets = [0, 0, 0], sizes = [4, 16, 16], strides = [1, 1, 1]} : vector<4x16x96xf32> to vector<4x16x16xf32>
    %18 = vector.extract_strided_slice %6 {offsets = [0, 0, 0], sizes = [4, 16, 16], strides = [1, 1, 1]} : vector<4x16x96xf32> to vector<4x16x16xf32>
    %19 = vector.extract_strided_slice %9 {offsets = [0, 0, 0], sizes = [4, 16, 16], strides = [1, 1, 1]} : vector<4x16x96xf32> to vector<4x16x16xf32>
    "tpu.trace_start"() <{level = 10 : i32, message = "bqd,bkd->bqk"}> : () -> ()
    %cst_13 = arith.constant dense<0.000000e+00> : vector<4x16x16xf32>
    %20 = tpu.matmul %17, %18, %cst_13 {dimension_numbers = #tpu.dot_dimension_numbers<[2], [2], [1], [1], [0, 0, 0, 1, 1, 1], [0], [0]>} : vector<4x16x16xf32>, vector<4x16x16xf32>, vector<4x16x16xf32> -> vector<4x16x16xf32>
    %cst_14 = arith.constant -1.000000e+30 : f32
    "tpu.trace_stop"() : () -> ()
    %21 = vector.shape_cast %13 : vector<1x16x16xi1> to vector<1x16x16xi1>
    %22 = vector.broadcast %21 : vector<1x16x16xi1> to vector<4x16x16xi1>
    %23 = vector.broadcast %cst_14 : f32 to vector<4x16x16xf32>
    %24 = arith.select %22, %20, %23 : vector<4x16x16xi1>, vector<4x16x16xf32>
    %cst_15 = arith.constant dense<0xFF800000> : vector<4x16xf32>
    %25 = vector.multi_reduction <maximumf>, %24, %cst_15 [2] : vector<4x16x16xf32> to vector<4x16xf32>
    %26 = vector.shape_cast %25 : vector<4x16xf32> to vector<4x16x1xf32>
    %27 = vector.broadcast %26 : vector<4x16x1xf32> to vector<4x16x16xf32>
    %28 = arith.subf %24, %27 : vector<4x16x16xf32>
    %29 = math.exp %28 : vector<4x16x16xf32>
    %cst_16 = arith.constant dense<0.000000e+00> : vector<4x16xf32>
    %30 = vector.multi_reduction <add>, %29, %cst_16 [2] : vector<4x16x16xf32> to vector<4x16xf32>
    %31 = vector.shape_cast %30 : vector<4x16xf32> to vector<4x16x1xf32>
    "tpu.trace_start"() <{level = 10 : i32, message = "bqk,bkd->bqd"}> : () -> ()
    %cst_17 = arith.constant dense<0.000000e+00> : vector<4x16x16xf32>
    %32 = tpu.matmul %29, %19, %cst_17 {dimension_numbers = #tpu.dot_dimension_numbers<[2], [1], [1], [2], [0, 0, 0, 1, 1, 2], [0], [0]>} : vector<4x16x16xf32>, vector<4x16x16xf32>, vector<4x16x16xf32> -> vector<4x16x16xf32>
    "tpu.trace_stop"() : () -> ()
    %33 = vector.broadcast %31 : vector<4x16x1xf32> to vector<4x16x16xf32>
    %34 = arith.divf %32, %33 : vector<4x16x16xf32>
    %c0_18 = arith.constant 0 : index
    %c0_19 = arith.constant 0 : index
    %c0_20 = arith.constant 0 : index
    %35 = vector.load %arg3[%c0_18, %c0_19, %c0_20] : memref<6x16x128xf32, #tpu.memory_space<vmem>>, vector<1x16x128xf32>
    %36 = vector.shape_cast %35 : vector<1x16x128xf32> to vector<16x128xf32>
    %cst_21 = arith.constant dense<0.000000e+00> : vector<4x16x128xf32>
    %37 = tpu.matmul %34, %36, %cst_21 {dimension_numbers = #tpu.dot_dimension_numbers<[2], [0], [0, 1], [1], [0, 0, 0, 1, 1, 1], [], []>} : vector<4x16x16xf32>, vector<16x128xf32>, vector<4x16x128xf32> -> vector<4x16x128xf32>
    %38 = arith.addf %16, %37 : vector<4x16x128xf32>
    %39 = vector.extract_strided_slice %3 {offsets = [0, 0, 16], sizes = [4, 16, 16], strides = [1, 1, 1]} : vector<4x16x96xf32> to vector<4x16x16xf32>
    %40 = vector.extract_strided_slice %6 {offsets = [0, 0, 16], sizes = [4, 16, 16], strides = [1, 1, 1]} : vector<4x16x96xf32> to vector<4x16x16xf32>
    %41 = vector.extract_strided_slice %9 {offsets = [0, 0, 16], sizes = [4, 16, 16], strides = [1, 1, 1]} : vector<4x16x96xf32> to vector<4x16x16xf32>
    "tpu.trace_start"() <{level = 10 : i32, message = "bqd,bkd->bqk"}> : () -> ()
    %cst_22 = arith.constant dense<0.000000e+00> : vector<4x16x16xf32>
    %42 = tpu.matmul %39, %40, %cst_22 {dimension_numbers = #tpu.dot_dimension_numbers<[2], [2], [1], [1], [0, 0, 0, 1, 1, 1], [0], [0]>} : vector<4x16x16xf32>, vector<4x16x16xf32>, vector<4x16x16xf32> -> vector<4x16x16xf32>
    %cst_23 = arith.constant -1.000000e+30 : f32
    "tpu.trace_stop"() : () -> ()
    %43 = vector.shape_cast %13 : vector<1x16x16xi1> to vector<1x16x16xi1>
    %44 = vector.broadcast %43 : vector<1x16x16xi1> to vector<4x16x16xi1>
    %45 = vector.broadcast %cst_23 : f32 to vector<4x16x16xf32>
    %46 = arith.select %44, %42, %45 : vector<4x16x16xi1>, vector<4x16x16xf32>
    %cst_24 = arith.constant dense<0xFF800000> : vector<4x16xf32>
    %47 = vector.multi_reduction <maximumf>, %46, %cst_24 [2] : vector<4x16x16xf32> to vector<4x16xf32>
    %48 = vector.shape_cast %47 : vector<4x16xf32> to vector<4x16x1xf32>
    %49 = vector.broadcast %48 : vector<4x16x1xf32> to vector<4x16x16xf32>
    %50 = arith.subf %46, %49 : vector<4x16x16xf32>
    %51 = math.exp %50 : vector<4x16x16xf32>
    %cst_25 = arith.constant dense<0.000000e+00> : vector<4x16xf32>
    %52 = vector.multi_reduction <add>, %51, %cst_25 [2] : vector<4x16x16xf32> to vector<4x16xf32>
    %53 = vector.shape_cast %52 : vector<4x16xf32> to vector<4x16x1xf32>
    "tpu.trace_start"() <{level = 10 : i32, message = "bqk,bkd->bqd"}> : () -> ()
    %cst_26 = arith.constant dense<0.000000e+00> : vector<4x16x16xf32>
    %54 = tpu.matmul %51, %41, %cst_26 {dimension_numbers = #tpu.dot_dimension_numbers<[2], [1], [1], [2], [0, 0, 0, 1, 1, 2], [0], [0]>} : vector<4x16x16xf32>, vector<4x16x16xf32>, vector<4x16x16xf32> -> vector<4x16x16xf32>
    "tpu.trace_stop"() : () -> ()
    %55 = vector.broadcast %53 : vector<4x16x1xf32> to vector<4x16x16xf32>
    %56 = arith.divf %54, %55 : vector<4x16x16xf32>
    %c1_27 = arith.constant 1 : index
    %c0_28 = arith.constant 0 : index
    %c0_29 = arith.constant 0 : index
    %57 = vector.load %arg3[%c1_27, %c0_28, %c0_29] : memref<6x16x128xf32, #tpu.memory_space<vmem>>, vector<1x16x128xf32>
    %58 = vector.shape_cast %57 : vector<1x16x128xf32> to vector<16x128xf32>
    %cst_30 = arith.constant dense<0.000000e+00> : vector<4x16x128xf32>
    %59 = tpu.matmul %56, %58, %cst_30 {dimension_numbers = #tpu.dot_dimension_numbers<[2], [0], [0, 1], [1], [0, 0, 0, 1, 1, 1], [], []>} : vector<4x16x16xf32>, vector<16x128xf32>, vector<4x16x128xf32> -> vector<4x16x128xf32>
    %60 = arith.addf %38, %59 : vector<4x16x128xf32>
    %61 = vector.extract_strided_slice %3 {offsets = [0, 0, 32], sizes = [4, 16, 16], strides = [1, 1, 1]} : vector<4x16x96xf32> to vector<4x16x16xf32>
    %62 = vector.extract_strided_slice %6 {offsets = [0, 0, 32], sizes = [4, 16, 16], strides = [1, 1, 1]} : vector<4x16x96xf32> to vector<4x16x16xf32>
    %63 = vector.extract_strided_slice %9 {offsets = [0, 0, 32], sizes = [4, 16, 16], strides = [1, 1, 1]} : vector<4x16x96xf32> to vector<4x16x16xf32>
    "tpu.trace_start"() <{level = 10 : i32, message = "bqd,bkd->bqk"}> : () -> ()
    %cst_31 = arith.constant dense<0.000000e+00> : vector<4x16x16xf32>
    %64 = tpu.matmul %61, %62, %cst_31 {dimension_numbers = #tpu.dot_dimension_numbers<[2], [2], [1], [1], [0, 0, 0, 1, 1, 1], [0], [0]>} : vector<4x16x16xf32>, vector<4x16x16xf32>, vector<4x16x16xf32> -> vector<4x16x16xf32>
    %cst_32 = arith.constant -1.000000e+30 : f32
    "tpu.trace_stop"() : () -> ()
    %65 = vector.shape_cast %13 : vector<1x16x16xi1> to vector<1x16x16xi1>
    %66 = vector.broadcast %65 : vector<1x16x16xi1> to vector<4x16x16xi1>
    %67 = vector.broadcast %cst_32 : f32 to vector<4x16x16xf32>
    %68 = arith.select %66, %64, %67 : vector<4x16x16xi1>, vector<4x16x16xf32>
    %cst_33 = arith.constant dense<0xFF800000> : vector<4x16xf32>
    %69 = vector.multi_reduction <maximumf>, %68, %cst_33 [2] : vector<4x16x16xf32> to vector<4x16xf32>
    %70 = vector.shape_cast %69 : vector<4x16xf32> to vector<4x16x1xf32>
    %71 = vector.broadcast %70 : vector<4x16x1xf32> to vector<4x16x16xf32>
    %72 = arith.subf %68, %71 : vector<4x16x16xf32>
    %73 = math.exp %72 : vector<4x16x16xf32>
    %cst_34 = arith.constant dense<0.000000e+00> : vector<4x16xf32>
    %74 = vector.multi_reduction <add>, %73, %cst_34 [2] : vector<4x16x16xf32> to vector<4x16xf32>
    %75 = vector.shape_cast %74 : vector<4x16xf32> to vector<4x16x1xf32>
    "tpu.trace_start"() <{level = 10 : i32, message = "bqk,bkd->bqd"}> : () -> ()
    %cst_35 = arith.constant dense<0.000000e+00> : vector<4x16x16xf32>
    %76 = tpu.matmul %73, %63, %cst_35 {dimension_numbers = #tpu.dot_dimension_numbers<[2], [1], [1], [2], [0, 0, 0, 1, 1, 2], [0], [0]>} : vector<4x16x16xf32>, vector<4x16x16xf32>, vector<4x16x16xf32> -> vector<4x16x16xf32>
    "tpu.trace_stop"() : () -> ()
    %77 = vector.broadcast %75 : vector<4x16x1xf32> to vector<4x16x16xf32>
    %78 = arith.divf %76, %77 : vector<4x16x16xf32>
    %c2_36 = arith.constant 2 : index
    %c0_37 = arith.constant 0 : index
    %c0_38 = arith.constant 0 : index
    %79 = vector.load %arg3[%c2_36, %c0_37, %c0_38] : memref<6x16x128xf32, #tpu.memory_space<vmem>>, vector<1x16x128xf32>
    %80 = vector.shape_cast %79 : vector<1x16x128xf32> to vector<16x128xf32>
    %cst_39 = arith.constant dense<0.000000e+00> : vector<4x16x128xf32>
    %81 = tpu.matmul %78, %80, %cst_39 {dimension_numbers = #tpu.dot_dimension_numbers<[2], [0], [0, 1], [1], [0, 0, 0, 1, 1, 1], [], []>} : vector<4x16x16xf32>, vector<16x128xf32>, vector<4x16x128xf32> -> vector<4x16x128xf32>
    %82 = arith.addf %60, %81 : vector<4x16x128xf32>
    %83 = vector.extract_strided_slice %3 {offsets = [0, 0, 48], sizes = [4, 16, 16], strides = [1, 1, 1]} : vector<4x16x96xf32> to vector<4x16x16xf32>
    %84 = vector.extract_strided_slice %6 {offsets = [0, 0, 48], sizes = [4, 16, 16], strides = [1, 1, 1]} : vector<4x16x96xf32> to vector<4x16x16xf32>
    %85 = vector.extract_strided_slice %9 {offsets = [0, 0, 48], sizes = [4, 16, 16], strides = [1, 1, 1]} : vector<4x16x96xf32> to vector<4x16x16xf32>
    "tpu.trace_start"() <{level = 10 : i32, message = "bqd,bkd->bqk"}> : () -> ()
    %cst_40 = arith.constant dense<0.000000e+00> : vector<4x16x16xf32>
    %86 = tpu.matmul %83, %84, %cst_40 {dimension_numbers = #tpu.dot_dimension_numbers<[2], [2], [1], [1], [0, 0, 0, 1, 1, 1], [0], [0]>} : vector<4x16x16xf32>, vector<4x16x16xf32>, vector<4x16x16xf32> -> vector<4x16x16xf32>
    %cst_41 = arith.constant -1.000000e+30 : f32
    "tpu.trace_stop"() : () -> ()
    %87 = vector.shape_cast %13 : vector<1x16x16xi1> to vector<1x16x16xi1>
    %88 = vector.broadcast %87 : vector<1x16x16xi1> to vector<4x16x16xi1>
    %89 = vector.broadcast %cst_41 : f32 to vector<4x16x16xf32>
    %90 = arith.select %88, %86, %89 : vector<4x16x16xi1>, vector<4x16x16xf32>
    %cst_42 = arith.constant dense<0xFF800000> : vector<4x16xf32>
    %91 = vector.multi_reduction <maximumf>, %90, %cst_42 [2] : vector<4x16x16xf32> to vector<4x16xf32>
    %92 = vector.shape_cast %91 : vector<4x16xf32> to vector<4x16x1xf32>
    %93 = vector.broadcast %92 : vector<4x16x1xf32> to vector<4x16x16xf32>
    %94 = arith.subf %90, %93 : vector<4x16x16xf32>
    %95 = math.exp %94 : vector<4x16x16xf32>
    %cst_43 = arith.constant dense<0.000000e+00> : vector<4x16xf32>
    %96 = vector.multi_reduction <add>, %95, %cst_43 [2] : vector<4x16x16xf32> to vector<4x16xf32>
    %97 = vector.shape_cast %96 : vector<4x16xf32> to vector<4x16x1xf32>
    "tpu.trace_start"() <{level = 10 : i32, message = "bqk,bkd->bqd"}> : () -> ()
    %cst_44 = arith.constant dense<0.000000e+00> : vector<4x16x16xf32>
    %98 = tpu.matmul %95, %85, %cst_44 {dimension_numbers = #tpu.dot_dimension_numbers<[2], [1], [1], [2], [0, 0, 0, 1, 1, 2], [0], [0]>} : vector<4x16x16xf32>, vector<4x16x16xf32>, vector<4x16x16xf32> -> vector<4x16x16xf32>
    "tpu.trace_stop"() : () -> ()
    %99 = vector.broadcast %97 : vector<4x16x1xf32> to vector<4x16x16xf32>
    %100 = arith.divf %98, %99 : vector<4x16x16xf32>
    %c3 = arith.constant 3 : index
    %c0_45 = arith.constant 0 : index
    %c0_46 = arith.constant 0 : index
    %101 = vector.load %arg3[%c3, %c0_45, %c0_46] : memref<6x16x128xf32, #tpu.memory_space<vmem>>, vector<1x16x128xf32>
    %102 = vector.shape_cast %101 : vector<1x16x128xf32> to vector<16x128xf32>
    %cst_47 = arith.constant dense<0.000000e+00> : vector<4x16x128xf32>
    %103 = tpu.matmul %100, %102, %cst_47 {dimension_numbers = #tpu.dot_dimension_numbers<[2], [0], [0, 1], [1], [0, 0, 0, 1, 1, 1], [], []>} : vector<4x16x16xf32>, vector<16x128xf32>, vector<4x16x128xf32> -> vector<4x16x128xf32>
    %104 = arith.addf %82, %103 : vector<4x16x128xf32>
    %105 = vector.extract_strided_slice %3 {offsets = [0, 0, 64], sizes = [4, 16, 16], strides = [1, 1, 1]} : vector<4x16x96xf32> to vector<4x16x16xf32>
    %106 = vector.extract_strided_slice %6 {offsets = [0, 0, 64], sizes = [4, 16, 16], strides = [1, 1, 1]} : vector<4x16x96xf32> to vector<4x16x16xf32>
    %107 = vector.extract_strided_slice %9 {offsets = [0, 0, 64], sizes = [4, 16, 16], strides = [1, 1, 1]} : vector<4x16x96xf32> to vector<4x16x16xf32>
    "tpu.trace_start"() <{level = 10 : i32, message = "bqd,bkd->bqk"}> : () -> ()
    %cst_48 = arith.constant dense<0.000000e+00> : vector<4x16x16xf32>
    %108 = tpu.matmul %105, %106, %cst_48 {dimension_numbers = #tpu.dot_dimension_numbers<[2], [2], [1], [1], [0, 0, 0, 1, 1, 1], [0], [0]>} : vector<4x16x16xf32>, vector<4x16x16xf32>, vector<4x16x16xf32> -> vector<4x16x16xf32>
    %cst_49 = arith.constant -1.000000e+30 : f32
    "tpu.trace_stop"() : () -> ()
    %109 = vector.shape_cast %13 : vector<1x16x16xi1> to vector<1x16x16xi1>
    %110 = vector.broadcast %109 : vector<1x16x16xi1> to vector<4x16x16xi1>
    %111 = vector.broadcast %cst_49 : f32 to vector<4x16x16xf32>
    %112 = arith.select %110, %108, %111 : vector<4x16x16xi1>, vector<4x16x16xf32>
    %cst_50 = arith.constant dense<0xFF800000> : vector<4x16xf32>
    %113 = vector.multi_reduction <maximumf>, %112, %cst_50 [2] : vector<4x16x16xf32> to vector<4x16xf32>
    %114 = vector.shape_cast %113 : vector<4x16xf32> to vector<4x16x1xf32>
    %115 = vector.broadcast %114 : vector<4x16x1xf32> to vector<4x16x16xf32>
    %116 = arith.subf %112, %115 : vector<4x16x16xf32>
    %117 = math.exp %116 : vector<4x16x16xf32>
    %cst_51 = arith.constant dense<0.000000e+00> : vector<4x16xf32>
    %118 = vector.multi_reduction <add>, %117, %cst_51 [2] : vector<4x16x16xf32> to vector<4x16xf32>
    %119 = vector.shape_cast %118 : vector<4x16xf32> to vector<4x16x1xf32>
    "tpu.trace_start"() <{level = 10 : i32, message = "bqk,bkd->bqd"}> : () -> ()
    %cst_52 = arith.constant dense<0.000000e+00> : vector<4x16x16xf32>
    %120 = tpu.matmul %117, %107, %cst_52 {dimension_numbers = #tpu.dot_dimension_numbers<[2], [1], [1], [2], [0, 0, 0, 1, 1, 2], [0], [0]>} : vector<4x16x16xf32>, vector<4x16x16xf32>, vector<4x16x16xf32> -> vector<4x16x16xf32>
    "tpu.trace_stop"() : () -> ()
    %121 = vector.broadcast %119 : vector<4x16x1xf32> to vector<4x16x16xf32>
    %122 = arith.divf %120, %121 : vector<4x16x16xf32>
    %c4 = arith.constant 4 : index
    %c0_53 = arith.constant 0 : index
    %c0_54 = arith.constant 0 : index
    %123 = vector.load %arg3[%c4, %c0_53, %c0_54] : memref<6x16x128xf32, #tpu.memory_space<vmem>>, vector<1x16x128xf32>
    %124 = vector.shape_cast %123 : vector<1x16x128xf32> to vector<16x128xf32>
    %cst_55 = arith.constant dense<0.000000e+00> : vector<4x16x128xf32>
    %125 = tpu.matmul %122, %124, %cst_55 {dimension_numbers = #tpu.dot_dimension_numbers<[2], [0], [0, 1], [1], [0, 0, 0, 1, 1, 1], [], []>} : vector<4x16x16xf32>, vector<16x128xf32>, vector<4x16x128xf32> -> vector<4x16x128xf32>
    %126 = arith.addf %104, %125 : vector<4x16x128xf32>
    %127 = vector.extract_strided_slice %3 {offsets = [0, 0, 80], sizes = [4, 16, 16], strides = [1, 1, 1]} : vector<4x16x96xf32> to vector<4x16x16xf32>
    %128 = vector.extract_strided_slice %6 {offsets = [0, 0, 80], sizes = [4, 16, 16], strides = [1, 1, 1]} : vector<4x16x96xf32> to vector<4x16x16xf32>
    %129 = vector.extract_strided_slice %9 {offsets = [0, 0, 80], sizes = [4, 16, 16], strides = [1, 1, 1]} : vector<4x16x96xf32> to vector<4x16x16xf32>
    "tpu.trace_start"() <{level = 10 : i32, message = "bqd,bkd->bqk"}> : () -> ()
    %cst_56 = arith.constant dense<0.000000e+00> : vector<4x16x16xf32>
    %130 = tpu.matmul %127, %128, %cst_56 {dimension_numbers = #tpu.dot_dimension_numbers<[2], [2], [1], [1], [0, 0, 0, 1, 1, 1], [0], [0]>} : vector<4x16x16xf32>, vector<4x16x16xf32>, vector<4x16x16xf32> -> vector<4x16x16xf32>
    %cst_57 = arith.constant -1.000000e+30 : f32
    "tpu.trace_stop"() : () -> ()
    %131 = vector.shape_cast %13 : vector<1x16x16xi1> to vector<1x16x16xi1>
    %132 = vector.broadcast %131 : vector<1x16x16xi1> to vector<4x16x16xi1>
    %133 = vector.broadcast %cst_57 : f32 to vector<4x16x16xf32>
    %134 = arith.select %132, %130, %133 : vector<4x16x16xi1>, vector<4x16x16xf32>
    %cst_58 = arith.constant dense<0xFF800000> : vector<4x16xf32>
    %135 = vector.multi_reduction <maximumf>, %134, %cst_58 [2] : vector<4x16x16xf32> to vector<4x16xf32>
    %136 = vector.shape_cast %135 : vector<4x16xf32> to vector<4x16x1xf32>
    %137 = vector.broadcast %136 : vector<4x16x1xf32> to vector<4x16x16xf32>
    %138 = arith.subf %134, %137 : vector<4x16x16xf32>
    %139 = math.exp %138 : vector<4x16x16xf32>
    %cst_59 = arith.constant dense<0.000000e+00> : vector<4x16xf32>
    %140 = vector.multi_reduction <add>, %139, %cst_59 [2] : vector<4x16x16xf32> to vector<4x16xf32>
    %141 = vector.shape_cast %140 : vector<4x16xf32> to vector<4x16x1xf32>
    "tpu.trace_start"() <{level = 10 : i32, message = "bqk,bkd->bqd"}> : () -> ()
    %cst_60 = arith.constant dense<0.000000e+00> : vector<4x16x16xf32>
    %142 = tpu.matmul %139, %129, %cst_60 {dimension_numbers = #tpu.dot_dimension_numbers<[2], [1], [1], [2], [0, 0, 0, 1, 1, 2], [0], [0]>} : vector<4x16x16xf32>, vector<4x16x16xf32>, vector<4x16x16xf32> -> vector<4x16x16xf32>
    "tpu.trace_stop"() : () -> ()
    %143 = vector.broadcast %141 : vector<4x16x1xf32> to vector<4x16x16xf32>
    %144 = arith.divf %142, %143 : vector<4x16x16xf32>
    %c5 = arith.constant 5 : index
    %c0_61 = arith.constant 0 : index
    %c0_62 = arith.constant 0 : index
    %145 = vector.load %arg3[%c5, %c0_61, %c0_62] : memref<6x16x128xf32, #tpu.memory_space<vmem>>, vector<1x16x128xf32>
    %146 = vector.shape_cast %145 : vector<1x16x128xf32> to vector<16x128xf32>
    %cst_63 = arith.constant dense<0.000000e+00> : vector<4x16x128xf32>
    %147 = tpu.matmul %144, %146, %cst_63 {dimension_numbers = #tpu.dot_dimension_numbers<[2], [0], [0, 1], [1], [0, 0, 0, 1, 1, 1], [], []>} : vector<4x16x16xf32>, vector<16x128xf32>, vector<4x16x128xf32> -> vector<4x16x128xf32>
    %148 = arith.addf %126, %147 : vector<4x16x128xf32>
    %c0_64 = arith.constant 0 : index
    %c0_65 = arith.constant 0 : index
    %c0_66 = arith.constant 0 : index
    %149 = vector.load %arg5[%c0_64, %c0_65, %c0_66] : memref<4x16x128xf32, #tpu.memory_space<vmem>>, vector<4x16x128xf32>
    tpu.vector_store %arg5[%c0_64, %c0_65, %c0_66], %148 {strides = array<i32>} : memref<4x16x128xf32, #tpu.memory_space<vmem>>, vector<4x16x128xf32>,
    return
  }
  func.func @transform_0(%arg0: i32) -> (i32, i32, i32) {
    %c0_i32 = arith.constant 0 : i32
    %c0_i32_0 = arith.constant 0 : i32
    %c0_i32_1 = arith.constant 0 : i32
    return %arg0, %c0_i32, %c0_i32_0 : i32, i32, i32
  }
  func.func @transform_1(%arg0: i32) -> (i32, i32, i32) {
    %c0_i32 = arith.constant 0 : i32
    %c0_i32_0 = arith.constant 0 : i32
    %c0_i32_1 = arith.constant 0 : i32
    %c0_i32_2 = arith.constant 0 : i32
    return %c0_i32, %c0_i32_0, %c0_i32_1 : i32, i32, i32
  }
  func.func @transform_2(%arg0: i32) -> (i32, i32, i32) {
    %c0_i32 = arith.constant 0 : i32
    %c0_i32_0 = arith.constant 0 : i32
    %c0_i32_1 = arith.constant 0 : i32
    %c0_i32_2 = arith.constant 0 : i32
    return %c0_i32, %c0_i32_0, %c0_i32_1 : i32, i32, i32
  }
  func.func @transform_3(%arg0: i32) -> (i32, i32) {
    %c0_i32 = arith.constant 0 : i32
    %c0_i32_0 = arith.constant 0 : i32
    %c0_i32_1 = arith.constant 0 : i32
    return %c0_i32, %c0_i32_0 : i32, i32
  }
  func.func @transform_4(%arg0: i32) -> (i32, i32, i32) {
    %c0_i32 = arith.constant 0 : i32
    %c0_i32_0 = arith.constant 0 : i32
    %c0_i32_1 = arith.constant 0 : i32
    return %arg0, %c0_i32, %c0_i32_0 : i32, i32, i32
  }
}

</mosaic_0001>

<llo_original>
// kernel: tpu_custom_call.1
$region0: #{tpu_custom_call.1}
  #allocation0 [shape = 'u32[]', space=smem, size = 0x4, offset = 0x4, fixed_abs, tag = 'smem constant byte address 0x4 - core index']
  #allocation1 [shape = 'u32[72,128]{1,0:T(1,128)}', space=vmem, size = 0x9000, scoped, tag = 'internal scratch']
  %s0 = inlined_call_operand.hbm [shape: f32[4,16,96], index: 0, kind: input, shape index: {}]
  %s1 = inlined_call_operand.hbm [shape: f32[3,96,96], index: 1, kind: input, shape index: {}]
  %s2 = inlined_call_operand.hbm [shape: f32[6,16,128], index: 2, kind: input, shape index: {}]
  %s3 = inlined_call_operand.vmem [shape: f32[1,128], index: 3, kind: input, shape index: {}]
  %s4 = inlined_call_operand.hbm [shape: f32[4,16,128], index: 4, kind: output, shape index: {}]
  %s5 = sld [smem:[#allocation0]]
  $region38: #{tpu_custom_call.1} parent=0
    _
  %s7 = ssub.s32 1, %s5
  %s8 = scalar_select 0, %s7, %s5
  $region1: #{tpu_custom_call.1} parent=0
    #allocation2 [shape = 'u8[32768]{0}', space=vmem, size = 0x8000, scoped, tag = 'input window, operand 0, single buffered']
    #allocation3 [shape = 's32[1]{0}', space=sflag, size = 0x4, scoped, tag = 'scoped memory for tpu_custom_call.1']
    #allocation4 [shape = 's32[1]{0}', space=sflag, size = 0x4, scoped, tag = 'scoped memory for tpu_custom_call.1']
    #allocation5 [shape = 'u8[147456]{0}', space=vmem, size = 0x24000, scoped, tag = 'input window, operand 1, single buffered']
    #allocation6 [shape = 's32[1]{0}', space=sflag, size = 0x4, scoped, tag = 'scoped memory for tpu_custom_call.1']
    #allocation7 [shape = 'u8[49152]{0}', space=vmem, size = 0xc000, scoped, tag = 'input window, operand 2, single buffered']
    #allocation8 [shape = 'u8[32768]{0}', space=vmem, size = 0x8000, scoped, tag = 'output window, operand 0, single buffered']
    %9 = vsyncpa [#allocation3], 0
    %10 = vsyncpa [#allocation6], 0
    %11 = vsyncpa [#allocation4], 0
    // Predicated region
    $region2: #{tpu_custom_call.1} parent=1 // pred_check
      _
    $region3: #{tpu_custom_call.1} parent=1 // pred_check_branch
      %13 = sbr.rel (0) target = $region5
    $region4: #{tpu_custom_call.1} parent=1 // pred_region
      %15 = vsyncadd [#allocation3], 0
      %s16 = sshll.u32 %s0, 4
      %s17 = int_to_ptr.hbm [resolvable:$true] %s16
      %s18 = sshll.u32 [#allocation2], 4
      %s19 = int_to_ptr.vmem [resolvable:$true] %s18
      %24 = dma.hbm_to_vmem [thread:$0]  %s17, 1024, %s19, [#allocation3], 128, 128, 8
    $region5: #{tpu_custom_call.1} parent=1 // pred_fallthru
      _
    // Predicated region
    $region6: #{tpu_custom_call.1} parent=1 // pred_check
      _
    $region7: #{tpu_custom_call.1} parent=1 // pred_check_branch
      %26 = sbr.rel (0) target = $region9
    $region8: #{tpu_custom_call.1} parent=1 // pred_region
      %28 = vsyncadd [#allocation6], 0
      %s29 = sshll.u32 %s1, 4
      %s30 = int_to_ptr.hbm [resolvable:$true] %s29
      %s31 = sshll.u32 [#allocation5], 4
      %s32 = int_to_ptr.vmem [resolvable:$true] %s31
      %37 = dma.hbm_to_vmem [thread:$0]  %s30, 4608, %s32, [#allocation6], 128, 128, 8
    $region9: #{tpu_custom_call.1} parent=1 // pred_fallthru
      _
    // Predicated region
    $region10: #{tpu_custom_call.1} parent=1 // pred_check
      _
    $region11: #{tpu_custom_call.1} parent=1 // pred_check_branch
      %39 = sbr.rel (0) target = $region13
    $region12: #{tpu_custom_call.1} parent=1 // pred_region
      %41 = vsyncadd [#allocation6], 0
      %s42 = sshll.u32 %s2, 4
      %s43 = int_to_ptr.hbm [resolvable:$true] %s42
      %s44 = sshll.u32 [#allocation7], 4
      %s45 = int_to_ptr.vmem [resolvable:$true] %s44
      %50 = dma.hbm_to_vmem [thread:$0]  %s43, 1536, %s45, [#allocation6], 128, 128, 8
    $region13: #{tpu_custom_call.1} parent=1 // pred_fallthru
      _
    // Predicated region
    $region14: #{tpu_custom_call.1} parent=1 // pred_check
      _
    $region15: #{tpu_custom_call.1} parent=1 // pred_check_branch
      %52 = sbr.rel (0) target = $region17
    $region16: #{tpu_custom_call.1} parent=1 // pred_region
      _
    $region17: #{tpu_custom_call.1} parent=1 // pred_fallthru
      _
    // Predicated region
    $region18: #{tpu_custom_call.1} parent=1 // pred_check
      _
    $region19: #{tpu_custom_call.1} parent=1 // pred_check_branch
      %54 = sbr.rel (0) target = $region21
    $region20: #{tpu_custom_call.1} parent=1 // pred_region
      %56 = dma.done [#allocation3], 1024
    $region21: #{tpu_custom_call.1} parent=1 // pred_fallthru
      _
    // Predicated region
    $region22: #{tpu_custom_call.1} parent=1 // pred_check
      _
    $region23: #{tpu_custom_call.1} parent=1 // pred_check_branch
      %58 = sbr.rel (0) target = $region25
    $region24: #{tpu_custom_call.1} parent=1 // pred_region
      %60 = dma.done [#allocation6], 4608
    $region25: #{tpu_custom_call.1} parent=1 // pred_fallthru
      _
    // Predicated region
    $region26: #{tpu_custom_call.1} parent=1 // pred_check
      _
    $region27: #{tpu_custom_call.1} parent=1 // pred_check_branch
      %62 = sbr.rel (0) target = $region29
    $region28: #{tpu_custom_call.1} parent=1 // pred_region
      %64 = dma.done [#allocation6], 1536
    $region29: #{tpu_custom_call.1} parent=1 // pred_fallthru
      _
    %v65 = vld [vmem:[#allocation2] sm:$0xff]
    %v66 = vld [vmem:[#allocation2 + $0x8] sm:$0xff]
    %v67 = vld [vmem:[#allocation2 + $0x10] sm:$0xff]
    %v68 = vld [vmem:[#allocation2 + $0x18] sm:$0xff]
    %v69 = vld [vmem:[#allocation2 + $0x20] sm:$0xff]
    %v70 = vld [vmem:[#allocation2 + $0x28] sm:$0xff]
    %v71 = vld [vmem:[#allocation2 + $0x30] sm:$0xff]
    %v72 = vld [vmem:[#allocation2 + $0x38] sm:$0xff]
    %v73 = vld [vmem:[#allocation5] sm:$0xff]
    %v74 = vld [vmem:[#allocation5 + $0x8] sm:$0xff]
    %v75 = vld [vmem:[#allocation5 + $0x10] sm:$0xff]
    %v76 = vld [vmem:[#allocation5 + $0x18] sm:$0xff]
    %v77 = vld [vmem:[#allocation5 + $0x20] sm:$0xff]
    %v78 = vld [vmem:[#allocation5 + $0x28] sm:$0xff]
    %v79 = vld [vmem:[#allocation5 + $0x30] sm:$0xff]
    %v80 = vld [vmem:[#allocation5 + $0x38] sm:$0xff]
    %v81 = vld [vmem:[#allocation5 + $0x40] sm:$0xff]
    %v82 = vld [vmem:[#allocation5 + $0x48] sm:$0xff]
    %v83 = vld [vmem:[#allocation5 + $0x50] sm:$0xff]
    %v84 = vld [vmem:[#allocation5 + $0x58] sm:$0xff]
    %vm85 = vcmask 785408
    %v87 = vsel %vm85, %v65, 0
    %v90 = vsel %vm85, %v66, 0
    %v93 = vsel %vm85, %v67, 0
    %v96 = vsel %vm85, %v68, 0
    %v99 = vsel %vm85, %v69, 0
    %v102 = vsel %vm85, %v70, 0
    %v105 = vsel %vm85, %v71, 0
    %v108 = vsel %vm85, %v72, 0
    %110 = vmatpush.msra.mxu0 0.0
    %111 = vmatpush.msra.mxu0 0.0
    %112 = vmatpush.msra.mxu0 0.0
    %113 = vmatpush.msra.mxu0 0.0
    %114 = vmatpush.msra.mxu0 %v84
    %115 = vmatpush.msra.mxu0 %v83
    %116 = vmatpush.msra.mxu0 %v82
    %117 = vmatpush.msra.mxu0 %v81
    %118 = vmatpush.msra.mxu0 %v80
    %119 = vmatpush.msra.mxu0 %v79
    %120 = vmatpush.msra.mxu0 %v78
    %121 = vmatpush.msra.mxu0 %v77
    %122 = vmatpush.msra.mxu0 %v76
    %123 = vmatpush.msra.mxu0 %v75
    %124 = vmatpush.msra.mxu0 %v74
    %125 = vmatpush.msra.mxu0 %v73
    %126 = vmatmul.f32.gmra.mxu0 %v87
    %v127 = vpop.f32.mrf.mxu0
    %v128 = vadd.f32 0.0, %v127
    %129 = vmatmul.f32.gmra.mxu0 %v90
    %v130 = vpop.f32.mrf.mxu0
    %v131 = vadd.f32 0.0, %v130
    %132 = vmatmul.f32.gmra.mxu0 %v93
    %v133 = vpop.f32.mrf.mxu0
    %v134 = vadd.f32 0.0, %v133
    %135 = vmatmul.f32.gmra.mxu0 %v96
    %v136 = vpop.f32.mrf.mxu0
    %v137 = vadd.f32 0.0, %v136
    %138 = vmatmul.f32.gmra.mxu0 %v99
    %v139 = vpop.f32.mrf.mxu0
    %v140 = vadd.f32 0.0, %v139
    %141 = vmatmul.f32.gmra.mxu0 %v102
    %v142 = vpop.f32.mrf.mxu0
    %v143 = vadd.f32 0.0, %v142
    %144 = vmatmul.f32.gmra.mxu0 %v105
    %v145 = vpop.f32.mrf.mxu0
    %v146 = vadd.f32 0.0, %v145
    %147 = vmatmul.f32.gmra.mxu0 %v108
    %v148 = vpop.f32.mrf.mxu0
    %v149 = vadd.f32 0.0, %v148
    %150 = vdwg.mxu0
    %s151 = scalar_lea.vmem [#allocation5], 96
    %v152 = vld [vmem:[%s151] sm:$0xff]
    %v153 = vld [vmem:[%s151 + $0x8] sm:$0xff]
    %v154 = vld [vmem:[%s151 + $0x10] sm:$0xff]
    %v155 = vld [vmem:[%s151 + $0x18] sm:$0xff]
    %v156 = vld [vmem:[%s151 + $0x20] sm:$0xff]
    %v157 = vld [vmem:[%s151 + $0x28] sm:$0xff]
    %v158 = vld [vmem:[%s151 + $0x30] sm:$0xff]
    %v159 = vld [vmem:[%s151 + $0x38] sm:$0xff]
    %v160 = vld [vmem:[%s151 + $0x40] sm:$0xff]
    %v161 = vld [vmem:[%s151 + $0x48] sm:$0xff]
    %v162 = vld [vmem:[%s151 + $0x50] sm:$0xff]
    %v163 = vld [vmem:[%s151 + $0x58] sm:$0xff]
    %164 = vmatpush.msra.mxu0 0.0
    %165 = vmatpush.msra.mxu0 0.0
    %166 = vmatpush.msra.mxu0 0.0
    %167 = vmatpush.msra.mxu0 0.0
    %168 = vmatpush.msra.mxu0 %v163
    %169 = vmatpush.msra.mxu0 %v162
    %170 = vmatpush.msra.mxu0 %v161
    %171 = vmatpush.msra.mxu0 %v160
    %172 = vmatpush.msra.mxu0 %v159
    %173 = vmatpush.msra.mxu0 %v158
    %174 = vmatpush.msra.mxu0 %v157
    %175 = vmatpush.msra.mxu0 %v156
    %176 = vmatpush.msra.mxu0 %v155
    %177 = vmatpush.msra.mxu0 %v154
    %178 = vmatpush.msra.mxu0 %v153
    %179 = vmatpush.msra.mxu0 %v152
    %180 = vmatmul.f32.gmra.mxu0 %v87
    %v181 = vpop.f32.mrf.mxu0
    %v182 = vadd.f32 0.0, %v181
    %183 = vmatmul.f32.gmra.mxu0 %v90
    %v184 = vpop.f32.mrf.mxu0
    %v185 = vadd.f32 0.0, %v184
    %186 = vmatmul.f32.gmra.mxu0 %v93
    %v187 = vpop.f32.mrf.mxu0
    %v188 = vadd.f32 0.0, %v187
    %189 = vmatmul.f32.gmra.mxu0 %v96
    %v190 = vpop.f32.mrf.mxu0
    %v191 = vadd.f32 0.0, %v190
    %192 = vmatmul.f32.gmra.mxu0 %v99
    %v193 = vpop.f32.mrf.mxu0
    %v194 = vadd.f32 0.0, %v193
    %195 = vmatmul.f32.gmra.mxu0 %v102
    %v196 = vpop.f32.mrf.mxu0
    %v197 = vadd.f32 0.0, %v196
    %198 = vmatmul.f32.gmra.mxu0 %v105
    %v199 = vpop.f32.mrf.mxu0
    %v200 = vadd.f32 0.0, %v199
    %201 = vmatmul.f32.gmra.mxu0 %v108
    %v202 = vpop.f32.mrf.mxu0
    %v203 = vadd.f32 0.0, %v202
    %204 = vdwg.mxu0
    %s205 = scalar_lea.vmem [#allocation5], 192
    %v206 = vld [vmem:[%s205] sm:$0xff]
    %v207 = vld [vmem:[%s205 + $0x8] sm:$0xff]
    %v208 = vld [vmem:[%s205 + $0x10] sm:$0xff]
    %v209 = vld [vmem:[%s205 + $0x18] sm:$0xff]
    %v210 = vld [vmem:[%s205 + $0x20] sm:$0xff]
    %v211 = vld [vmem:[%s205 + $0x28] sm:$0xff]
    %v212 = vld [vmem:[%s205 + $0x30] sm:$0xff]
    %v213 = vld [vmem:[%s205 + $0x38] sm:$0xff]
    %v214 = vld [vmem:[%s205 + $0x40] sm:$0xff]
    %v215 = vld [vmem:[%s205 + $0x48] sm:$0xff]
    %v216 = vld [vmem:[%s205 + $0x50] sm:$0xff]
    %v217 = vld [vmem:[%s205 + $0x58] sm:$0xff]
    %218 = vmatpush.msra.mxu0 0.0
    %219 = vmatpush.msra.mxu0 0.0
    %220 = vmatpush.msra.mxu0 0.0
    %221 = vmatpush.msra.mxu0 0.0
    %222 = vmatpush.msra.mxu0 %v217
    %223 = vmatpush.msra.mxu0 %v216
    %224 = vmatpush.msra.mxu0 %v215
    %225 = vmatpush.msra.mxu0 %v214
    %226 = vmatpush.msra.mxu0 %v213
    %227 = vmatpush.msra.mxu0 %v212
    %228 = vmatpush.msra.mxu0 %v211
    %229 = vmatpush.msra.mxu0 %v210
    %230 = vmatpush.msra.mxu0 %v209
    %231 = vmatpush.msra.mxu0 %v208
    %232 = vmatpush.msra.mxu0 %v207
    %233 = vmatpush.msra.mxu0 %v206
    %234 = vmatmul.f32.gmra.mxu0 %v87
    %v235 = vpop.f32.mrf.mxu0
    %v236 = vadd.f32 0.0, %v235
    %237 = vmatmul.f32.gmra.mxu0 %v90
    %v238 = vpop.f32.mrf.mxu0
    %v239 = vadd.f32 0.0, %v238
    %240 = vmatmul.f32.gmra.mxu0 %v93
    %v241 = vpop.f32.mrf.mxu0
    %v242 = vadd.f32 0.0, %v241
    %243 = vmatmul.f32.gmra.mxu0 %v96
    %v244 = vpop.f32.mrf.mxu0
    %v245 = vadd.f32 0.0, %v244
    %246 = vmatmul.f32.gmra.mxu0 %v99
    %v247 = vpop.f32.mrf.mxu0
    %v248 = vadd.f32 0.0, %v247
    %249 = vmatmul.f32.gmra.mxu0 %v102
    %v250 = vpop.f32.mrf.mxu0
    %v251 = vadd.f32 0.0, %v250
    %252 = vmatmul.f32.gmra.mxu0 %v105
    %v253 = vpop.f32.mrf.mxu0
    %v254 = vadd.f32 0.0, %v253
    %255 = vmatmul.f32.gmra.mxu0 %v108
    %v256 = vpop.f32.mrf.mxu0
    %v257 = vadd.f32 0.0, %v256
    %258 = vdwg.mxu0
    %v259 = vlaneseq
    %v260 = vshrl.u32 %v259, 7
    %v261 = vadd.s32 %v260, 8
    %v262 = vlaneseq
    %v263 = vand.u32 %v262, 127
    %vm264 = vcmp.ge.s32.totalorder %v260, %v263
    %vm265 = vcmp.ge.s32.totalorder %v261, %v263
    %v266 = vld [vmem:[%s3] sm:$0x1]
    %v268 = vperm.slane %v266, 0
    %vm270 = vcmask 130048
    %v272 = vsel %vm270, %v128, 0
    %v275 = vsel %vm270, %v131, 0
    %v278 = vsel %vm270, %v182, 0
    %v281 = vsel %vm270, %v185, 0
    %283 = vmatpush.xpose.msra.mxu0 0.0
    %284 = vmatpush.xpose.msra.mxu0 0.0
    %285 = vmatpush.xpose.msra.mxu0 0.0
    %286 = vmatpush.xpose.msra.mxu0 0.0
    %287 = vmatpush.xpose.msra.mxu0 0.0
    %288 = vmatpush.xpose.msra.mxu0 0.0
    %289 = vmatpush.xpose.msra.mxu0 0.0
    %290 = vmatpush.xpose.msra.mxu0 0.0
    %291 = vmatpush.xpose.msra.mxu0 0.0
    %292 = vmatpush.xpose.msra.mxu0 0.0
    %293 = vmatpush.xpose.msra.mxu0 0.0
    %294 = vmatpush.xpose.msra.mxu0 0.0
    %295 = vmatpush.xpose.msra.mxu0 0.0
    %296 = vmatpush.xpose.msra.mxu0 0.0
    %297 = vmatpush.xpose.msra.mxu0 %v281
    %298 = vmatpush.xpose.msra.mxu0 %v278
    %299 = vmatmul.f32.gmra.mxu0 %v272
    %v300 = vpop.f32.mrf.mxu0
    %v301 = vadd.f32 0.0, %v300
    %302 = vmatmul.f32.gmra.mxu0 %v275
    %v303 = vpop.f32.mrf.mxu0
    %v304 = vadd.f32 0.0, %v303
    %305 = vdwg.mxu0
    %v307 = vsel %vm270, %v134, 0
    %v310 = vsel %vm270, %v137, 0
    %v313 = vsel %vm270, %v188, 0
    %v316 = vsel %vm270, %v191, 0
    %318 = vmatpush.xpose.msra.mxu0 0.0
    %319 = vmatpush.xpose.msra.mxu0 0.0
    %320 = vmatpush.xpose.msra.mxu0 0.0
    %321 = vmatpush.xpose.msra.mxu0 0.0
    %322 = vmatpush.xpose.msra.mxu0 0.0
    %323 = vmatpush.xpose.msra.mxu0 0.0
    %324 = vmatpush.xpose.msra.mxu0 0.0
    %325 = vmatpush.xpose.msra.mxu0 0.0
    %326 = vmatpush.xpose.msra.mxu0 0.0
    %327 = vmatpush.xpose.msra.mxu0 0.0
    %328 = vmatpush.xpose.msra.mxu0 0.0
    %329 = vmatpush.xpose.msra.mxu0 0.0
    %330 = vmatpush.xpose.msra.mxu0 0.0
    %331 = vmatpush.xpose.msra.mxu0 0.0
    %332 = vmatpush.xpose.msra.mxu0 %v316
    %333 = vmatpush.xpose.msra.mxu0 %v313
    %334 = vmatmul.f32.gmra.mxu0 %v307
    %v335 = vpop.f32.mrf.mxu0
    %v336 = vadd.f32 0.0, %v335
    %337 = vmatmul.f32.gmra.mxu0 %v310
    %v338 = vpop.f32.mrf.mxu0
    %v339 = vadd.f32 0.0, %v338
    %340 = vdwg.mxu0
    %v342 = vsel %vm270, %v140, 0
    %v345 = vsel %vm270, %v143, 0
    %v348 = vsel %vm270, %v194, 0
    %v351 = vsel %vm270, %v197, 0
    %353 = vmatpush.xpose.msra.mxu0 0.0
    %354 = vmatpush.xpose.msra.mxu0 0.0
    %355 = vmatpush.xpose.msra.mxu0 0.0
    %356 = vmatpush.xpose.msra.mxu0 0.0
    %357 = vmatpush.xpose.msra.mxu0 0.0
    %358 = vmatpush.xpose.msra.mxu0 0.0
    %359 = vmatpush.xpose.msra.mxu0 0.0
    %360 = vmatpush.xpose.msra.mxu0 0.0
    %361 = vmatpush.xpose.msra.mxu0 0.0
    %362 = vmatpush.xpose.msra.mxu0 0.0
    %363 = vmatpush.xpose.msra.mxu0 0.0
    %364 = vmatpush.xpose.msra.mxu0 0.0
    %365 = vmatpush.xpose.msra.mxu0 0.0
    %366 = vmatpush.xpose.msra.mxu0 0.0
    %367 = vmatpush.xpose.msra.mxu0 %v351
    %368 = vmatpush.xpose.msra.mxu0 %v348
    %369 = vmatmul.f32.gmra.mxu0 %v342
    %v370 = vpop.f32.mrf.mxu0
    %v371 = vadd.f32 0.0, %v370
    %372 = vmatmul.f32.gmra.mxu0 %v345
    %v373 = vpop.f32.mrf.mxu0
    %v374 = vadd.f32 0.0, %v373
    %375 = vdwg.mxu0
    %v377 = vsel %vm270, %v146, 0
    %v380 = vsel %vm270, %v149, 0
    %v383 = vsel %vm270, %v200, 0
    %v386 = vsel %vm270, %v203, 0
    %388 = vmatpush.xpose.msra.mxu0 0.0
    %389 = vmatpush.xpose.msra.mxu0 0.0
    %390 = vmatpush.xpose.msra.mxu0 0.0
    %391 = vmatpush.xpose.msra.mxu0 0.0
    %392 = vmatpush.xpose.msra.mxu0 0.0
    %393 = vmatpush.xpose.msra.mxu0 0.0
    %394 = vmatpush.xpose.msra.mxu0 0.0
    %395 = vmatpush.xpose.msra.mxu0 0.0
    %396 = vmatpush.xpose.msra.mxu0 0.0
    %397 = vmatpush.xpose.msra.mxu0 0.0
    %398 = vmatpush.xpose.msra.mxu0 0.0
    %399 = vmatpush.xpose.msra.mxu0 0.0
    %400 = vmatpush.xpose.msra.mxu0 0.0
    %401 = vmatpush.xpose.msra.mxu0 0.0
    %402 = vmatpush.xpose.msra.mxu0 %v386
    %403 = vmatpush.xpose.msra.mxu0 %v383
    %404 = vmatmul.f32.gmra.mxu0 %v377
    %v405 = vpop.f32.mrf.mxu0
    %v406 = vadd.f32 0.0, %v405
    %407 = vmatmul.f32.gmra.mxu0 %v380
    %v408 = vpop.f32.mrf.mxu0
    %v409 = vadd.f32 0.0, %v408
    %410 = vdwg.mxu0
    %v411 = vsel %vm264, 1, 0
    %v412 = vsel %vm265, 1, 0
    %vm413 = vcmp.eq.s32.totalorder %v411, 1
    %vm414 = vcmp.eq.s32.totalorder %v412, 1
    %v415 = vsel %vm413, %v301, -1e+30
    %v416 = vsel %vm414, %v304, -1e+30
    %v417 = vsel %vm413, %v336, -1e+30
    %v418 = vsel %vm414, %v339, -1e+30
    %v419 = vsel %vm413, %v371, -1e+30
    %v420 = vsel %vm414, %v374, -1e+30
    %v421 = vsel %vm413, %v406, -1e+30
    %v422 = vsel %vm414, %v409, -1e+30
    %v423 = vsel %vm270, %v415, -inf
    %424 = vmax.xlane.f32.xlu0 %v423
    %v425 = vpop.xlane.xlu0 %424
    %v426 = vsel %vm270, %v416, -inf
    %427 = vmax.xlane.f32.xlu0 %v426
    %v428 = vpop.xlane.xlu0 %427
    %v429 = vsel %vm270, %v417, -inf
    %430 = vmax.xlane.f32.xlu0 %v429
    %v431 = vpop.xlane.xlu0 %430
    %v432 = vsel %vm270, %v418, -inf
    %433 = vmax.xlane.f32.xlu0 %v432
    %v434 = vpop.xlane.xlu0 %433
    %v435 = vsel %vm270, %v419, -inf
    %436 = vmax.xlane.f32.xlu0 %v435
    %v437 = vpop.xlane.xlu0 %436
    %v438 = vsel %vm270, %v420, -inf
    %439 = vmax.xlane.f32.xlu0 %v438
    %v440 = vpop.xlane.xlu0 %439
    %v441 = vsel %vm270, %v421, -inf
    %442 = vmax.xlane.f32.xlu0 %v441
    %v443 = vpop.xlane.xlu0 %442
    %v444 = vsel %vm270, %v422, -inf
    %445 = vmax.xlane.f32.xlu0 %v444
    %v446 = vpop.xlane.xlu0 %445
    %v447 = vsub.f32 %v415, %v425
    %v448 = vsub.f32 %v416, %v428
    %v449 = vsub.f32 %v417, %v431
    %v450 = vsub.f32 %v418, %v434
    %v451 = vsub.f32 %v419, %v437
    %v452 = vsub.f32 %v420, %v440
    %v453 = vsub.f32 %v421, %v443
    %v454 = vsub.f32 %v422, %v446
    %v455 = vmul.f32 %v447, 1.442695
    %v456 = vpow.pop %v455
    %v457 = vmul.f32 %v448, 1.442695
    %v458 = vpow.pop %v457
    %v459 = vmul.f32 %v449, 1.442695
    %v460 = vpow.pop %v459
    %v461 = vmul.f32 %v450, 1.442695
    %v462 = vpow.pop %v461
    %v463 = vmul.f32 %v451, 1.442695
    %v464 = vpow.pop %v463
    %v465 = vmul.f32 %v452, 1.442695
    %v466 = vpow.pop %v465
    %v467 = vmul.f32 %v453, 1.442695
    %v468 = vpow.pop %v467
    %v469 = vmul.f32 %v454, 1.442695
    %v470 = vpow.pop %v469
    %v471 = vsel %vm270, %v456, 0.0
    %472 = vadd.xlane.f32.xlu0 %v471
    %v473 = vpop.xlane.xlu0 %472
    %v474 = vsel %vm270, %v458, 0.0
    %475 = vadd.xlane.f32.xlu0 %v474
    %v476 = vpop.xlane.xlu0 %475
    %v477 = vsel %vm270, %v460, 0.0
    %478 = vadd.xlane.f32.xlu0 %v477
    %v479 = vpop.xlane.xlu0 %478
    %v480 = vsel %vm270, %v462, 0.0
    %481 = vadd.xlane.f32.xlu0 %v480
    %v482 = vpop.xlane.xlu0 %481
    %v483 = vsel %vm270, %v464, 0.0
    %484 = vadd.xlane.f32.xlu0 %v483
    %v485 = vpop.xlane.xlu0 %484
    %v486 = vsel %vm270, %v466, 0.0
    %487 = vadd.xlane.f32.xlu0 %v486
    %v488 = vpop.xlane.xlu0 %487
    %v489 = vsel %vm270, %v468, 0.0
    %490 = vadd.xlane.f32.xlu0 %v489
    %v491 = vpop.xlane.xlu0 %490
    %v492 = vsel %vm270, %v470, 0.0
    %493 = vadd.xlane.f32.xlu0 %v492
    %v494 = vpop.xlane.xlu0 %493
    %v496 = vsel %vm270, %v456, 0
    %v499 = vsel %vm270, %v458, 0
    %501 = vmatpush.msra.mxu0 0.0
    %502 = vmatpush.msra.mxu0 0.0
    %503 = vmatpush.msra.mxu0 0.0
    %504 = vmatpush.msra.mxu0 0.0
    %505 = vmatpush.msra.mxu0 0.0
    %506 = vmatpush.msra.mxu0 0.0
    %507 = vmatpush.msra.mxu0 0.0
    %508 = vmatpush.msra.mxu0 0.0
    %509 = vmatpush.msra.mxu0 0.0
    %510 = vmatpush.msra.mxu0 0.0
    %511 = vmatpush.msra.mxu0 0.0
    %512 = vmatpush.msra.mxu0 0.0
    %513 = vmatpush.msra.mxu0 0.0
    %514 = vmatpush.msra.mxu0 0.0
    %515 = vmatpush.msra.mxu0 %v239
    %516 = vmatpush.msra.mxu0 %v236
    %517 = vmatmul.f32.gmra.mxu0 %v496
    %v518 = vpop.f32.mrf.mxu0
    %v519 = vadd.f32 0.0, %v518
    %520 = vmatmul.f32.gmra.mxu0 %v499
    %v521 = vpop.f32.mrf.mxu0
    %v522 = vadd.f32 0.0, %v521
    %523 = vdwg.mxu0
    %v525 = vsel %vm270, %v460, 0
    %v528 = vsel %vm270, %v462, 0
    %530 = vmatpush.msra.mxu0 0.0
    %531 = vmatpush.msra.mxu0 0.0
    %532 = vmatpush.msra.mxu0 0.0
    %533 = vmatpush.msra.mxu0 0.0
    %534 = vmatpush.msra.mxu0 0.0
    %535 = vmatpush.msra.mxu0 0.0
    %536 = vmatpush.msra.mxu0 0.0
    %537 = vmatpush.msra.mxu0 0.0
    %538 = vmatpush.msra.mxu0 0.0
    %539 = vmatpush.msra.mxu0 0.0
    %540 = vmatpush.msra.mxu0 0.0
    %541 = vmatpush.msra.mxu0 0.0
    %542 = vmatpush.msra.mxu0 0.0
    %543 = vmatpush.msra.mxu0 0.0
    %544 = vmatpush.msra.mxu0 %v245
    %545 = vmatpush.msra.mxu0 %v242
    %546 = vmatmul.f32.gmra.mxu0 %v525
    %v547 = vpop.f32.mrf.mxu0
    %v548 = vadd.f32 0.0, %v547
    %549 = vmatmul.f32.gmra.mxu0 %v528
    %v550 = vpop.f32.mrf.mxu0
    %v551 = vadd.f32 0.0, %v550
    %552 = vdwg.mxu0
    %v554 = vsel %vm270, %v464, 0
    %v557 = vsel %vm270, %v466, 0
    %559 = vmatpush.msra.mxu0 0.0
    %560 = vmatpush.msra.mxu0 0.0
    %561 = vmatpush.msra.mxu0 0.0
    %562 = vmatpush.msra.mxu0 0.0
    %563 = vmatpush.msra.mxu0 0.0
    %564 = vmatpush.msra.mxu0 0.0
    %565 = vmatpush.msra.mxu0 0.0
    %566 = vmatpush.msra.mxu0 0.0
    %567 = vmatpush.msra.mxu0 0.0
    %568 = vmatpush.msra.mxu0 0.0
    %569 = vmatpush.msra.mxu0 0.0
    %570 = vmatpush.msra.mxu0 0.0
    %571 = vmatpush.msra.mxu0 0.0
    %572 = vmatpush.msra.mxu0 0.0
    %573 = vmatpush.msra.mxu0 %v251
    %574 = vmatpush.msra.mxu0 %v248
    %575 = vmatmul.f32.gmra.mxu0 %v554
    %v576 = vpop.f32.mrf.mxu0
    %v577 = vadd.f32 0.0, %v576
    %578 = vmatmul.f32.gmra.mxu0 %v557
    %v579 = vpop.f32.mrf.mxu0
    %v580 = vadd.f32 0.0, %v579
    %581 = vdwg.mxu0
    %v583 = vsel %vm270, %v468, 0
    %v586 = vsel %vm270, %v470, 0
    %588 = vmatpush.msra.mxu0 0.0
    %589 = vmatpush.msra.mxu0 0.0
    %590 = vmatpush.msra.mxu0 0.0
    %591 = vmatpush.msra.mxu0 0.0
    %592 = vmatpush.msra.mxu0 0.0
    %593 = vmatpush.msra.mxu0 0.0
    %594 = vmatpush.msra.mxu0 0.0
    %595 = vmatpush.msra.mxu0 0.0
    %596 = vmatpush.msra.mxu0 0.0
    %597 = vmatpush.msra.mxu0 0.0
    %598 = vmatpush.msra.mxu0 0.0
    %599 = vmatpush.msra.mxu0 0.0
    %600 = vmatpush.msra.mxu0 0.0
    %601 = vmatpush.msra.mxu0 0.0
    %602 = vmatpush.msra.mxu0 %v257
    %603 = vmatpush.msra.mxu0 %v254
    %604 = vmatmul.f32.gmra.mxu0 %v583
    %v605 = vpop.f32.mrf.mxu0
    %v606 = vadd.f32 0.0, %v605
    %607 = vmatmul.f32.gmra.mxu0 %v586
    %v608 = vpop.f32.mrf.mxu0
    %v609 = vadd.f32 0.0, %v608
    %610 = vdwg.mxu0
    %v611 = vrcp.pop %v473
    %v612 = vmul.f32 %v473, %v611
    %v613 = vsub.f32 1.0, %v612
    %v614 = vmul.f32 %v611, %v613
    %v615 = vadd.f32 %v611, %v614
    %vm616 = vweird.f32 %v473
    %vm617 = vweird.f32 %v611
    %vm618 = vmor %vm616, %vm617
    %v619 = vsel %vm618, %v611, %v615
    %v620 = vand.u32 2147483647, %v473
    %vm621 = vcmp.eq.f32.partialorder %v620, 8.507059e+37
    %v622 = vand.u32 %v473, 2147483648
    %v623 = vor.u32 1.1754944e-38, %v622
    %v624 = vsel %vm621, %v623, %v619
    %v625 = vmul.f32 %v519, %v624
    %v626 = vrcp.pop %v476
    %v627 = vmul.f32 %v476, %v626
    %v628 = vsub.f32 1.0, %v627
    %v629 = vmul.f32 %v626, %v628
    %v630 = vadd.f32 %v626, %v629
    %vm631 = vweird.f32 %v476
    %vm632 = vweird.f32 %v626
    %vm633 = vmor %vm631, %vm632
    %v634 = vsel %vm633, %v626, %v630
    %v635 = vand.u32 2147483647, %v476
    %vm636 = vcmp.eq.f32.partialorder %v635, 8.507059e+37
    %v637 = vand.u32 %v476, 2147483648
    %v638 = vor.u32 1.1754944e-38, %v637
    %v639 = vsel %vm636, %v638, %v634
    %v640 = vmul.f32 %v522, %v639
    %v641 = vrcp.pop %v479
    %v642 = vmul.f32 %v479, %v641
    %v643 = vsub.f32 1.0, %v642
    %v644 = vmul.f32 %v641, %v643
    %v645 = vadd.f32 %v641, %v644
    %vm646 = vweird.f32 %v479
    %vm647 = vweird.f32 %v641
    %vm648 = vmor %vm646, %vm647
    %v649 = vsel %vm648, %v641, %v645
    %v650 = vand.u32 2147483647, %v479
    %vm651 = vcmp.eq.f32.partialorder %v650, 8.507059e+37
    %v652 = vand.u32 %v479, 2147483648
    %v653 = vor.u32 1.1754944e-38, %v652
    %v654 = vsel %vm651, %v653, %v649
    %v655 = vmul.f32 %v548, %v654
    %v656 = vrcp.pop %v482
    %v657 = vmul.f32 %v482, %v656
    %v658 = vsub.f32 1.0, %v657
    %v659 = vmul.f32 %v656, %v658
    %v660 = vadd.f32 %v656, %v659
    %vm661 = vweird.f32 %v482
    %vm662 = vweird.f32 %v656
    %vm663 = vmor %vm661, %vm662
    %v664 = vsel %vm663, %v656, %v660
    %v665 = vand.u32 2147483647, %v482
    %vm666 = vcmp.eq.f32.partialorder %v665, 8.507059e+37
    %v667 = vand.u32 %v482, 2147483648
    %v668 = vor.u32 1.1754944e-38, %v667
    %v669 = vsel %vm666, %v668, %v664
    %v670 = vmul.f32 %v551, %v669
    %v671 = vrcp.pop %v485
    %v672 = vmul.f32 %v485, %v671
    %v673 = vsub.f32 1.0, %v672
    %v674 = vmul.f32 %v671, %v673
    %v675 = vadd.f32 %v671, %v674
    %vm676 = vweird.f32 %v485
    %vm677 = vweird.f32 %v671
    %vm678 = vmor %vm676, %vm677
    %v679 = vsel %vm678, %v671, %v675
    %v680 = vand.u32 2147483647, %v485
    %vm681 = vcmp.eq.f32.partialorder %v680, 8.507059e+37
    %v682 = vand.u32 %v485, 2147483648
    %v683 = vor.u32 1.1754944e-38, %v682
    %v684 = vsel %vm681, %v683, %v679
    %v685 = vmul.f32 %v577, %v684
    %v686 = vrcp.pop %v488
    %v687 = vmul.f32 %v488, %v686
    %v688 = vsub.f32 1.0, %v687
    %v689 = vmul.f32 %v686, %v688
    %v690 = vadd.f32 %v686, %v689
    %vm691 = vweird.f32 %v488
    %vm692 = vweird.f32 %v686
    %vm693 = vmor %vm691, %vm692
    %v694 = vsel %vm693, %v686, %v690
    %v695 = vand.u32 2147483647, %v488
    %vm696 = vcmp.eq.f32.partialorder %v695, 8.507059e+37
    %v697 = vand.u32 %v488, 2147483648
    %v698 = vor.u32 1.1754944e-38, %v697
    %v699 = vsel %vm696, %v698, %v694
    %v700 = vmul.f32 %v580, %v699
    %v701 = vrcp.pop %v491
    %v702 = vmul.f32 %v491, %v701
    %v703 = vsub.f32 1.0, %v702
    %v704 = vmul.f32 %v701, %v703
    %v705 = vadd.f32 %v701, %v704
    %vm706 = vweird.f32 %v491
    %vm707 = vweird.f32 %v701
    %vm708 = vmor %vm706, %vm707
    %v709 = vsel %vm708, %v701, %v705
    %v710 = vand.u32 2147483647, %v491
    %vm711 = vcmp.eq.f32.partialorder %v710, 8.507059e+37
    %v712 = vand.u32 %v491, 2147483648
    %v713 = vor.u32 1.1754944e-38, %v712
    %v714 = vsel %vm711, %v713, %v709
    %v715 = vmul.f32 %v606, %v714
    %v716 = vrcp.pop %v494
    %v717 = vmul.f32 %v494, %v716
    %v718 = vsub.f32 1.0, %v717
    %v719 = vmul.f32 %v716, %v718
    %v720 = vadd.f32 %v716, %v719
    %vm721 = vweird.f32 %v494
    %vm722 = vweird.f32 %v716
    %vm723 = vmor %vm721, %vm722
    %v724 = vsel %vm723, %v716, %v720
    %v725 = vand.u32 2147483647, %v494
    %vm726 = vcmp.eq.f32.partialorder %v725, 8.507059e+37
    %v727 = vand.u32 %v494, 2147483648
    %v728 = vor.u32 1.1754944e-38, %v727
    %v729 = vsel %vm726, %v728, %v724
    %v730 = vmul.f32 %v609, %v729
    %v731 = vld [vmem:[#allocation7] sm:$0xff]
    %v732 = vld [vmem:[#allocation7 + $0x8] sm:$0xff]
    %v734 = vsel %vm270, %v625, 0
    %v737 = vsel %vm270, %v640, 0
    %v740 = vsel %vm270, %v655, 0
    %v743 = vsel %vm270, %v670, 0
    %v746 = vsel %vm270, %v685, 0
    %v749 = vsel %vm270, %v700, 0
    %v752 = vsel %vm270, %v715, 0
    %v755 = vsel %vm270, %v730, 0
    %757 = vmatpush.msra.mxu0 0.0
    %758 = vmatpush.msra.mxu0 0.0
    %759 = vmatpush.msra.mxu0 0.0
    %760 = vmatpush.msra.mxu0 0.0
    %761 = vmatpush.msra.mxu0 0.0
    %762 = vmatpush.msra.mxu0 0.0
    %763 = vmatpush.msra.mxu0 0.0
    %764 = vmatpush.msra.mxu0 0.0
    %765 = vmatpush.msra.mxu0 0.0
    %766 = vmatpush.msra.mxu0 0.0
    %767 = vmatpush.msra.mxu0 0.0
    %768 = vmatpush.msra.mxu0 0.0
    %769 = vmatpush.msra.mxu0 0.0
    %770 = vmatpush.msra.mxu0 0.0
    %771 = vmatpush.msra.mxu0 %v732
    %772 = vmatpush.msra.mxu0 %v731
    %773 = vmatmul.f32.gmra.mxu0 %v734
    %v774 = vpop.f32.mrf.mxu0
    %v775 = vadd.f32 0.0, %v774
    %776 = vmatmul.f32.gmra.mxu0 %v737
    %v777 = vpop.f32.mrf.mxu0
    %v778 = vadd.f32 0.0, %v777
    %779 = vmatmul.f32.gmra.mxu0 %v740
    %v780 = vpop.f32.mrf.mxu0
    %v781 = vadd.f32 0.0, %v780
    %782 = vmatmul.f32.gmra.mxu0 %v743
    %v783 = vpop.f32.mrf.mxu0
    %v784 = vadd.f32 0.0, %v783
    %785 = vmatmul.f32.gmra.mxu0 %v746
    %v786 = vpop.f32.mrf.mxu0
    %v787 = vadd.f32 0.0, %v786
    %788 = vmatmul.f32.gmra.mxu0 %v749
    %v789 = vpop.f32.mrf.mxu0
    %v790 = vadd.f32 0.0, %v789
    %791 = vmatmul.f32.gmra.mxu0 %v752
    %v792 = vpop.f32.mrf.mxu0
    %v793 = vadd.f32 0.0, %v792
    %794 = vmatmul.f32.gmra.mxu0 %v755
    %v795 = vpop.f32.mrf.mxu0
    %v796 = vadd.f32 0.0, %v795
    %797 = vdwg.mxu0
    %v798 = vadd.f32 %v268, %v775
    %v799 = vadd.f32 %v268, %v778
    %v800 = vadd.f32 %v268, %v781
    %v801 = vadd.f32 %v268, %v784
    %v802 = vadd.f32 %v268, %v787
    %v803 = vadd.f32 %v268, %v790
    %v804 = vadd.f32 %v268, %v793
    %v805 = vadd.f32 %v268, %v796
    %806 = vrot.lane.b32.xlu0 %v128, 112
    %v807 = vpop.permute.xlu0 %806
    %808 = vrot.lane.b32.xlu0 %v131, 112
    %v809 = vpop.permute.xlu0 %808
    %810 = vrot.lane.b32.xlu0 %v182, 112
    %v811 = vpop.permute.xlu0 %810
    %812 = vrot.lane.b32.xlu0 %v185, 112
    %v813 = vpop.permute.xlu0 %812
    %v814 = vsel %vm270, %v807, 0
    %v816 = vsel %vm270, %v809, 0
    %v818 = vsel %vm270, %v811, 0
    %v820 = vsel %vm270, %v813, 0
    %822 = vmatpush.xpose.msra.mxu0 0.0
    %823 = vmatpush.xpose.msra.mxu0 0.0
    %824 = vmatpush.xpose.msra.mxu0 0.0
    %825 = vmatpush.xpose.msra.mxu0 0.0
    %826 = vmatpush.xpose.msra.mxu0 0.0
    %827 = vmatpush.xpose.msra.mxu0 0.0
    %828 = vmatpush.xpose.msra.mxu0 0.0
    %829 = vmatpush.xpose.msra.mxu0 0.0
    %830 = vmatpush.xpose.msra.mxu0 0.0
    %831 = vmatpush.xpose.msra.mxu0 0.0
    %832 = vmatpush.xpose.msra.mxu0 0.0
    %833 = vmatpush.xpose.msra.mxu0 0.0
    %834 = vmatpush.xpose.msra.mxu0 0.0
    %835 = vmatpush.xpose.msra.mxu0 0.0
    %836 = vmatpush.xpose.msra.mxu0 %v820
    %837 = vmatpush.xpose.msra.mxu0 %v818
    %838 = vmatmul.f32.gmra.mxu0 %v814
    %v839 = vpop.f32.mrf.mxu0
    %v840 = vadd.f32 0.0, %v839
    %841 = vmatmul.f32.gmra.mxu0 %v816
    %v842 = vpop.f32.mrf.mxu0
    %v843 = vadd.f32 0.0, %v842
    %844 = vdwg.mxu0
    %845 = vrot.lane.b32.xlu0 %v134, 112
    %v846 = vpop.permute.xlu0 %845
    %847 = vrot.lane.b32.xlu0 %v137, 112
    %v848 = vpop.permute.xlu0 %847
    %849 = vrot.lane.b32.xlu0 %v188, 112
    %v850 = vpop.permute.xlu0 %849
    %851 = vrot.lane.b32.xlu0 %v191, 112
    %v852 = vpop.permute.xlu0 %851
    %v853 = vsel %vm270, %v846, 0
    %v855 = vsel %vm270, %v848, 0
    %v857 = vsel %vm270, %v850, 0
    %v859 = vsel %vm270, %v852, 0
    %861 = vmatpush.xpose.msra.mxu0 0.0
    %862 = vmatpush.xpose.msra.mxu0 0.0
    %863 = vmatpush.xpose.msra.mxu0 0.0
    %864 = vmatpush.xpose.msra.mxu0 0.0
    %865 = vmatpush.xpose.msra.mxu0 0.0
    %866 = vmatpush.xpose.msra.mxu0 0.0
    %867 = vmatpush.xpose.msra.mxu0 0.0
    %868 = vmatpush.xpose.msra.mxu0 0.0
    %869 = vmatpush.xpose.msra.mxu0 0.0
    %870 = vmatpush.xpose.msra.mxu0 0.0
    %871 = vmatpush.xpose.msra.mxu0 0.0
    %872 = vmatpush.xpose.msra.mxu0 0.0
    %873 = vmatpush.xpose.msra.mxu0 0.0
    %874 = vmatpush.xpose.msra.mxu0 0.0
    %875 = vmatpush.xpose.msra.mxu0 %v859
    %876 = vmatpush.xpose.msra.mxu0 %v857
    %877 = vmatmul.f32.gmra.mxu0 %v853
    %v878 = vpop.f32.mrf.mxu0
    %v879 = vadd.f32 0.0, %v878
    %880 = vmatmul.f32.gmra.mxu0 %v855
    %v881 = vpop.f32.mrf.mxu0
    %v882 = vadd.f32 0.0, %v881
    %883 = vdwg.mxu0
    %884 = vrot.lane.b32.xlu0 %v140, 112
    %v885 = vpop.permute.xlu0 %884
    %886 = vrot.lane.b32.xlu0 %v143, 112
    %v887 = vpop.permute.xlu0 %886
    %888 = vrot.lane.b32.xlu0 %v194, 112
    %v889 = vpop.permute.xlu0 %888
    %890 = vrot.lane.b32.xlu0 %v197, 112
    %v891 = vpop.permute.xlu0 %890
    %v892 = vsel %vm270, %v885, 0
    %v894 = vsel %vm270, %v887, 0
    %v896 = vsel %vm270, %v889, 0
    %v898 = vsel %vm270, %v891, 0
    %900 = vmatpush.xpose.msra.mxu0 0.0
    %901 = vmatpush.xpose.msra.mxu0 0.0
    %902 = vmatpush.xpose.msra.mxu0 0.0
    %903 = vmatpush.xpose.msra.mxu0 0.0
    %904 = vmatpush.xpose.msra.mxu0 0.0
    %905 = vmatpush.xpose.msra.mxu0 0.0
    %906 = vmatpush.xpose.msra.mxu0 0.0
    %907 = vmatpush.xpose.msra.mxu0 0.0
    %908 = vmatpush.xpose.msra.mxu0 0.0
    %909 = vmatpush.xpose.msra.mxu0 0.0
    %910 = vmatpush.xpose.msra.mxu0 0.0
    %911 = vmatpush.xpose.msra.mxu0 0.0
    %912 = vmatpush.xpose.msra.mxu0 0.0
    %913 = vmatpush.xpose.msra.mxu0 0.0
    %914 = vmatpush.xpose.msra.mxu0 %v898
    %915 = vmatpush.xpose.msra.mxu0 %v896
    %916 = vmatmul.f32.gmra.mxu0 %v892
    %v917 = vpop.f32.mrf.mxu0
    %v918 = vadd.f32 0.0, %v917
    %919 = vmatmul.f32.gmra.mxu0 %v894
    %v920 = vpop.f32.mrf.mxu0
    %v921 = vadd.f32 0.0, %v920
    %922 = vdwg.mxu0
    %923 = vrot.lane.b32.xlu0 %v146, 112
    %v924 = vpop.permute.xlu0 %923
    %925 = vrot.lane.b32.xlu0 %v149, 112
    %v926 = vpop.permute.xlu0 %925
    %927 = vrot.lane.b32.xlu0 %v200, 112
    %v928 = vpop.permute.xlu0 %927
    %929 = vrot.lane.b32.xlu0 %v203, 112
    %v930 = vpop.permute.xlu0 %929
    %v931 = vsel %vm270, %v924, 0
    %v933 = vsel %vm270, %v926, 0
    %v935 = vsel %vm270, %v928, 0
    %v937 = vsel %vm270, %v930, 0
    %939 = vmatpush.xpose.msra.mxu0 0.0
    %940 = vmatpush.xpose.msra.mxu0 0.0
    %941 = vmatpush.xpose.msra.mxu0 0.0
    %942 = vmatpush.xpose.msra.mxu0 0.0
    %943 = vmatpush.xpose.msra.mxu0 0.0
    %944 = vmatpush.xpose.msra.mxu0 0.0
    %945 = vmatpush.xpose.msra.mxu0 0.0
    %946 = vmatpush.xpose.msra.mxu0 0.0
    %947 = vmatpush.xpose.msra.mxu0 0.0
    %948 = vmatpush.xpose.msra.mxu0 0.0
    %949 = vmatpush.xpose.msra.mxu0 0.0
    %950 = vmatpush.xpose.msra.mxu0 0.0
    %951 = vmatpush.xpose.msra.mxu0 0.0
    %952 = vmatpush.xpose.msra.mxu0 0.0
    %953 = vmatpush.xpose.msra.mxu0 %v937
    %954 = vmatpush.xpose.msra.mxu0 %v935
    %955 = vmatmul.f32.gmra.mxu0 %v931
    %v956 = vpop.f32.mrf.mxu0
    %v957 = vadd.f32 0.0, %v956
    %958 = vmatmul.f32.gmra.mxu0 %v933
    %v959 = vpop.f32.mrf.mxu0
    %v960 = vadd.f32 0.0, %v959
    %961 = vdwg.mxu0
    %v962 = vsel %vm413, %v840, -1e+30
    %v963 = vsel %vm414, %v843, -1e+30
    %v964 = vsel %vm413, %v879, -1e+30
    %v965 = vsel %vm414, %v882, -1e+30
    %v966 = vsel %vm413, %v918, -1e+30
    %v967 = vsel %vm414, %v921, -1e+30
    %v968 = vsel %vm413, %v957, -1e+30
    %v969 = vsel %vm414, %v960, -1e+30
    %v970 = vsel %vm270, %v962, -inf
    %971 = vmax.xlane.f32.xlu0 %v970
    %v972 = vpop.xlane.xlu0 %971
    %v973 = vsel %vm270, %v963, -inf
    %974 = vmax.xlane.f32.xlu0 %v973
    %v975 = vpop.xlane.xlu0 %974
    %v976 = vsel %vm270, %v964, -inf
    %977 = vmax.xlane.f32.xlu0 %v976
    %v978 = vpop.xlane.xlu0 %977
    %v979 = vsel %vm270, %v965, -inf
    %980 = vmax.xlane.f32.xlu0 %v979
    %v981 = vpop.xlane.xlu0 %980
    %v982 = vsel %vm270, %v966, -inf
    %983 = vmax.xlane.f32.xlu0 %v982
    %v984 = vpop.xlane.xlu0 %983
    %v985 = vsel %vm270, %v967, -inf
    %986 = vmax.xlane.f32.xlu0 %v985
    %v987 = vpop.xlane.xlu0 %986
    %v988 = vsel %vm270, %v968, -inf
    %989 = vmax.xlane.f32.xlu0 %v988
    %v990 = vpop.xlane.xlu0 %989
    %v991 = vsel %vm270, %v969, -inf
    %992 = vmax.xlane.f32.xlu0 %v991
    %v993 = vpop.xlane.xlu0 %992
    %v994 = vsub.f32 %v962, %v972
    %v995 = vsub.f32 %v963, %v975
    %v996 = vsub.f32 %v964, %v978
    %v997 = vsub.f32 %v965, %v981
    %v998 = vsub.f32 %v966, %v984
    %v999 = vsub.f32 %v967, %v987
    %v1000 = vsub.f32 %v968, %v990
    %v1001 = vsub.f32 %v969, %v993
    %v1002 = vmul.f32 %v994, 1.442695
    %v1003 = vpow.pop %v1002
    %v1004 = vmul.f32 %v995, 1.442695
    %v1005 = vpow.pop %v1004
    %v1006 = vmul.f32 %v996, 1.442695
    %v1007 = vpow.pop %v1006
    %v1008 = vmul.f32 %v997, 1.442695
    %v1009 = vpow.pop %v1008
    %v1010 = vmul.f32 %v998, 1.442695
    %v1011 = vpow.pop %v1010
    %v1012 = vmul.f32 %v999, 1.442695
    %v1013 = vpow.pop %v1012
    %v1014 = vmul.f32 %v1000, 1.442695
    %v1015 = vpow.pop %v1014
    %v1016 = vmul.f32 %v1001, 1.442695
    %v1017 = vpow.pop %v1016
    %v1018 = vsel %vm270, %v1003, 0.0
    %1019 = vadd.xlane.f32.xlu0 %v1018
    %v1020 = vpop.xlane.xlu0 %1019
    %v1021 = vsel %vm270, %v1005, 0.0
    %1022 = vadd.xlane.f32.xlu0 %v1021
    %v1023 = vpop.xlane.xlu0 %1022
    %v1024 = vsel %vm270, %v1007, 0.0
    %1025 = vadd.xlane.f32.xlu0 %v1024
    %v1026 = vpop.xlane.xlu0 %1025
    %v1027 = vsel %vm270, %v1009, 0.0
    %1028 = vadd.xlane.f32.xlu0 %v1027
    %v1029 = vpop.xlane.xlu0 %1028
    %v1030 = vsel %vm270, %v1011, 0.0
    %1031 = vadd.xlane.f32.xlu0 %v1030
    %v1032 = vpop.xlane.xlu0 %1031
    %v1033 = vsel %vm270, %v1013, 0.0
    %1034 = vadd.xlane.f32.xlu0 %v1033
    %v1035 = vpop.xlane.xlu0 %1034
    %v1036 = vsel %vm270, %v1015, 0.0
    %1037 = vadd.xlane.f32.xlu0 %v1036
    %v1038 = vpop.xlane.xlu0 %1037
    %v1039 = vsel %vm270, %v1017, 0.0
    %1040 = vadd.xlane.f32.xlu0 %v1039
    %v1041 = vpop.xlane.xlu0 %1040
    %1044 = vrot.lane.b32.xlu0 %v236, 112
    %v1045 = vpop.permute.xlu0 %1044
    %1046 = vrot.lane.b32.xlu0 %v239, 112
    %v1047 = vpop.permute.xlu0 %1046
    %v1051 = vsel %vm270, %v1003, 0
    %v1054 = vsel %vm270, %v1005, 0
    %1056 = vmatpush.msra.mxu0 0.0
    %1057 = vmatpush.msra.mxu0 0.0
    %1058 = vmatpush.msra.mxu0 0.0
    %1059 = vmatpush.msra.mxu0 0.0
    %1060 = vmatpush.msra.mxu0 0.0
    %1061 = vmatpush.msra.mxu0 0.0
    %1062 = vmatpush.msra.mxu0 0.0
    %1063 = vmatpush.msra.mxu0 0.0
    %1064 = vmatpush.msra.mxu0 0.0
    %1065 = vmatpush.msra.mxu0 0.0
    %1066 = vmatpush.msra.mxu0 0.0
    %1067 = vmatpush.msra.mxu0 0.0
    %1068 = vmatpush.msra.mxu0 0.0
    %1069 = vmatpush.msra.mxu0 0.0
    %1070 = vmatpush.msra.mxu0 %v1047
    %1071 = vmatpush.msra.mxu0 %v1045
    %1072 = vmatmul.f32.gmra.mxu0 %v1051
    %v1073 = vpop.f32.mrf.mxu0
    %v1074 = vadd.f32 0.0, %v1073
    %1075 = vmatmul.f32.gmra.mxu0 %v1054
    %v1076 = vpop.f32.mrf.mxu0
    %v1077 = vadd.f32 0.0, %v1076
    %1078 = vdwg.mxu0
    %1081 = vrot.lane.b32.xlu0 %v242, 112
    %v1082 = vpop.permute.xlu0 %1081
    %1083 = vrot.lane.b32.xlu0 %v245, 112
    %v1084 = vpop.permute.xlu0 %1083
    %v1088 = vsel %vm270, %v1007, 0
    %v1091 = vsel %vm270, %v1009, 0
    %1093 = vmatpush.msra.mxu0 0.0
    %1094 = vmatpush.msra.mxu0 0.0
    %1095 = vmatpush.msra.mxu0 0.0
    %1096 = vmatpush.msra.mxu0 0.0
    %1097 = vmatpush.msra.mxu0 0.0
    %1098 = vmatpush.msra.mxu0 0.0
    %1099 = vmatpush.msra.mxu0 0.0
    %1100 = vmatpush.msra.mxu0 0.0
    %1101 = vmatpush.msra.mxu0 0.0
    %1102 = vmatpush.msra.mxu0 0.0
    %1103 = vmatpush.msra.mxu0 0.0
    %1104 = vmatpush.msra.mxu0 0.0
    %1105 = vmatpush.msra.mxu0 0.0
    %1106 = vmatpush.msra.mxu0 0.0
    %1107 = vmatpush.msra.mxu0 %v1084
    %1108 = vmatpush.msra.mxu0 %v1082
    %1109 = vmatmul.f32.gmra.mxu0 %v1088
    %v1110 = vpop.f32.mrf.mxu0
    %v1111 = vadd.f32 0.0, %v1110
    %1112 = vmatmul.f32.gmra.mxu0 %v1091
    %v1113 = vpop.f32.mrf.mxu0
    %v1114 = vadd.f32 0.0, %v1113
    %1115 = vdwg.mxu0
    %1118 = vrot.lane.b32.xlu0 %v248, 112
    %v1119 = vpop.permute.xlu0 %1118
    %1120 = vrot.lane.b32.xlu0 %v251, 112
    %v1121 = vpop.permute.xlu0 %1120
    %v1125 = vsel %vm270, %v1011, 0
    %v1128 = vsel %vm270, %v1013, 0
    %1130 = vmatpush.msra.mxu0 0.0
    %1131 = vmatpush.msra.mxu0 0.0
    %1132 = vmatpush.msra.mxu0 0.0
    %1133 = vmatpush.msra.mxu0 0.0
    %1134 = vmatpush.msra.mxu0 0.0
    %1135 = vmatpush.msra.mxu0 0.0
    %1136 = vmatpush.msra.mxu0 0.0
    %1137 = vmatpush.msra.mxu0 0.0
    %1138 = vmatpush.msra.mxu0 0.0
    %1139 = vmatpush.msra.mxu0 0.0
    %1140 = vmatpush.msra.mxu0 0.0
    %1141 = vmatpush.msra.mxu0 0.0
    %1142 = vmatpush.msra.mxu0 0.0
    %1143 = vmatpush.msra.mxu0 0.0
    %1144 = vmatpush.msra.mxu0 %v1121
    %1145 = vmatpush.msra.mxu0 %v1119
    %1146 = vmatmul.f32.gmra.mxu0 %v1125
    %v1147 = vpop.f32.mrf.mxu0
    %v1148 = vadd.f32 0.0, %v1147
    %1149 = vmatmul.f32.gmra.mxu0 %v1128
    %v1150 = vpop.f32.mrf.mxu0
    %v1151 = vadd.f32 0.0, %v1150
    %1152 = vdwg.mxu0
    %1155 = vrot.lane.b32.xlu0 %v254, 112
    %v1156 = vpop.permute.xlu0 %1155
    %1157 = vrot.lane.b32.xlu0 %v257, 112
    %v1158 = vpop.permute.xlu0 %1157
    %v1162 = vsel %vm270, %v1015, 0
    %v1165 = vsel %vm270, %v1017, 0
    %1167 = vmatpush.msra.mxu0 0.0
    %1168 = vmatpush.msra.mxu0 0.0
    %1169 = vmatpush.msra.mxu0 0.0
    %1170 = vmatpush.msra.mxu0 0.0
    %1171 = vmatpush.msra.mxu0 0.0
    %1172 = vmatpush.msra.mxu0 0.0
    %1173 = vmatpush.msra.mxu0 0.0
    %1174 = vmatpush.msra.mxu0 0.0
    %1175 = vmatpush.msra.mxu0 0.0
    %1176 = vmatpush.msra.mxu0 0.0
    %1177 = vmatpush.msra.mxu0 0.0
    %1178 = vmatpush.msra.mxu0 0.0
    %1179 = vmatpush.msra.mxu0 0.0
    %1180 = vmatpush.msra.mxu0 0.0
    %1181 = vmatpush.msra.mxu0 %v1158
    %1182 = vmatpush.msra.mxu0 %v1156
    %1183 = vmatmul.f32.gmra.mxu0 %v1162
    %v1184 = vpop.f32.mrf.mxu0
    %v1185 = vadd.f32 0.0, %v1184
    %1186 = vmatmul.f32.gmra.mxu0 %v1165
    %v1187 = vpop.f32.mrf.mxu0
    %v1188 = vadd.f32 0.0, %v1187
    %1189 = vdwg.mxu0
    %v1190 = vrcp.pop %v1020
    %v1191 = vmul.f32 %v1020, %v1190
    %v1192 = vsub.f32 1.0, %v1191
    %v1193 = vmul.f32 %v1190, %v1192
    %v1194 = vadd.f32 %v1190, %v1193
    %vm1195 = vweird.f32 %v1020
    %vm1196 = vweird.f32 %v1190
    %vm1197 = vmor %vm1195, %vm1196
    %v1198 = vsel %vm1197, %v1190, %v1194
    %v1199 = vand.u32 2147483647, %v1020
    %vm1200 = vcmp.eq.f32.partialorder %v1199, 8.507059e+37
    %v1201 = vand.u32 %v1020, 2147483648
    %v1202 = vor.u32 1.1754944e-38, %v1201
    %v1203 = vsel %vm1200, %v1202, %v1198
    %v1204 = vmul.f32 %v1074, %v1203
    %v1205 = vrcp.pop %v1023
    %v1206 = vmul.f32 %v1023, %v1205
    %v1207 = vsub.f32 1.0, %v1206
    %v1208 = vmul.f32 %v1205, %v1207
    %v1209 = vadd.f32 %v1205, %v1208
    %vm1210 = vweird.f32 %v1023
    %vm1211 = vweird.f32 %v1205
    %vm1212 = vmor %vm1210, %vm1211
    %v1213 = vsel %vm1212, %v1205, %v1209
    %v1214 = vand.u32 2147483647, %v1023
    %vm1215 = vcmp.eq.f32.partialorder %v1214, 8.507059e+37
    %v1216 = vand.u32 %v1023, 2147483648
    %v1217 = vor.u32 1.1754944e-38, %v1216
    %v1218 = vsel %vm1215, %v1217, %v1213
    %v1219 = vmul.f32 %v1077, %v1218
    %v1220 = vrcp.pop %v1026
    %v1221 = vmul.f32 %v1026, %v1220
    %v1222 = vsub.f32 1.0, %v1221
    %v1223 = vmul.f32 %v1220, %v1222
    %v1224 = vadd.f32 %v1220, %v1223
    %vm1225 = vweird.f32 %v1026
    %vm1226 = vweird.f32 %v1220
    %vm1227 = vmor %vm1225, %vm1226
    %v1228 = vsel %vm1227, %v1220, %v1224
    %v1229 = vand.u32 2147483647, %v1026
    %vm1230 = vcmp.eq.f32.partialorder %v1229, 8.507059e+37
    %v1231 = vand.u32 %v1026, 2147483648
    %v1232 = vor.u32 1.1754944e-38, %v1231
    %v1233 = vsel %vm1230, %v1232, %v1228
    %v1234 = vmul.f32 %v1111, %v1233
    %v1235 = vrcp.pop %v1029
    %v1236 = vmul.f32 %v1029, %v1235
    %v1237 = vsub.f32 1.0, %v1236
    %v1238 = vmul.f32 %v1235, %v1237
    %v1239 = vadd.f32 %v1235, %v1238
    %vm1240 = vweird.f32 %v1029
    %vm1241 = vweird.f32 %v1235
    %vm1242 = vmor %vm1240, %vm1241
    %v1243 = vsel %vm1242, %v1235, %v1239
    %v1244 = vand.u32 2147483647, %v1029
    %vm1245 = vcmp.eq.f32.partialorder %v1244, 8.507059e+37
    %v1246 = vand.u32 %v1029, 2147483648
    %v1247 = vor.u32 1.1754944e-38, %v1246
    %v1248 = vsel %vm1245, %v1247, %v1243
    %v1249 = vmul.f32 %v1114, %v1248
    %v1250 = vrcp.pop %v1032
    %v1251 = vmul.f32 %v1032, %v1250
    %v1252 = vsub.f32 1.0, %v1251
    %v1253 = vmul.f32 %v1250, %v1252
    %v1254 = vadd.f32 %v1250, %v1253
    %vm1255 = vweird.f32 %v1032
    %vm1256 = vweird.f32 %v1250
    %vm1257 = vmor %vm1255, %vm1256
    %v1258 = vsel %vm1257, %v1250, %v1254
    %v1259 = vand.u32 2147483647, %v1032
    %vm1260 = vcmp.eq.f32.partialorder %v1259, 8.507059e+37
    %v1261 = vand.u32 %v1032, 2147483648
    %v1262 = vor.u32 1.1754944e-38, %v1261
    %v1263 = vsel %vm1260, %v1262, %v1258
    %v1264 = vmul.f32 %v1148, %v1263
    %v1265 = vrcp.pop %v1035
    %v1266 = vmul.f32 %v1035, %v1265
    %v1267 = vsub.f32 1.0, %v1266
    %v1268 = vmul.f32 %v1265, %v1267
    %v1269 = vadd.f32 %v1265, %v1268
    %vm1270 = vweird.f32 %v1035
    %vm1271 = vweird.f32 %v1265
    %vm1272 = vmor %vm1270, %vm1271
    %v1273 = vsel %vm1272, %v1265, %v1269
    %v1274 = vand.u32 2147483647, %v1035
    %vm1275 = vcmp.eq.f32.partialorder %v1274, 8.507059e+37
    %v1276 = vand.u32 %v1035, 2147483648
    %v1277 = vor.u32 1.1754944e-38, %v1276
    %v1278 = vsel %vm1275, %v1277, %v1273
    %v1279 = vmul.f32 %v1151, %v1278
    %v1280 = vrcp.pop %v1038
    %v1281 = vmul.f32 %v1038, %v1280
    %v1282 = vsub.f32 1.0, %v1281
    %v1283 = vmul.f32 %v1280, %v1282
    %v1284 = vadd.f32 %v1280, %v1283
    %vm1285 = vweird.f32 %v1038
    %vm1286 = vweird.f32 %v1280
    %vm1287 = vmor %vm1285, %vm1286
    %v1288 = vsel %vm1287, %v1280, %v1284
    %v1289 = vand.u32 2147483647, %v1038
    %vm1290 = vcmp.eq.f32.partialorder %v1289, 8.507059e+37
    %v1291 = vand.u32 %v1038, 2147483648
    %v1292 = vor.u32 1.1754944e-38, %v1291
    %v1293 = vsel %vm1290, %v1292, %v1288
    %v1294 = vmul.f32 %v1185, %v1293
    %v1295 = vrcp.pop %v1041
    %v1296 = vmul.f32 %v1041, %v1295
    %v1297 = vsub.f32 1.0, %v1296
    %v1298 = vmul.f32 %v1295, %v1297
    %v1299 = vadd.f32 %v1295, %v1298
    %vm1300 = vweird.f32 %v1041
    %vm1301 = vweird.f32 %v1295
    %vm1302 = vmor %vm1300, %vm1301
    %v1303 = vsel %vm1302, %v1295, %v1299
    %v1304 = vand.u32 2147483647, %v1041
    %vm1305 = vcmp.eq.f32.partialorder %v1304, 8.507059e+37
    %v1306 = vand.u32 %v1041, 2147483648
    %v1307 = vor.u32 1.1754944e-38, %v1306
    %v1308 = vsel %vm1305, %v1307, %v1303
    %v1309 = vmul.f32 %v1188, %v1308
    %s1310 = scalar_lea.vmem [#allocation7], 16
    %v1311 = vld [vmem:[%s1310] sm:$0xff]
    %v1312 = vld [vmem:[%s1310 + $0x8] sm:$0xff]
    %v1314 = vsel %vm270, %v1204, 0
    %v1317 = vsel %vm270, %v1219, 0
    %v1320 = vsel %vm270, %v1234, 0
    %v1323 = vsel %vm270, %v1249, 0
    %v1326 = vsel %vm270, %v1264, 0
    %v1329 = vsel %vm270, %v1279, 0
    %v1332 = vsel %vm270, %v1294, 0
    %v1335 = vsel %vm270, %v1309, 0
    %1337 = vmatpush.msra.mxu0 0.0
    %1338 = vmatpush.msra.mxu0 0.0
    %1339 = vmatpush.msra.mxu0 0.0
    %1340 = vmatpush.msra.mxu0 0.0
    %1341 = vmatpush.msra.mxu0 0.0
    %1342 = vmatpush.msra.mxu0 0.0
    %1343 = vmatpush.msra.mxu0 0.0
    %1344 = vmatpush.msra.mxu0 0.0
    %1345 = vmatpush.msra.mxu0 0.0
    %1346 = vmatpush.msra.mxu0 0.0
    %1347 = vmatpush.msra.mxu0 0.0
    %1348 = vmatpush.msra.mxu0 0.0
    %1349 = vmatpush.msra.mxu0 0.0
    %1350 = vmatpush.msra.mxu0 0.0
    %1351 = vmatpush.msra.mxu0 %v1312
    %1352 = vmatpush.msra.mxu0 %v1311
    %1353 = vmatmul.f32.gmra.mxu0 %v1314
    %v1354 = vpop.f32.mrf.mxu0
    %v1355 = vadd.f32 0.0, %v1354
    %1356 = vmatmul.f32.gmra.mxu0 %v1317
    %v1357 = vpop.f32.mrf.mxu0
    %v1358 = vadd.f32 0.0, %v1357
    %1359 = vmatmul.f32.gmra.mxu0 %v1320
    %v1360 = vpop.f32.mrf.mxu0
    %v1361 = vadd.f32 0.0, %v1360
    %1362 = vmatmul.f32.gmra.mxu0 %v1323
    %v1363 = vpop.f32.mrf.mxu0
    %v1364 = vadd.f32 0.0, %v1363
    %1365 = vmatmul.f32.gmra.mxu0 %v1326
    %v1366 = vpop.f32.mrf.mxu0
    %v1367 = vadd.f32 0.0, %v1366
    %1368 = vmatmul.f32.gmra.mxu0 %v1329
    %v1369 = vpop.f32.mrf.mxu0
    %v1370 = vadd.f32 0.0, %v1369
    %1371 = vmatmul.f32.gmra.mxu0 %v1332
    %v1372 = vpop.f32.mrf.mxu0
    %v1373 = vadd.f32 0.0, %v1372
    %1374 = vmatmul.f32.gmra.mxu0 %v1335
    %v1375 = vpop.f32.mrf.mxu0
    %v1376 = vadd.f32 0.0, %v1375
    %1377 = vdwg.mxu0
    %v1378 = vadd.f32 %v798, %v1355
    %v1379 = vadd.f32 %v799, %v1358
    %v1380 = vadd.f32 %v800, %v1361
    %v1381 = vadd.f32 %v801, %v1364
    %v1382 = vadd.f32 %v802, %v1367
    %v1383 = vadd.f32 %v803, %v1370
    %v1384 = vadd.f32 %v804, %v1373
    %v1385 = vadd.f32 %v805, %v1376
    %1386 = vrot.lane.b32.xlu0 %v128, 96
    %v1387 = vpop.permute.xlu0 %1386
    %1388 = vrot.lane.b32.xlu0 %v131, 96
    %v1389 = vpop.permute.xlu0 %1388
    %1390 = vrot.lane.b32.xlu0 %v182, 96
    %v1391 = vpop.permute.xlu0 %1390
    %1392 = vrot.lane.b32.xlu0 %v185, 96
    %v1393 = vpop.permute.xlu0 %1392
    %v1394 = vsel %vm270, %v1387, 0
    %v1396 = vsel %vm270, %v1389, 0
    %v1398 = vsel %vm270, %v1391, 0
    %v1400 = vsel %vm270, %v1393, 0
    %1402 = vmatpush.xpose.msra.mxu0 0.0
    %1403 = vmatpush.xpose.msra.mxu0 0.0
    %1404 = vmatpush.xpose.msra.mxu0 0.0
    %1405 = vmatpush.xpose.msra.mxu0 0.0
    %1406 = vmatpush.xpose.msra.mxu0 0.0
    %1407 = vmatpush.xpose.msra.mxu0 0.0
    %1408 = vmatpush.xpose.msra.mxu0 0.0
    %1409 = vmatpush.xpose.msra.mxu0 0.0
    %1410 = vmatpush.xpose.msra.mxu0 0.0
    %1411 = vmatpush.xpose.msra.mxu0 0.0
    %1412 = vmatpush.xpose.msra.mxu0 0.0
    %1413 = vmatpush.xpose.msra.mxu0 0.0
    %1414 = vmatpush.xpose.msra.mxu0 0.0
    %1415 = vmatpush.xpose.msra.mxu0 0.0
    %1416 = vmatpush.xpose.msra.mxu0 %v1400
    %1417 = vmatpush.xpose.msra.mxu0 %v1398
    %1418 = vmatmul.f32.gmra.mxu0 %v1394
    %v1419 = vpop.f32.mrf.mxu0
    %v1420 = vadd.f32 0.0, %v1419
    %1421 = vmatmul.f32.gmra.mxu0 %v1396
    %v1422 = vpop.f32.mrf.mxu0
    %v1423 = vadd.f32 0.0, %v1422
    %1424 = vdwg.mxu0
    %1425 = vrot.lane.b32.xlu0 %v134, 96
    %v1426 = vpop.permute.xlu0 %1425
    %1427 = vrot.lane.b32.xlu0 %v137, 96
    %v1428 = vpop.permute.xlu0 %1427
    %1429 = vrot.lane.b32.xlu0 %v188, 96
    %v1430 = vpop.permute.xlu0 %1429
    %1431 = vrot.lane.b32.xlu0 %v191, 96
    %v1432 = vpop.permute.xlu0 %1431
    %v1433 = vsel %vm270, %v1426, 0
    %v1435 = vsel %vm270, %v1428, 0
    %v1437 = vsel %vm270, %v1430, 0
    %v1439 = vsel %vm270, %v1432, 0
    %1441 = vmatpush.xpose.msra.mxu0 0.0
    %1442 = vmatpush.xpose.msra.mxu0 0.0
    %1443 = vmatpush.xpose.msra.mxu0 0.0
    %1444 = vmatpush.xpose.msra.mxu0 0.0
    %1445 = vmatpush.xpose.msra.mxu0 0.0
    %1446 = vmatpush.xpose.msra.mxu0 0.0
    %1447 = vmatpush.xpose.msra.mxu0 0.0
    %1448 = vmatpush.xpose.msra.mxu0 0.0
    %1449 = vmatpush.xpose.msra.mxu0 0.0
    %1450 = vmatpush.xpose.msra.mxu0 0.0
    %1451 = vmatpush.xpose.msra.mxu0 0.0
    %1452 = vmatpush.xpose.msra.mxu0 0.0
    %1453 = vmatpush.xpose.msra.mxu0 0.0
    %1454 = vmatpush.xpose.msra.mxu0 0.0
    %1455 = vmatpush.xpose.msra.mxu0 %v1439
    %1456 = vmatpush.xpose.msra.mxu0 %v1437
    %1457 = vmatmul.f32.gmra.mxu0 %v1433
    %v1458 = vpop.f32.mrf.mxu0
    %v1459 = vadd.f32 0.0, %v1458
    %1460 = vmatmul.f32.gmra.mxu0 %v1435
    %v1461 = vpop.f32.mrf.mxu0
    %v1462 = vadd.f32 0.0, %v1461
    %1463 = vdwg.mxu0
    %1464 = vrot.lane.b32.xlu0 %v140, 96
    %v1465 = vpop.permute.xlu0 %1464
    %1466 = vrot.lane.b32.xlu0 %v143, 96
    %v1467 = vpop.permute.xlu0 %1466
    %1468 = vrot.lane.b32.xlu0 %v194, 96
    %v1469 = vpop.permute.xlu0 %1468
    %1470 = vrot.lane.b32.xlu0 %v197, 96
    %v1471 = vpop.permute.xlu0 %1470
    %v1472 = vsel %vm270, %v1465, 0
    %v1474 = vsel %vm270, %v1467, 0
    %v1476 = vsel %vm270, %v1469, 0
    %v1478 = vsel %vm270, %v1471, 0
    %1480 = vmatpush.xpose.msra.mxu0 0.0
    %1481 = vmatpush.xpose.msra.mxu0 0.0
    %1482 = vmatpush.xpose.msra.mxu0 0.0
    %1483 = vmatpush.xpose.msra.mxu0 0.0
    %1484 = vmatpush.xpose.msra.mxu0 0.0
    %1485 = vmatpush.xpose.msra.mxu0 0.0
    %1486 = vmatpush.xpose.msra.mxu0 0.0
    %1487 = vmatpush.xpose.msra.mxu0 0.0
    %1488 = vmatpush.xpose.msra.mxu0 0.0
    %1489 = vmatpush.xpose.msra.mxu0 0.0
    %1490 = vmatpush.xpose.msra.mxu0 0.0
    %1491 = vmatpush.xpose.msra.mxu0 0.0
    %1492 = vmatpush.xpose.msra.mxu0 0.0
    %1493 = vmatpush.xpose.msra.mxu0 0.0
    %1494 = vmatpush.xpose.msra.mxu0 %v1478
    %1495 = vmatpush.xpose.msra.mxu0 %v1476
    %1496 = vmatmul.f32.gmra.mxu0 %v1472
    %v1497 = vpop.f32.mrf.mxu0
    %v1498 = vadd.f32 0.0, %v1497
    %1499 = vmatmul.f32.gmra.mxu0 %v1474
    %v1500 = vpop.f32.mrf.mxu0
    %v1501 = vadd.f32 0.0, %v1500
    %1502 = vdwg.mxu0
    %1503 = vrot.lane.b32.xlu0 %v146, 96
    %v1504 = vpop.permute.xlu0 %1503
    %1505 = vrot.lane.b32.xlu0 %v149, 96
    %v1506 = vpop.permute.xlu0 %1505
    %1507 = vrot.lane.b32.xlu0 %v200, 96
    %v1508 = vpop.permute.xlu0 %1507
    %1509 = vrot.lane.b32.xlu0 %v203, 96
    %v1510 = vpop.permute.xlu0 %1509
    %v1511 = vsel %vm270, %v1504, 0
    %v1513 = vsel %vm270, %v1506, 0
    %v1515 = vsel %vm270, %v1508, 0
    %v1517 = vsel %vm270, %v1510, 0
    %1519 = vmatpush.xpose.msra.mxu0 0.0
    %1520 = vmatpush.xpose.msra.mxu0 0.0
    %1521 = vmatpush.xpose.msra.mxu0 0.0
    %1522 = vmatpush.xpose.msra.mxu0 0.0
    %1523 = vmatpush.xpose.msra.mxu0 0.0
    %1524 = vmatpush.xpose.msra.mxu0 0.0
    %1525 = vmatpush.xpose.msra.mxu0 0.0
    %1526 = vmatpush.xpose.msra.mxu0 0.0
    %1527 = vmatpush.xpose.msra.mxu0 0.0
    %1528 = vmatpush.xpose.msra.mxu0 0.0
    %1529 = vmatpush.xpose.msra.mxu0 0.0
    %1530 = vmatpush.xpose.msra.mxu0 0.0
    %1531 = vmatpush.xpose.msra.mxu0 0.0
    %1532 = vmatpush.xpose.msra.mxu0 0.0
    %1533 = vmatpush.xpose.msra.mxu0 %v1517
    %1534 = vmatpush.xpose.msra.mxu0 %v1515
    %1535 = vmatmul.f32.gmra.mxu0 %v1511
    %v1536 = vpop.f32.mrf.mxu0
    %v1537 = vadd.f32 0.0, %v1536
    %1538 = vmatmul.f32.gmra.mxu0 %v1513
    %v1539 = vpop.f32.mrf.mxu0
    %v1540 = vadd.f32 0.0, %v1539
    %1541 = vdwg.mxu0
    %v1542 = vsel %vm413, %v1420, -1e+30
    %v1543 = vsel %vm414, %v1423, -1e+30
    %v1544 = vsel %vm413, %v1459, -1e+30
    %v1545 = vsel %vm414, %v1462, -1e+30
    %v1546 = vsel %vm413, %v1498, -1e+30
    %v1547 = vsel %vm414, %v1501, -1e+30
    %v1548 = vsel %vm413, %v1537, -1e+30
    %v1549 = vsel %vm414, %v1540, -1e+30
    %v1550 = vsel %vm270, %v1542, -inf
    %1551 = vmax.xlane.f32.xlu0 %v1550
    %v1552 = vpop.xlane.xlu0 %1551
    %v1553 = vsel %vm270, %v1543, -inf
    %1554 = vmax.xlane.f32.xlu0 %v1553
    %v1555 = vpop.xlane.xlu0 %1554
    %v1556 = vsel %vm270, %v1544, -inf
    %1557 = vmax.xlane.f32.xlu0 %v1556
    %v1558 = vpop.xlane.xlu0 %1557
    %v1559 = vsel %vm270, %v1545, -inf
    %1560 = vmax.xlane.f32.xlu0 %v1559
    %v1561 = vpop.xlane.xlu0 %1560
    %v1562 = vsel %vm270, %v1546, -inf
    %1563 = vmax.xlane.f32.xlu0 %v1562
    %v1564 = vpop.xlane.xlu0 %1563
    %v1565 = vsel %vm270, %v1547, -inf
    %1566 = vmax.xlane.f32.xlu0 %v1565
    %v1567 = vpop.xlane.xlu0 %1566
    %v1568 = vsel %vm270, %v1548, -inf
    %1569 = vmax.xlane.f32.xlu0 %v1568
    %v1570 = vpop.xlane.xlu0 %1569
    %v1571 = vsel %vm270, %v1549, -inf
    %1572 = vmax.xlane.f32.xlu0 %v1571
    %v1573 = vpop.xlane.xlu0 %1572
    %v1574 = vsub.f32 %v1542, %v1552
    %v1575 = vsub.f32 %v1543, %v1555
    %v1576 = vsub.f32 %v1544, %v1558
    %v1577 = vsub.f32 %v1545, %v1561
    %v1578 = vsub.f32 %v1546, %v1564
    %v1579 = vsub.f32 %v1547, %v1567
    %v1580 = vsub.f32 %v1548, %v1570
    %v1581 = vsub.f32 %v1549, %v1573
    %v1582 = vmul.f32 %v1574, 1.442695
    %v1583 = vpow.pop %v1582
    %v1584 = vmul.f32 %v1575, 1.442695
    %v1585 = vpow.pop %v1584
    %v1586 = vmul.f32 %v1576, 1.442695
    %v1587 = vpow.pop %v1586
    %v1588 = vmul.f32 %v1577, 1.442695
    %v1589 = vpow.pop %v1588
    %v1590 = vmul.f32 %v1578, 1.442695
    %v1591 = vpow.pop %v1590
    %v1592 = vmul.f32 %v1579, 1.442695
    %v1593 = vpow.pop %v1592
    %v1594 = vmul.f32 %v1580, 1.442695
    %v1595 = vpow.pop %v1594
    %v1596 = vmul.f32 %v1581, 1.442695
    %v1597 = vpow.pop %v1596
    %v1598 = vsel %vm270, %v1583, 0.0
    %1599 = vadd.xlane.f32.xlu0 %v1598
    %v1600 = vpop.xlane.xlu0 %1599
    %v1601 = vsel %vm270, %v1585, 0.0
    %1602 = vadd.xlane.f32.xlu0 %v1601
    %v1603 = vpop.xlane.xlu0 %1602
    %v1604 = vsel %vm270, %v1587, 0.0
    %1605 = vadd.xlane.f32.xlu0 %v1604
    %v1606 = vpop.xlane.xlu0 %1605
    %v1607 = vsel %vm270, %v1589, 0.0
    %1608 = vadd.xlane.f32.xlu0 %v1607
    %v1609 = vpop.xlane.xlu0 %1608
    %v1610 = vsel %vm270, %v1591, 0.0
    %1611 = vadd.xlane.f32.xlu0 %v1610
    %v1612 = vpop.xlane.xlu0 %1611
    %v1613 = vsel %vm270, %v1593, 0.0
    %1614 = vadd.xlane.f32.xlu0 %v1613
    %v1615 = vpop.xlane.xlu0 %1614
    %v1616 = vsel %vm270, %v1595, 0.0
    %1617 = vadd.xlane.f32.xlu0 %v1616
    %v1618 = vpop.xlane.xlu0 %1617
    %v1619 = vsel %vm270, %v1597, 0.0
    %1620 = vadd.xlane.f32.xlu0 %v1619
    %v1621 = vpop.xlane.xlu0 %1620
    %1622 = vrot.lane.b32.xlu0 %v236, 96
    %v1623 = vpop.permute.xlu0 %1622
    %1624 = vrot.lane.b32.xlu0 %v239, 96
    %v1625 = vpop.permute.xlu0 %1624
    %v1629 = vsel %vm270, %v1583, 0
    %v1632 = vsel %vm270, %v1585, 0
    %1634 = vmatpush.msra.mxu0 0.0
    %1635 = vmatpush.msra.mxu0 0.0
    %1636 = vmatpush.msra.mxu0 0.0
    %1637 = vmatpush.msra.mxu0 0.0
    %1638 = vmatpush.msra.mxu0 0.0
    %1639 = vmatpush.msra.mxu0 0.0
    %1640 = vmatpush.msra.mxu0 0.0
    %1641 = vmatpush.msra.mxu0 0.0
    %1642 = vmatpush.msra.mxu0 0.0
    %1643 = vmatpush.msra.mxu0 0.0
    %1644 = vmatpush.msra.mxu0 0.0
    %1645 = vmatpush.msra.mxu0 0.0
    %1646 = vmatpush.msra.mxu0 0.0
    %1647 = vmatpush.msra.mxu0 0.0
    %1648 = vmatpush.msra.mxu0 %v1625
    %1649 = vmatpush.msra.mxu0 %v1623
    %1650 = vmatmul.f32.gmra.mxu0 %v1629
    %v1651 = vpop.f32.mrf.mxu0
    %v1652 = vadd.f32 0.0, %v1651
    %1653 = vmatmul.f32.gmra.mxu0 %v1632
    %v1654 = vpop.f32.mrf.mxu0
    %v1655 = vadd.f32 0.0, %v1654
    %1656 = vdwg.mxu0
    %1657 = vrot.lane.b32.xlu0 %v242, 96
    %v1658 = vpop.permute.xlu0 %1657
    %1659 = vrot.lane.b32.xlu0 %v245, 96
    %v1660 = vpop.permute.xlu0 %1659
    %v1664 = vsel %vm270, %v1587, 0
    %v1667 = vsel %vm270, %v1589, 0
    %1669 = vmatpush.msra.mxu0 0.0
    %1670 = vmatpush.msra.mxu0 0.0
    %1671 = vmatpush.msra.mxu0 0.0
    %1672 = vmatpush.msra.mxu0 0.0
    %1673 = vmatpush.msra.mxu0 0.0
    %1674 = vmatpush.msra.mxu0 0.0
    %1675 = vmatpush.msra.mxu0 0.0
    %1676 = vmatpush.msra.mxu0 0.0
    %1677 = vmatpush.msra.mxu0 0.0
    %1678 = vmatpush.msra.mxu0 0.0
    %1679 = vmatpush.msra.mxu0 0.0
    %1680 = vmatpush.msra.mxu0 0.0
    %1681 = vmatpush.msra.mxu0 0.0
    %1682 = vmatpush.msra.mxu0 0.0
    %1683 = vmatpush.msra.mxu0 %v1660
    %1684 = vmatpush.msra.mxu0 %v1658
    %1685 = vmatmul.f32.gmra.mxu0 %v1664
    %v1686 = vpop.f32.mrf.mxu0
    %v1687 = vadd.f32 0.0, %v1686
    %1688 = vmatmul.f32.gmra.mxu0 %v1667
    %v1689 = vpop.f32.mrf.mxu0
    %v1690 = vadd.f32 0.0, %v1689
    %1691 = vdwg.mxu0
    %1692 = vrot.lane.b32.xlu0 %v248, 96
    %v1693 = vpop.permute.xlu0 %1692
    %1694 = vrot.lane.b32.xlu0 %v251, 96
    %v1695 = vpop.permute.xlu0 %1694
    %v1699 = vsel %vm270, %v1591, 0
    %v1702 = vsel %vm270, %v1593, 0
    %1704 = vmatpush.msra.mxu0 0.0
    %1705 = vmatpush.msra.mxu0 0.0
    %1706 = vmatpush.msra.mxu0 0.0
    %1707 = vmatpush.msra.mxu0 0.0
    %1708 = vmatpush.msra.mxu0 0.0
    %1709 = vmatpush.msra.mxu0 0.0
    %1710 = vmatpush.msra.mxu0 0.0
    %1711 = vmatpush.msra.mxu0 0.0
    %1712 = vmatpush.msra.mxu0 0.0
    %1713 = vmatpush.msra.mxu0 0.0
    %1714 = vmatpush.msra.mxu0 0.0
    %1715 = vmatpush.msra.mxu0 0.0
    %1716 = vmatpush.msra.mxu0 0.0
    %1717 = vmatpush.msra.mxu0 0.0
    %1718 = vmatpush.msra.mxu0 %v1695
    %1719 = vmatpush.msra.mxu0 %v1693
    %1720 = vmatmul.f32.gmra.mxu0 %v1699
    %v1721 = vpop.f32.mrf.mxu0
    %v1722 = vadd.f32 0.0, %v1721
    %1723 = vmatmul.f32.gmra.mxu0 %v1702
    %v1724 = vpop.f32.mrf.mxu0
    %v1725 = vadd.f32 0.0, %v1724
    %1726 = vdwg.mxu0
    %1727 = vrot.lane.b32.xlu0 %v254, 96
    %v1728 = vpop.permute.xlu0 %1727
    %1729 = vrot.lane.b32.xlu0 %v257, 96
    %v1730 = vpop.permute.xlu0 %1729
    %v1734 = vsel %vm270, %v1595, 0
    %v1737 = vsel %vm270, %v1597, 0
    %1739 = vmatpush.msra.mxu0 0.0
    %1740 = vmatpush.msra.mxu0 0.0
    %1741 = vmatpush.msra.mxu0 0.0
    %1742 = vmatpush.msra.mxu0 0.0
    %1743 = vmatpush.msra.mxu0 0.0
    %1744 = vmatpush.msra.mxu0 0.0
    %1745 = vmatpush.msra.mxu0 0.0
    %1746 = vmatpush.msra.mxu0 0.0
    %1747 = vmatpush.msra.mxu0 0.0
    %1748 = vmatpush.msra.mxu0 0.0
    %1749 = vmatpush.msra.mxu0 0.0
    %1750 = vmatpush.msra.mxu0 0.0
    %1751 = vmatpush.msra.mxu0 0.0
    %1752 = vmatpush.msra.mxu0 0.0
    %1753 = vmatpush.msra.mxu0 %v1730
    %1754 = vmatpush.msra.mxu0 %v1728
    %1755 = vmatmul.f32.gmra.mxu0 %v1734
    %v1756 = vpop.f32.mrf.mxu0
    %v1757 = vadd.f32 0.0, %v1756
    %1758 = vmatmul.f32.gmra.mxu0 %v1737
    %v1759 = vpop.f32.mrf.mxu0
    %v1760 = vadd.f32 0.0, %v1759
    %1761 = vdwg.mxu0
    %v1762 = vrcp.pop %v1600
    %v1763 = vmul.f32 %v1600, %v1762
    %v1764 = vsub.f32 1.0, %v1763
    %v1765 = vmul.f32 %v1762, %v1764
    %v1766 = vadd.f32 %v1762, %v1765
    %vm1767 = vweird.f32 %v1600
    %vm1768 = vweird.f32 %v1762
    %vm1769 = vmor %vm1767, %vm1768
    %v1770 = vsel %vm1769, %v1762, %v1766
    %v1771 = vand.u32 2147483647, %v1600
    %vm1772 = vcmp.eq.f32.partialorder %v1771, 8.507059e+37
    %v1773 = vand.u32 %v1600, 2147483648
    %v1774 = vor.u32 1.1754944e-38, %v1773
    %v1775 = vsel %vm1772, %v1774, %v1770
    %v1776 = vmul.f32 %v1652, %v1775
    %v1777 = vrcp.pop %v1603
    %v1778 = vmul.f32 %v1603, %v1777
    %v1779 = vsub.f32 1.0, %v1778
    %v1780 = vmul.f32 %v1777, %v1779
    %v1781 = vadd.f32 %v1777, %v1780
    %vm1782 = vweird.f32 %v1603
    %vm1783 = vweird.f32 %v1777
    %vm1784 = vmor %vm1782, %vm1783
    %v1785 = vsel %vm1784, %v1777, %v1781
    %v1786 = vand.u32 2147483647, %v1603
    %vm1787 = vcmp.eq.f32.partialorder %v1786, 8.507059e+37
    %v1788 = vand.u32 %v1603, 2147483648
    %v1789 = vor.u32 1.1754944e-38, %v1788
    %v1790 = vsel %vm1787, %v1789, %v1785
    %v1791 = vmul.f32 %v1655, %v1790
    %v1792 = vrcp.pop %v1606
    %v1793 = vmul.f32 %v1606, %v1792
    %v1794 = vsub.f32 1.0, %v1793
    %v1795 = vmul.f32 %v1792, %v1794
    %v1796 = vadd.f32 %v1792, %v1795
    %vm1797 = vweird.f32 %v1606
    %vm1798 = vweird.f32 %v1792
    %vm1799 = vmor %vm1797, %vm1798
    %v1800 = vsel %vm1799, %v1792, %v1796
    %v1801 = vand.u32 2147483647, %v1606
    %vm1802 = vcmp.eq.f32.partialorder %v1801, 8.507059e+37
    %v1803 = vand.u32 %v1606, 2147483648
    %v1804 = vor.u32 1.1754944e-38, %v1803
    %v1805 = vsel %vm1802, %v1804, %v1800
    %v1806 = vmul.f32 %v1687, %v1805
    %v1807 = vrcp.pop %v1609
    %v1808 = vmul.f32 %v1609, %v1807
    %v1809 = vsub.f32 1.0, %v1808
    %v1810 = vmul.f32 %v1807, %v1809
    %v1811 = vadd.f32 %v1807, %v1810
    %vm1812 = vweird.f32 %v1609
    %vm1813 = vweird.f32 %v1807
    %vm1814 = vmor %vm1812, %vm1813
    %v1815 = vsel %vm1814, %v1807, %v1811
    %v1816 = vand.u32 2147483647, %v1609
    %vm1817 = vcmp.eq.f32.partialorder %v1816, 8.507059e+37
    %v1818 = vand.u32 %v1609, 2147483648
    %v1819 = vor.u32 1.1754944e-38, %v1818
    %v1820 = vsel %vm1817, %v1819, %v1815
    %v1821 = vmul.f32 %v1690, %v1820
    %v1822 = vrcp.pop %v1612
    %v1823 = vmul.f32 %v1612, %v1822
    %v1824 = vsub.f32 1.0, %v1823
    %v1825 = vmul.f32 %v1822, %v1824
    %v1826 = vadd.f32 %v1822, %v1825
    %vm1827 = vweird.f32 %v1612
    %vm1828 = vweird.f32 %v1822
    %vm1829 = vmor %vm1827, %vm1828
    %v1830 = vsel %vm1829, %v1822, %v1826
    %v1831 = vand.u32 2147483647, %v1612
    %vm1832 = vcmp.eq.f32.partialorder %v1831, 8.507059e+37
    %v1833 = vand.u32 %v1612, 2147483648
    %v1834 = vor.u32 1.1754944e-38, %v1833
    %v1835 = vsel %vm1832, %v1834, %v1830
    %v1836 = vmul.f32 %v1722, %v1835
    %v1837 = vrcp.pop %v1615
    %v1838 = vmul.f32 %v1615, %v1837
    %v1839 = vsub.f32 1.0, %v1838
    %v1840 = vmul.f32 %v1837, %v1839
    %v1841 = vadd.f32 %v1837, %v1840
    %vm1842 = vweird.f32 %v1615
    %vm1843 = vweird.f32 %v1837
    %vm1844 = vmor %vm1842, %vm1843
    %v1845 = vsel %vm1844, %v1837, %v1841
    %v1846 = vand.u32 2147483647, %v1615
    %vm1847 = vcmp.eq.f32.partialorder %v1846, 8.507059e+37
    %v1848 = vand.u32 %v1615, 2147483648
    %v1849 = vor.u32 1.1754944e-38, %v1848
    %v1850 = vsel %vm1847, %v1849, %v1845
    %v1851 = vmul.f32 %v1725, %v1850
    %v1852 = vrcp.pop %v1618
    %v1853 = vmul.f32 %v1618, %v1852
    %v1854 = vsub.f32 1.0, %v1853
    %v1855 = vmul.f32 %v1852, %v1854
    %v1856 = vadd.f32 %v1852, %v1855
    %vm1857 = vweird.f32 %v1618
    %vm1858 = vweird.f32 %v1852
    %vm1859 = vmor %vm1857, %vm1858
    %v1860 = vsel %vm1859, %v1852, %v1856
    %v1861 = vand.u32 2147483647, %v1618
    %vm1862 = vcmp.eq.f32.partialorder %v1861, 8.507059e+37
    %v1863 = vand.u32 %v1618, 2147483648
    %v1864 = vor.u32 1.1754944e-38, %v1863
    %v1865 = vsel %vm1862, %v1864, %v1860
    %v1866 = vmul.f32 %v1757, %v1865
    %v1867 = vrcp.pop %v1621
    %v1868 = vmul.f32 %v1621, %v1867
    %v1869 = vsub.f32 1.0, %v1868
    %v1870 = vmul.f32 %v1867, %v1869
    %v1871 = vadd.f32 %v1867, %v1870
    %vm1872 = vweird.f32 %v1621
    %vm1873 = vweird.f32 %v1867
    %vm1874 = vmor %vm1872, %vm1873
    %v1875 = vsel %vm1874, %v1867, %v1871
    %v1876 = vand.u32 2147483647, %v1621
    %vm1877 = vcmp.eq.f32.partialorder %v1876, 8.507059e+37
    %v1878 = vand.u32 %v1621, 2147483648
    %v1879 = vor.u32 1.1754944e-38, %v1878
    %v1880 = vsel %vm1877, %v1879, %v1875
    %v1881 = vmul.f32 %v1760, %v1880
    %s1882 = scalar_lea.vmem [#allocation7], 32
    %v1883 = vld [vmem:[%s1882] sm:$0xff]
    %v1884 = vld [vmem:[%s1882 + $0x8] sm:$0xff]
    %v1886 = vsel %vm270, %v1776, 0
    %v1889 = vsel %vm270, %v1791, 0
    %v1892 = vsel %vm270, %v1806, 0
    %v1895 = vsel %vm270, %v1821, 0
    %v1898 = vsel %vm270, %v1836, 0
    %v1901 = vsel %vm270, %v1851, 0
    %v1904 = vsel %vm270, %v1866, 0
    %v1907 = vsel %vm270, %v1881, 0
    %1909 = vmatpush.msra.mxu0 0.0
    %1910 = vmatpush.msra.mxu0 0.0
    %1911 = vmatpush.msra.mxu0 0.0
    %1912 = vmatpush.msra.mxu0 0.0
    %1913 = vmatpush.msra.mxu0 0.0
    %1914 = vmatpush.msra.mxu0 0.0
    %1915 = vmatpush.msra.mxu0 0.0
    %1916 = vmatpush.msra.mxu0 0.0
    %1917 = vmatpush.msra.mxu0 0.0
    %1918 = vmatpush.msra.mxu0 0.0
    %1919 = vmatpush.msra.mxu0 0.0
    %1920 = vmatpush.msra.mxu0 0.0
    %1921 = vmatpush.msra.mxu0 0.0
    %1922 = vmatpush.msra.mxu0 0.0
    %1923 = vmatpush.msra.mxu0 %v1884
    %1924 = vmatpush.msra.mxu0 %v1883
    %1925 = vmatmul.f32.gmra.mxu0 %v1886
    %v1926 = vpop.f32.mrf.mxu0
    %v1927 = vadd.f32 0.0, %v1926
    %1928 = vmatmul.f32.gmra.mxu0 %v1889
    %v1929 = vpop.f32.mrf.mxu0
    %v1930 = vadd.f32 0.0, %v1929
    %1931 = vmatmul.f32.gmra.mxu0 %v1892
    %v1932 = vpop.f32.mrf.mxu0
    %v1933 = vadd.f32 0.0, %v1932
    %1934 = vmatmul.f32.gmra.mxu0 %v1895
    %v1935 = vpop.f32.mrf.mxu0
    %v1936 = vadd.f32 0.0, %v1935
    %1937 = vmatmul.f32.gmra.mxu0 %v1898
    %v1938 = vpop.f32.mrf.mxu0
    %v1939 = vadd.f32 0.0, %v1938
    %1940 = vmatmul.f32.gmra.mxu0 %v1901
    %v1941 = vpop.f32.mrf.mxu0
    %v1942 = vadd.f32 0.0, %v1941
    %1943 = vmatmul.f32.gmra.mxu0 %v1904
    %v1944 = vpop.f32.mrf.mxu0
    %v1945 = vadd.f32 0.0, %v1944
    %1946 = vmatmul.f32.gmra.mxu0 %v1907
    %v1947 = vpop.f32.mrf.mxu0
    %v1948 = vadd.f32 0.0, %v1947
    %1949 = vdwg.mxu0
    %v1950 = vadd.f32 %v1378, %v1927
    %v1951 = vadd.f32 %v1379, %v1930
    %v1952 = vadd.f32 %v1380, %v1933
    %v1953 = vadd.f32 %v1381, %v1936
    %v1954 = vadd.f32 %v1382, %v1939
    %v1955 = vadd.f32 %v1383, %v1942
    %v1956 = vadd.f32 %v1384, %v1945
    %v1957 = vadd.f32 %v1385, %v1948
    %1958 = vrot.lane.b32.xlu0 %v128, 80
    %v1959 = vpop.permute.xlu0 %1958
    %1960 = vrot.lane.b32.xlu0 %v131, 80
    %v1961 = vpop.permute.xlu0 %1960
    %1962 = vrot.lane.b32.xlu0 %v182, 80
    %v1963 = vpop.permute.xlu0 %1962
    %1964 = vrot.lane.b32.xlu0 %v185, 80
    %v1965 = vpop.permute.xlu0 %1964
    %v1966 = vsel %vm270, %v1959, 0
    %v1968 = vsel %vm270, %v1961, 0
    %v1970 = vsel %vm270, %v1963, 0
    %v1972 = vsel %vm270, %v1965, 0
    %1974 = vmatpush.xpose.msra.mxu0 0.0
    %1975 = vmatpush.xpose.msra.mxu0 0.0
    %1976 = vmatpush.xpose.msra.mxu0 0.0
    %1977 = vmatpush.xpose.msra.mxu0 0.0
    %1978 = vmatpush.xpose.msra.mxu0 0.0
    %1979 = vmatpush.xpose.msra.mxu0 0.0
    %1980 = vmatpush.xpose.msra.mxu0 0.0
    %1981 = vmatpush.xpose.msra.mxu0 0.0
    %1982 = vmatpush.xpose.msra.mxu0 0.0
    %1983 = vmatpush.xpose.msra.mxu0 0.0
    %1984 = vmatpush.xpose.msra.mxu0 0.0
    %1985 = vmatpush.xpose.msra.mxu0 0.0
    %1986 = vmatpush.xpose.msra.mxu0 0.0
    %1987 = vmatpush.xpose.msra.mxu0 0.0
    %1988 = vmatpush.xpose.msra.mxu0 %v1972
    %1989 = vmatpush.xpose.msra.mxu0 %v1970
    %1990 = vmatmul.f32.gmra.mxu0 %v1966
    %v1991 = vpop.f32.mrf.mxu0
    %v1992 = vadd.f32 0.0, %v1991
    %1993 = vmatmul.f32.gmra.mxu0 %v1968
    %v1994 = vpop.f32.mrf.mxu0
    %v1995 = vadd.f32 0.0, %v1994
    %1996 = vdwg.mxu0
    %1997 = vrot.lane.b32.xlu0 %v134, 80
    %v1998 = vpop.permute.xlu0 %1997
    %1999 = vrot.lane.b32.xlu0 %v137, 80
    %v2000 = vpop.permute.xlu0 %1999
    %2001 = vrot.lane.b32.xlu0 %v188, 80
    %v2002 = vpop.permute.xlu0 %2001
    %2003 = vrot.lane.b32.xlu0 %v191, 80
    %v2004 = vpop.permute.xlu0 %2003
    %v2005 = vsel %vm270, %v1998, 0
    %v2007 = vsel %vm270, %v2000, 0
    %v2009 = vsel %vm270, %v2002, 0
    %v2011 = vsel %vm270, %v2004, 0
    %2013 = vmatpush.xpose.msra.mxu0 0.0
    %2014 = vmatpush.xpose.msra.mxu0 0.0
    %2015 = vmatpush.xpose.msra.mxu0 0.0
    %2016 = vmatpush.xpose.msra.mxu0 0.0
    %2017 = vmatpush.xpose.msra.mxu0 0.0
    %2018 = vmatpush.xpose.msra.mxu0 0.0
    %2019 = vmatpush.xpose.msra.mxu0 0.0
    %2020 = vmatpush.xpose.msra.mxu0 0.0
    %2021 = vmatpush.xpose.msra.mxu0 0.0
    %2022 = vmatpush.xpose.msra.mxu0 0.0
    %2023 = vmatpush.xpose.msra.mxu0 0.0
    %2024 = vmatpush.xpose.msra.mxu0 0.0
    %2025 = vmatpush.xpose.msra.mxu0 0.0
    %2026 = vmatpush.xpose.msra.mxu0 0.0
    %2027 = vmatpush.xpose.msra.mxu0 %v2011
    %2028 = vmatpush.xpose.msra.mxu0 %v2009
    %2029 = vmatmul.f32.gmra.mxu0 %v2005
    %v2030 = vpop.f32.mrf.mxu0
    %v2031 = vadd.f32 0.0, %v2030
    %2032 = vmatmul.f32.gmra.mxu0 %v2007
    %v2033 = vpop.f32.mrf.mxu0
    %v2034 = vadd.f32 0.0, %v2033
    %2035 = vdwg.mxu0
    %2036 = vrot.lane.b32.xlu0 %v140, 80
    %v2037 = vpop.permute.xlu0 %2036
    %2038 = vrot.lane.b32.xlu0 %v143, 80
    %v2039 = vpop.permute.xlu0 %2038
    %2040 = vrot.lane.b32.xlu0 %v194, 80
    %v2041 = vpop.permute.xlu0 %2040
    %2042 = vrot.lane.b32.xlu0 %v197, 80
    %v2043 = vpop.permute.xlu0 %2042
    %v2044 = vsel %vm270, %v2037, 0
    %v2046 = vsel %vm270, %v2039, 0
    %v2048 = vsel %vm270, %v2041, 0
    %v2050 = vsel %vm270, %v2043, 0
    %2052 = vmatpush.xpose.msra.mxu0 0.0
    %2053 = vmatpush.xpose.msra.mxu0 0.0
    %2054 = vmatpush.xpose.msra.mxu0 0.0
    %2055 = vmatpush.xpose.msra.mxu0 0.0
    %2056 = vmatpush.xpose.msra.mxu0 0.0
    %2057 = vmatpush.xpose.msra.mxu0 0.0
    %2058 = vmatpush.xpose.msra.mxu0 0.0
    %2059 = vmatpush.xpose.msra.mxu0 0.0
    %2060 = vmatpush.xpose.msra.mxu0 0.0
    %2061 = vmatpush.xpose.msra.mxu0 0.0
    %2062 = vmatpush.xpose.msra.mxu0 0.0
    %2063 = vmatpush.xpose.msra.mxu0 0.0
    %2064 = vmatpush.xpose.msra.mxu0 0.0
    %2065 = vmatpush.xpose.msra.mxu0 0.0
    %2066 = vmatpush.xpose.msra.mxu0 %v2050
    %2067 = vmatpush.xpose.msra.mxu0 %v2048
    %2068 = vmatmul.f32.gmra.mxu0 %v2044
    %v2069 = vpop.f32.mrf.mxu0
    %v2070 = vadd.f32 0.0, %v2069
    %2071 = vmatmul.f32.gmra.mxu0 %v2046
    %v2072 = vpop.f32.mrf.mxu0
    %v2073 = vadd.f32 0.0, %v2072
    %2074 = vdwg.mxu0
    %2075 = vrot.lane.b32.xlu0 %v146, 80
    %v2076 = vpop.permute.xlu0 %2075
    %2077 = vrot.lane.b32.xlu0 %v149, 80
    %v2078 = vpop.permute.xlu0 %2077
    %2079 = vrot.lane.b32.xlu0 %v200, 80
    %v2080 = vpop.permute.xlu0 %2079
    %2081 = vrot.lane.b32.xlu0 %v203, 80
    %v2082 = vpop.permute.xlu0 %2081
    %v2083 = vsel %vm270, %v2076, 0
    %v2085 = vsel %vm270, %v2078, 0
    %v2087 = vsel %vm270, %v2080, 0
    %v2089 = vsel %vm270, %v2082, 0
    %2091 = vmatpush.xpose.msra.mxu0 0.0
    %2092 = vmatpush.xpose.msra.mxu0 0.0
    %2093 = vmatpush.xpose.msra.mxu0 0.0
    %2094 = vmatpush.xpose.msra.mxu0 0.0
    %2095 = vmatpush.xpose.msra.mxu0 0.0
    %2096 = vmatpush.xpose.msra.mxu0 0.0
    %2097 = vmatpush.xpose.msra.mxu0 0.0
    %2098 = vmatpush.xpose.msra.mxu0 0.0
    %2099 = vmatpush.xpose.msra.mxu0 0.0
    %2100 = vmatpush.xpose.msra.mxu0 0.0
    %2101 = vmatpush.xpose.msra.mxu0 0.0
    %2102 = vmatpush.xpose.msra.mxu0 0.0
    %2103 = vmatpush.xpose.msra.mxu0 0.0
    %2104 = vmatpush.xpose.msra.mxu0 0.0
    %2105 = vmatpush.xpose.msra.mxu0 %v2089
    %2106 = vmatpush.xpose.msra.mxu0 %v2087
    %2107 = vmatmul.f32.gmra.mxu0 %v2083
    %v2108 = vpop.f32.mrf.mxu0
    %v2109 = vadd.f32 0.0, %v2108
    %2110 = vmatmul.f32.gmra.mxu0 %v2085
    %v2111 = vpop.f32.mrf.mxu0
    %v2112 = vadd.f32 0.0, %v2111
    %2113 = vdwg.mxu0
    %v2114 = vsel %vm413, %v1992, -1e+30
    %v2115 = vsel %vm414, %v1995, -1e+30
    %v2116 = vsel %vm413, %v2031, -1e+30
    %v2117 = vsel %vm414, %v2034, -1e+30
    %v2118 = vsel %vm413, %v2070, -1e+30
    %v2119 = vsel %vm414, %v2073, -1e+30
    %v2120 = vsel %vm413, %v2109, -1e+30
    %v2121 = vsel %vm414, %v2112, -1e+30
    %v2122 = vsel %vm270, %v2114, -inf
    %2123 = vmax.xlane.f32.xlu0 %v2122
    %v2124 = vpop.xlane.xlu0 %2123
    %v2125 = vsel %vm270, %v2115, -inf
    %2126 = vmax.xlane.f32.xlu0 %v2125
    %v2127 = vpop.xlane.xlu0 %2126
    %v2128 = vsel %vm270, %v2116, -inf
    %2129 = vmax.xlane.f32.xlu0 %v2128
    %v2130 = vpop.xlane.xlu0 %2129
    %v2131 = vsel %vm270, %v2117, -inf
    %2132 = vmax.xlane.f32.xlu0 %v2131
    %v2133 = vpop.xlane.xlu0 %2132
    %v2134 = vsel %vm270, %v2118, -inf
    %2135 = vmax.xlane.f32.xlu0 %v2134
    %v2136 = vpop.xlane.xlu0 %2135
    %v2137 = vsel %vm270, %v2119, -inf
    %2138 = vmax.xlane.f32.xlu0 %v2137
    %v2139 = vpop.xlane.xlu0 %2138
    %v2140 = vsel %vm270, %v2120, -inf
    %2141 = vmax.xlane.f32.xlu0 %v2140
    %v2142 = vpop.xlane.xlu0 %2141
    %v2143 = vsel %vm270, %v2121, -inf
    %2144 = vmax.xlane.f32.xlu0 %v2143
    %v2145 = vpop.xlane.xlu0 %2144
    %v2146 = vsub.f32 %v2114, %v2124
    %v2147 = vsub.f32 %v2115, %v2127
    %v2148 = vsub.f32 %v2116, %v2130
    %v2149 = vsub.f32 %v2117, %v2133
    %v2150 = vsub.f32 %v2118, %v2136
    %v2151 = vsub.f32 %v2119, %v2139
    %v2152 = vsub.f32 %v2120, %v2142
    %v2153 = vsub.f32 %v2121, %v2145
    %v2154 = vmul.f32 %v2146, 1.442695
    %v2155 = vpow.pop %v2154
    %v2156 = vmul.f32 %v2147, 1.442695
    %v2157 = vpow.pop %v2156
    %v2158 = vmul.f32 %v2148, 1.442695
    %v2159 = vpow.pop %v2158
    %v2160 = vmul.f32 %v2149, 1.442695
    %v2161 = vpow.pop %v2160
    %v2162 = vmul.f32 %v2150, 1.442695
    %v2163 = vpow.pop %v2162
    %v2164 = vmul.f32 %v2151, 1.442695
    %v2165 = vpow.pop %v2164
    %v2166 = vmul.f32 %v2152, 1.442695
    %v2167 = vpow.pop %v2166
    %v2168 = vmul.f32 %v2153, 1.442695
    %v2169 = vpow.pop %v2168
    %v2170 = vsel %vm270, %v2155, 0.0
    %2171 = vadd.xlane.f32.xlu0 %v2170
    %v2172 = vpop.xlane.xlu0 %2171
    %v2173 = vsel %vm270, %v2157, 0.0
    %2174 = vadd.xlane.f32.xlu0 %v2173
    %v2175 = vpop.xlane.xlu0 %2174
    %v2176 = vsel %vm270, %v2159, 0.0
    %2177 = vadd.xlane.f32.xlu0 %v2176
    %v2178 = vpop.xlane.xlu0 %2177
    %v2179 = vsel %vm270, %v2161, 0.0
    %2180 = vadd.xlane.f32.xlu0 %v2179
    %v2181 = vpop.xlane.xlu0 %2180
    %v2182 = vsel %vm270, %v2163, 0.0
    %2183 = vadd.xlane.f32.xlu0 %v2182
    %v2184 = vpop.xlane.xlu0 %2183
    %v2185 = vsel %vm270, %v2165, 0.0
    %2186 = vadd.xlane.f32.xlu0 %v2185
    %v2187 = vpop.xlane.xlu0 %2186
    %v2188 = vsel %vm270, %v2167, 0.0
    %2189 = vadd.xlane.f32.xlu0 %v2188
    %v2190 = vpop.xlane.xlu0 %2189
    %v2191 = vsel %vm270, %v2169, 0.0
    %2192 = vadd.xlane.f32.xlu0 %v2191
    %v2193 = vpop.xlane.xlu0 %2192
    %2194 = vrot.lane.b32.xlu0 %v236, 80
    %v2195 = vpop.permute.xlu0 %2194
    %2196 = vrot.lane.b32.xlu0 %v239, 80
    %v2197 = vpop.permute.xlu0 %2196
    %v2201 = vsel %vm270, %v2155, 0
    %v2204 = vsel %vm270, %v2157, 0
    %2206 = vmatpush.msra.mxu0 0.0
    %2207 = vmatpush.msra.mxu0 0.0
    %2208 = vmatpush.msra.mxu0 0.0
    %2209 = vmatpush.msra.mxu0 0.0
    %2210 = vmatpush.msra.mxu0 0.0
    %2211 = vmatpush.msra.mxu0 0.0
    %2212 = vmatpush.msra.mxu0 0.0
    %2213 = vmatpush.msra.mxu0 0.0
    %2214 = vmatpush.msra.mxu0 0.0
    %2215 = vmatpush.msra.mxu0 0.0
    %2216 = vmatpush.msra.mxu0 0.0
    %2217 = vmatpush.msra.mxu0 0.0
    %2218 = vmatpush.msra.mxu0 0.0
    %2219 = vmatpush.msra.mxu0 0.0
    %2220 = vmatpush.msra.mxu0 %v2197
    %2221 = vmatpush.msra.mxu0 %v2195
    %2222 = vmatmul.f32.gmra.mxu0 %v2201
    %v2223 = vpop.f32.mrf.mxu0
    %v2224 = vadd.f32 0.0, %v2223
    %2225 = vmatmul.f32.gmra.mxu0 %v2204
    %v2226 = vpop.f32.mrf.mxu0
    %v2227 = vadd.f32 0.0, %v2226
    %2228 = vdwg.mxu0
    %2229 = vrot.lane.b32.xlu0 %v242, 80
    %v2230 = vpop.permute.xlu0 %2229
    %2231 = vrot.lane.b32.xlu0 %v245, 80
    %v2232 = vpop.permute.xlu0 %2231
    %v2236 = vsel %vm270, %v2159, 0
    %v2239 = vsel %vm270, %v2161, 0
    %2241 = vmatpush.msra.mxu0 0.0
    %2242 = vmatpush.msra.mxu0 0.0
    %2243 = vmatpush.msra.mxu0 0.0
    %2244 = vmatpush.msra.mxu0 0.0
    %2245 = vmatpush.msra.mxu0 0.0
    %2246 = vmatpush.msra.mxu0 0.0
    %2247 = vmatpush.msra.mxu0 0.0
    %2248 = vmatpush.msra.mxu0 0.0
    %2249 = vmatpush.msra.mxu0 0.0
    %2250 = vmatpush.msra.mxu0 0.0
    %2251 = vmatpush.msra.mxu0 0.0
    %2252 = vmatpush.msra.mxu0 0.0
    %2253 = vmatpush.msra.mxu0 0.0
    %2254 = vmatpush.msra.mxu0 0.0
    %2255 = vmatpush.msra.mxu0 %v2232
    %2256 = vmatpush.msra.mxu0 %v2230
    %2257 = vmatmul.f32.gmra.mxu0 %v2236
    %v2258 = vpop.f32.mrf.mxu0
    %v2259 = vadd.f32 0.0, %v2258
    %2260 = vmatmul.f32.gmra.mxu0 %v2239
    %v2261 = vpop.f32.mrf.mxu0
    %v2262 = vadd.f32 0.0, %v2261
    %2263 = vdwg.mxu0
    %2264 = vrot.lane.b32.xlu0 %v248, 80
    %v2265 = vpop.permute.xlu0 %2264
    %2266 = vrot.lane.b32.xlu0 %v251, 80
    %v2267 = vpop.permute.xlu0 %2266
    %v2271 = vsel %vm270, %v2163, 0
    %v2274 = vsel %vm270, %v2165, 0
    %2276 = vmatpush.msra.mxu0 0.0
    %2277 = vmatpush.msra.mxu0 0.0
    %2278 = vmatpush.msra.mxu0 0.0
    %2279 = vmatpush.msra.mxu0 0.0
    %2280 = vmatpush.msra.mxu0 0.0
    %2281 = vmatpush.msra.mxu0 0.0
    %2282 = vmatpush.msra.mxu0 0.0
    %2283 = vmatpush.msra.mxu0 0.0
    %2284 = vmatpush.msra.mxu0 0.0
    %2285 = vmatpush.msra.mxu0 0.0
    %2286 = vmatpush.msra.mxu0 0.0
    %2287 = vmatpush.msra.mxu0 0.0
    %2288 = vmatpush.msra.mxu0 0.0
    %2289 = vmatpush.msra.mxu0 0.0
    %2290 = vmatpush.msra.mxu0 %v2267
    %2291 = vmatpush.msra.mxu0 %v2265
    %2292 = vmatmul.f32.gmra.mxu0 %v2271
    %v2293 = vpop.f32.mrf.mxu0
    %v2294 = vadd.f32 0.0, %v2293
    %2295 = vmatmul.f32.gmra.mxu0 %v2274
    %v2296 = vpop.f32.mrf.mxu0
    %v2297 = vadd.f32 0.0, %v2296
    %2298 = vdwg.mxu0
    %2299 = vrot.lane.b32.xlu0 %v254, 80
    %v2300 = vpop.permute.xlu0 %2299
    %2301 = vrot.lane.b32.xlu0 %v257, 80
    %v2302 = vpop.permute.xlu0 %2301
    %v2306 = vsel %vm270, %v2167, 0
    %v2309 = vsel %vm270, %v2169, 0
    %2311 = vmatpush.msra.mxu0 0.0
    %2312 = vmatpush.msra.mxu0 0.0
    %2313 = vmatpush.msra.mxu0 0.0
    %2314 = vmatpush.msra.mxu0 0.0
    %2315 = vmatpush.msra.mxu0 0.0
    %2316 = vmatpush.msra.mxu0 0.0
    %2317 = vmatpush.msra.mxu0 0.0
    %2318 = vmatpush.msra.mxu0 0.0
    %2319 = vmatpush.msra.mxu0 0.0
    %2320 = vmatpush.msra.mxu0 0.0
    %2321 = vmatpush.msra.mxu0 0.0
    %2322 = vmatpush.msra.mxu0 0.0
    %2323 = vmatpush.msra.mxu0 0.0
    %2324 = vmatpush.msra.mxu0 0.0
    %2325 = vmatpush.msra.mxu0 %v2302
    %2326 = vmatpush.msra.mxu0 %v2300
    %2327 = vmatmul.f32.gmra.mxu0 %v2306
    %v2328 = vpop.f32.mrf.mxu0
    %v2329 = vadd.f32 0.0, %v2328
    %2330 = vmatmul.f32.gmra.mxu0 %v2309
    %v2331 = vpop.f32.mrf.mxu0
    %v2332 = vadd.f32 0.0, %v2331
    %2333 = vdwg.mxu0
    %v2334 = vrcp.pop %v2172
    %v2335 = vmul.f32 %v2172, %v2334
    %v2336 = vsub.f32 1.0, %v2335
    %v2337 = vmul.f32 %v2334, %v2336
    %v2338 = vadd.f32 %v2334, %v2337
    %vm2339 = vweird.f32 %v2172
    %vm2340 = vweird.f32 %v2334
    %vm2341 = vmor %vm2339, %vm2340
    %v2342 = vsel %vm2341, %v2334, %v2338
    %v2343 = vand.u32 2147483647, %v2172
    %vm2344 = vcmp.eq.f32.partialorder %v2343, 8.507059e+37
    %v2345 = vand.u32 %v2172, 2147483648
    %v2346 = vor.u32 1.1754944e-38, %v2345
    %v2347 = vsel %vm2344, %v2346, %v2342
    %v2348 = vmul.f32 %v2224, %v2347
    %v2349 = vrcp.pop %v2175
    %v2350 = vmul.f32 %v2175, %v2349
    %v2351 = vsub.f32 1.0, %v2350
    %v2352 = vmul.f32 %v2349, %v2351
    %v2353 = vadd.f32 %v2349, %v2352
    %vm2354 = vweird.f32 %v2175
    %vm2355 = vweird.f32 %v2349
    %vm2356 = vmor %vm2354, %vm2355
    %v2357 = vsel %vm2356, %v2349, %v2353
    %v2358 = vand.u32 2147483647, %v2175
    %vm2359 = vcmp.eq.f32.partialorder %v2358, 8.507059e+37
    %v2360 = vand.u32 %v2175, 2147483648
    %v2361 = vor.u32 1.1754944e-38, %v2360
    %v2362 = vsel %vm2359, %v2361, %v2357
    %v2363 = vmul.f32 %v2227, %v2362
    %v2364 = vrcp.pop %v2178
    %v2365 = vmul.f32 %v2178, %v2364
    %v2366 = vsub.f32 1.0, %v2365
    %v2367 = vmul.f32 %v2364, %v2366
    %v2368 = vadd.f32 %v2364, %v2367
    %vm2369 = vweird.f32 %v2178
    %vm2370 = vweird.f32 %v2364
    %vm2371 = vmor %vm2369, %vm2370
    %v2372 = vsel %vm2371, %v2364, %v2368
    %v2373 = vand.u32 2147483647, %v2178
    %vm2374 = vcmp.eq.f32.partialorder %v2373, 8.507059e+37
    %v2375 = vand.u32 %v2178, 2147483648
    %v2376 = vor.u32 1.1754944e-38, %v2375
    %v2377 = vsel %vm2374, %v2376, %v2372
    %v2378 = vmul.f32 %v2259, %v2377
    %v2379 = vrcp.pop %v2181
    %v2380 = vmul.f32 %v2181, %v2379
    %v2381 = vsub.f32 1.0, %v2380
    %v2382 = vmul.f32 %v2379, %v2381
    %v2383 = vadd.f32 %v2379, %v2382
    %vm2384 = vweird.f32 %v2181
    %vm2385 = vweird.f32 %v2379
    %vm2386 = vmor %vm2384, %vm2385
    %v2387 = vsel %vm2386, %v2379, %v2383
    %v2388 = vand.u32 2147483647, %v2181
    %vm2389 = vcmp.eq.f32.partialorder %v2388, 8.507059e+37
    %v2390 = vand.u32 %v2181, 2147483648
    %v2391 = vor.u32 1.1754944e-38, %v2390
    %v2392 = vsel %vm2389, %v2391, %v2387
    %v2393 = vmul.f32 %v2262, %v2392
    %v2394 = vrcp.pop %v2184
    %v2395 = vmul.f32 %v2184, %v2394
    %v2396 = vsub.f32 1.0, %v2395
    %v2397 = vmul.f32 %v2394, %v2396
    %v2398 = vadd.f32 %v2394, %v2397
    %vm2399 = vweird.f32 %v2184
    %vm2400 = vweird.f32 %v2394
    %vm2401 = vmor %vm2399, %vm2400
    %v2402 = vsel %vm2401, %v2394, %v2398
    %v2403 = vand.u32 2147483647, %v2184
    %vm2404 = vcmp.eq.f32.partialorder %v2403, 8.507059e+37
    %v2405 = vand.u32 %v2184, 2147483648
    %v2406 = vor.u32 1.1754944e-38, %v2405
    %v2407 = vsel %vm2404, %v2406, %v2402
    %v2408 = vmul.f32 %v2294, %v2407
    %v2409 = vrcp.pop %v2187
    %v2410 = vmul.f32 %v2187, %v2409
    %v2411 = vsub.f32 1.0, %v2410
    %v2412 = vmul.f32 %v2409, %v2411
    %v2413 = vadd.f32 %v2409, %v2412
    %vm2414 = vweird.f32 %v2187
    %vm2415 = vweird.f32 %v2409
    %vm2416 = vmor %vm2414, %vm2415
    %v2417 = vsel %vm2416, %v2409, %v2413
    %v2418 = vand.u32 2147483647, %v2187
    %vm2419 = vcmp.eq.f32.partialorder %v2418, 8.507059e+37
    %v2420 = vand.u32 %v2187, 2147483648
    %v2421 = vor.u32 1.1754944e-38, %v2420
    %v2422 = vsel %vm2419, %v2421, %v2417
    %v2423 = vmul.f32 %v2297, %v2422
    %v2424 = vrcp.pop %v2190
    %v2425 = vmul.f32 %v2190, %v2424
    %v2426 = vsub.f32 1.0, %v2425
    %v2427 = vmul.f32 %v2424, %v2426
    %v2428 = vadd.f32 %v2424, %v2427
    %vm2429 = vweird.f32 %v2190
    %vm2430 = vweird.f32 %v2424
    %vm2431 = vmor %vm2429, %vm2430
    %v2432 = vsel %vm2431, %v2424, %v2428
    %v2433 = vand.u32 2147483647, %v2190
    %vm2434 = vcmp.eq.f32.partialorder %v2433, 8.507059e+37
    %v2435 = vand.u32 %v2190, 2147483648
    %v2436 = vor.u32 1.1754944e-38, %v2435
    %v2437 = vsel %vm2434, %v2436, %v2432
    %v2438 = vmul.f32 %v2329, %v2437
    %v2439 = vrcp.pop %v2193
    %v2440 = vmul.f32 %v2193, %v2439
    %v2441 = vsub.f32 1.0, %v2440
    %v2442 = vmul.f32 %v2439, %v2441
    %v2443 = vadd.f32 %v2439, %v2442
    %vm2444 = vweird.f32 %v2193
    %vm2445 = vweird.f32 %v2439
    %vm2446 = vmor %vm2444, %vm2445
    %v2447 = vsel %vm2446, %v2439, %v2443
    %v2448 = vand.u32 2147483647, %v2193
    %vm2449 = vcmp.eq.f32.partialorder %v2448, 8.507059e+37
    %v2450 = vand.u32 %v2193, 2147483648
    %v2451 = vor.u32 1.1754944e-38, %v2450
    %v2452 = vsel %vm2449, %v2451, %v2447
    %v2453 = vmul.f32 %v2332, %v2452
    %s2454 = scalar_lea.vmem [#allocation7], 48
    %v2455 = vld [vmem:[%s2454] sm:$0xff]
    %v2456 = vld [vmem:[%s2454 + $0x8] sm:$0xff]
    %v2458 = vsel %vm270, %v2348, 0
    %v2461 = vsel %vm270, %v2363, 0
    %v2464 = vsel %vm270, %v2378, 0
    %v2467 = vsel %vm270, %v2393, 0
    %v2470 = vsel %vm270, %v2408, 0
    %v2473 = vsel %vm270, %v2423, 0
    %v2476 = vsel %vm270, %v2438, 0
    %v2479 = vsel %vm270, %v2453, 0
    %2481 = vmatpush.msra.mxu0 0.0
    %2482 = vmatpush.msra.mxu0 0.0
    %2483 = vmatpush.msra.mxu0 0.0
    %2484 = vmatpush.msra.mxu0 0.0
    %2485 = vmatpush.msra.mxu0 0.0
    %2486 = vmatpush.msra.mxu0 0.0
    %2487 = vmatpush.msra.mxu0 0.0
    %2488 = vmatpush.msra.mxu0 0.0
    %2489 = vmatpush.msra.mxu0 0.0
    %2490 = vmatpush.msra.mxu0 0.0
    %2491 = vmatpush.msra.mxu0 0.0
    %2492 = vmatpush.msra.mxu0 0.0
    %2493 = vmatpush.msra.mxu0 0.0
    %2494 = vmatpush.msra.mxu0 0.0
    %2495 = vmatpush.msra.mxu0 %v2456
    %2496 = vmatpush.msra.mxu0 %v2455
    %2497 = vmatmul.f32.gmra.mxu0 %v2458
    %v2498 = vpop.f32.mrf.mxu0
    %v2499 = vadd.f32 0.0, %v2498
    %2500 = vmatmul.f32.gmra.mxu0 %v2461
    %v2501 = vpop.f32.mrf.mxu0
    %v2502 = vadd.f32 0.0, %v2501
    %2503 = vmatmul.f32.gmra.mxu0 %v2464
    %v2504 = vpop.f32.mrf.mxu0
    %v2505 = vadd.f32 0.0, %v2504
    %2506 = vmatmul.f32.gmra.mxu0 %v2467
    %v2507 = vpop.f32.mrf.mxu0
    %v2508 = vadd.f32 0.0, %v2507
    %2509 = vmatmul.f32.gmra.mxu0 %v2470
    %v2510 = vpop.f32.mrf.mxu0
    %v2511 = vadd.f32 0.0, %v2510
    %2512 = vmatmul.f32.gmra.mxu0 %v2473
    %v2513 = vpop.f32.mrf.mxu0
    %v2514 = vadd.f32 0.0, %v2513
    %2515 = vmatmul.f32.gmra.mxu0 %v2476
    %v2516 = vpop.f32.mrf.mxu0
    %v2517 = vadd.f32 0.0, %v2516
    %2518 = vmatmul.f32.gmra.mxu0 %v2479
    %v2519 = vpop.f32.mrf.mxu0
    %v2520 = vadd.f32 0.0, %v2519
    %2521 = vdwg.mxu0
    %v2522 = vadd.f32 %v1950, %v2499
    %v2523 = vadd.f32 %v1951, %v2502
    %v2524 = vadd.f32 %v1952, %v2505
    %v2525 = vadd.f32 %v1953, %v2508
    %v2526 = vadd.f32 %v1954, %v2511
    %v2527 = vadd.f32 %v1955, %v2514
    %v2528 = vadd.f32 %v1956, %v2517
    %v2529 = vadd.f32 %v1957, %v2520
    %2530 = vrot.lane.b32.xlu0 %v128, 64
    %v2531 = vpop.permute.xlu0 %2530
    %2532 = vrot.lane.b32.xlu0 %v131, 64
    %v2533 = vpop.permute.xlu0 %2532
    %2534 = vrot.lane.b32.xlu0 %v182, 64
    %v2535 = vpop.permute.xlu0 %2534
    %2536 = vrot.lane.b32.xlu0 %v185, 64
    %v2537 = vpop.permute.xlu0 %2536
    %v2538 = vsel %vm270, %v2531, 0
    %v2540 = vsel %vm270, %v2533, 0
    %v2542 = vsel %vm270, %v2535, 0
    %v2544 = vsel %vm270, %v2537, 0
    %2546 = vmatpush.xpose.msra.mxu0 0.0
    %2547 = vmatpush.xpose.msra.mxu0 0.0
    %2548 = vmatpush.xpose.msra.mxu0 0.0
    %2549 = vmatpush.xpose.msra.mxu0 0.0
    %2550 = vmatpush.xpose.msra.mxu0 0.0
    %2551 = vmatpush.xpose.msra.mxu0 0.0
    %2552 = vmatpush.xpose.msra.mxu0 0.0
    %2553 = vmatpush.xpose.msra.mxu0 0.0
    %2554 = vmatpush.xpose.msra.mxu0 0.0
    %2555 = vmatpush.xpose.msra.mxu0 0.0
    %2556 = vmatpush.xpose.msra.mxu0 0.0
    %2557 = vmatpush.xpose.msra.mxu0 0.0
    %2558 = vmatpush.xpose.msra.mxu0 0.0
    %2559 = vmatpush.xpose.msra.mxu0 0.0
    %2560 = vmatpush.xpose.msra.mxu0 %v2544
    %2561 = vmatpush.xpose.msra.mxu0 %v2542
    %2562 = vmatmul.f32.gmra.mxu0 %v2538
    %v2563 = vpop.f32.mrf.mxu0
    %v2564 = vadd.f32 0.0, %v2563
    %2565 = vmatmul.f32.gmra.mxu0 %v2540
    %v2566 = vpop.f32.mrf.mxu0
    %v2567 = vadd.f32 0.0, %v2566
    %2568 = vdwg.mxu0
    %2569 = vrot.lane.b32.xlu0 %v134, 64
    %v2570 = vpop.permute.xlu0 %2569
    %2571 = vrot.lane.b32.xlu0 %v137, 64
    %v2572 = vpop.permute.xlu0 %2571
    %2573 = vrot.lane.b32.xlu0 %v188, 64
    %v2574 = vpop.permute.xlu0 %2573
    %2575 = vrot.lane.b32.xlu0 %v191, 64
    %v2576 = vpop.permute.xlu0 %2575
    %v2577 = vsel %vm270, %v2570, 0
    %v2579 = vsel %vm270, %v2572, 0
    %v2581 = vsel %vm270, %v2574, 0
    %v2583 = vsel %vm270, %v2576, 0
    %2585 = vmatpush.xpose.msra.mxu0 0.0
    %2586 = vmatpush.xpose.msra.mxu0 0.0
    %2587 = vmatpush.xpose.msra.mxu0 0.0
    %2588 = vmatpush.xpose.msra.mxu0 0.0
    %2589 = vmatpush.xpose.msra.mxu0 0.0
    %2590 = vmatpush.xpose.msra.mxu0 0.0
    %2591 = vmatpush.xpose.msra.mxu0 0.0
    %2592 = vmatpush.xpose.msra.mxu0 0.0
    %2593 = vmatpush.xpose.msra.mxu0 0.0
    %2594 = vmatpush.xpose.msra.mxu0 0.0
    %2595 = vmatpush.xpose.msra.mxu0 0.0
    %2596 = vmatpush.xpose.msra.mxu0 0.0
    %2597 = vmatpush.xpose.msra.mxu0 0.0
    %2598 = vmatpush.xpose.msra.mxu0 0.0
    %2599 = vmatpush.xpose.msra.mxu0 %v2583
    %2600 = vmatpush.xpose.msra.mxu0 %v2581
    %2601 = vmatmul.f32.gmra.mxu0 %v2577
    %v2602 = vpop.f32.mrf.mxu0
    %v2603 = vadd.f32 0.0, %v2602
    %2604 = vmatmul.f32.gmra.mxu0 %v2579
    %v2605 = vpop.f32.mrf.mxu0
    %v2606 = vadd.f32 0.0, %v2605
    %2607 = vdwg.mxu0
    %2608 = vrot.lane.b32.xlu0 %v140, 64
    %v2609 = vpop.permute.xlu0 %2608
    %2610 = vrot.lane.b32.xlu0 %v143, 64
    %v2611 = vpop.permute.xlu0 %2610
    %2612 = vrot.lane.b32.xlu0 %v194, 64
    %v2613 = vpop.permute.xlu0 %2612
    %2614 = vrot.lane.b32.xlu0 %v197, 64
    %v2615 = vpop.permute.xlu0 %2614
    %v2616 = vsel %vm270, %v2609, 0
    %v2618 = vsel %vm270, %v2611, 0
    %v2620 = vsel %vm270, %v2613, 0
    %v2622 = vsel %vm270, %v2615, 0
    %2624 = vmatpush.xpose.msra.mxu0 0.0
    %2625 = vmatpush.xpose.msra.mxu0 0.0
    %2626 = vmatpush.xpose.msra.mxu0 0.0
    %2627 = vmatpush.xpose.msra.mxu0 0.0
    %2628 = vmatpush.xpose.msra.mxu0 0.0
    %2629 = vmatpush.xpose.msra.mxu0 0.0
    %2630 = vmatpush.xpose.msra.mxu0 0.0
    %2631 = vmatpush.xpose.msra.mxu0 0.0
    %2632 = vmatpush.xpose.msra.mxu0 0.0
    %2633 = vmatpush.xpose.msra.mxu0 0.0
    %2634 = vmatpush.xpose.msra.mxu0 0.0
    %2635 = vmatpush.xpose.msra.mxu0 0.0
    %2636 = vmatpush.xpose.msra.mxu0 0.0
    %2637 = vmatpush.xpose.msra.mxu0 0.0
    %2638 = vmatpush.xpose.msra.mxu0 %v2622
    %2639 = vmatpush.xpose.msra.mxu0 %v2620
    %2640 = vmatmul.f32.gmra.mxu0 %v2616
    %v2641 = vpop.f32.mrf.mxu0
    %v2642 = vadd.f32 0.0, %v2641
    %2643 = vmatmul.f32.gmra.mxu0 %v2618
    %v2644 = vpop.f32.mrf.mxu0
    %v2645 = vadd.f32 0.0, %v2644
    %2646 = vdwg.mxu0
    %2647 = vrot.lane.b32.xlu0 %v146, 64
    %v2648 = vpop.permute.xlu0 %2647
    %2649 = vrot.lane.b32.xlu0 %v149, 64
    %v2650 = vpop.permute.xlu0 %2649
    %2651 = vrot.lane.b32.xlu0 %v200, 64
    %v2652 = vpop.permute.xlu0 %2651
    %2653 = vrot.lane.b32.xlu0 %v203, 64
    %v2654 = vpop.permute.xlu0 %2653
    %v2655 = vsel %vm270, %v2648, 0
    %v2657 = vsel %vm270, %v2650, 0
    %v2659 = vsel %vm270, %v2652, 0
    %v2661 = vsel %vm270, %v2654, 0
    %2663 = vmatpush.xpose.msra.mxu0 0.0
    %2664 = vmatpush.xpose.msra.mxu0 0.0
    %2665 = vmatpush.xpose.msra.mxu0 0.0
    %2666 = vmatpush.xpose.msra.mxu0 0.0
    %2667 = vmatpush.xpose.msra.mxu0 0.0
    %2668 = vmatpush.xpose.msra.mxu0 0.0
    %2669 = vmatpush.xpose.msra.mxu0 0.0
    %2670 = vmatpush.xpose.msra.mxu0 0.0
    %2671 = vmatpush.xpose.msra.mxu0 0.0
    %2672 = vmatpush.xpose.msra.mxu0 0.0
    %2673 = vmatpush.xpose.msra.mxu0 0.0
    %2674 = vmatpush.xpose.msra.mxu0 0.0
    %2675 = vmatpush.xpose.msra.mxu0 0.0
    %2676 = vmatpush.xpose.msra.mxu0 0.0
    %2677 = vmatpush.xpose.msra.mxu0 %v2661
    %2678 = vmatpush.xpose.msra.mxu0 %v2659
    %2679 = vmatmul.f32.gmra.mxu0 %v2655
    %v2680 = vpop.f32.mrf.mxu0
    %v2681 = vadd.f32 0.0, %v2680
    %2682 = vmatmul.f32.gmra.mxu0 %v2657
    %v2683 = vpop.f32.mrf.mxu0
    %v2684 = vadd.f32 0.0, %v2683
    %2685 = vdwg.mxu0
    %v2686 = vsel %vm413, %v2564, -1e+30
    %v2687 = vsel %vm414, %v2567, -1e+30
    %v2688 = vsel %vm413, %v2603, -1e+30
    %v2689 = vsel %vm414, %v2606, -1e+30
    %v2690 = vsel %vm413, %v2642, -1e+30
    %v2691 = vsel %vm414, %v2645, -1e+30
    %v2692 = vsel %vm413, %v2681, -1e+30
    %v2693 = vsel %vm414, %v2684, -1e+30
    %v2694 = vsel %vm270, %v2686, -inf
    %2695 = vmax.xlane.f32.xlu0 %v2694
    %v2696 = vpop.xlane.xlu0 %2695
    %v2697 = vsel %vm270, %v2687, -inf
    %2698 = vmax.xlane.f32.xlu0 %v2697
    %v2699 = vpop.xlane.xlu0 %2698
    %v2700 = vsel %vm270, %v2688, -inf
    %2701 = vmax.xlane.f32.xlu0 %v2700
    %v2702 = vpop.xlane.xlu0 %2701
    %v2703 = vsel %vm270, %v2689, -inf
    %2704 = vmax.xlane.f32.xlu0 %v2703
    %v2705 = vpop.xlane.xlu0 %2704
    %v2706 = vsel %vm270, %v2690, -inf
    %2707 = vmax.xlane.f32.xlu0 %v2706
    %v2708 = vpop.xlane.xlu0 %2707
    %v2709 = vsel %vm270, %v2691, -inf
    %2710 = vmax.xlane.f32.xlu0 %v2709
    %v2711 = vpop.xlane.xlu0 %2710
    %v2712 = vsel %vm270, %v2692, -inf
    %2713 = vmax.xlane.f32.xlu0 %v2712
    %v2714 = vpop.xlane.xlu0 %2713
    %v2715 = vsel %vm270, %v2693, -inf
    %2716 = vmax.xlane.f32.xlu0 %v2715
    %v2717 = vpop.xlane.xlu0 %2716
    %v2718 = vsub.f32 %v2686, %v2696
    %v2719 = vsub.f32 %v2687, %v2699
    %v2720 = vsub.f32 %v2688, %v2702
    %v2721 = vsub.f32 %v2689, %v2705
    %v2722 = vsub.f32 %v2690, %v2708
    %v2723 = vsub.f32 %v2691, %v2711
    %v2724 = vsub.f32 %v2692, %v2714
    %v2725 = vsub.f32 %v2693, %v2717
    %v2726 = vmul.f32 %v2718, 1.442695
    %v2727 = vpow.pop %v2726
    %v2728 = vmul.f32 %v2719, 1.442695
    %v2729 = vpow.pop %v2728
    %v2730 = vmul.f32 %v2720, 1.442695
    %v2731 = vpow.pop %v2730
    %v2732 = vmul.f32 %v2721, 1.442695
    %v2733 = vpow.pop %v2732
    %v2734 = vmul.f32 %v2722, 1.442695
    %v2735 = vpow.pop %v2734
    %v2736 = vmul.f32 %v2723, 1.442695
    %v2737 = vpow.pop %v2736
    %v2738 = vmul.f32 %v2724, 1.442695
    %v2739 = vpow.pop %v2738
    %v2740 = vmul.f32 %v2725, 1.442695
    %v2741 = vpow.pop %v2740
    %v2742 = vsel %vm270, %v2727, 0.0
    %2743 = vadd.xlane.f32.xlu0 %v2742
    %v2744 = vpop.xlane.xlu0 %2743
    %v2745 = vsel %vm270, %v2729, 0.0
    %2746 = vadd.xlane.f32.xlu0 %v2745
    %v2747 = vpop.xlane.xlu0 %2746
    %v2748 = vsel %vm270, %v2731, 0.0
    %2749 = vadd.xlane.f32.xlu0 %v2748
    %v2750 = vpop.xlane.xlu0 %2749
    %v2751 = vsel %vm270, %v2733, 0.0
    %2752 = vadd.xlane.f32.xlu0 %v2751
    %v2753 = vpop.xlane.xlu0 %2752
    %v2754 = vsel %vm270, %v2735, 0.0
    %2755 = vadd.xlane.f32.xlu0 %v2754
    %v2756 = vpop.xlane.xlu0 %2755
    %v2757 = vsel %vm270, %v2737, 0.0
    %2758 = vadd.xlane.f32.xlu0 %v2757
    %v2759 = vpop.xlane.xlu0 %2758
    %v2760 = vsel %vm270, %v2739, 0.0
    %2761 = vadd.xlane.f32.xlu0 %v2760
    %v2762 = vpop.xlane.xlu0 %2761
    %v2763 = vsel %vm270, %v2741, 0.0
    %2764 = vadd.xlane.f32.xlu0 %v2763
    %v2765 = vpop.xlane.xlu0 %2764
    %2766 = vrot.lane.b32.xlu0 %v236, 64
    %v2767 = vpop.permute.xlu0 %2766
    %2768 = vrot.lane.b32.xlu0 %v239, 64
    %v2769 = vpop.permute.xlu0 %2768
    %v2773 = vsel %vm270, %v2727, 0
    %v2776 = vsel %vm270, %v2729, 0
    %2778 = vmatpush.msra.mxu0 0.0
    %2779 = vmatpush.msra.mxu0 0.0
    %2780 = vmatpush.msra.mxu0 0.0
    %2781 = vmatpush.msra.mxu0 0.0
    %2782 = vmatpush.msra.mxu0 0.0
    %2783 = vmatpush.msra.mxu0 0.0
    %2784 = vmatpush.msra.mxu0 0.0
    %2785 = vmatpush.msra.mxu0 0.0
    %2786 = vmatpush.msra.mxu0 0.0
    %2787 = vmatpush.msra.mxu0 0.0
    %2788 = vmatpush.msra.mxu0 0.0
    %2789 = vmatpush.msra.mxu0 0.0
    %2790 = vmatpush.msra.mxu0 0.0
    %2791 = vmatpush.msra.mxu0 0.0
    %2792 = vmatpush.msra.mxu0 %v2769
    %2793 = vmatpush.msra.mxu0 %v2767
    %2794 = vmatmul.f32.gmra.mxu0 %v2773
    %v2795 = vpop.f32.mrf.mxu0
    %v2796 = vadd.f32 0.0, %v2795
    %2797 = vmatmul.f32.gmra.mxu0 %v2776
    %v2798 = vpop.f32.mrf.mxu0
    %v2799 = vadd.f32 0.0, %v2798
    %2800 = vdwg.mxu0
    %2801 = vrot.lane.b32.xlu0 %v242, 64
    %v2802 = vpop.permute.xlu0 %2801
    %2803 = vrot.lane.b32.xlu0 %v245, 64
    %v2804 = vpop.permute.xlu0 %2803
    %v2808 = vsel %vm270, %v2731, 0
    %v2811 = vsel %vm270, %v2733, 0
    %2813 = vmatpush.msra.mxu0 0.0
    %2814 = vmatpush.msra.mxu0 0.0
    %2815 = vmatpush.msra.mxu0 0.0
    %2816 = vmatpush.msra.mxu0 0.0
    %2817 = vmatpush.msra.mxu0 0.0
    %2818 = vmatpush.msra.mxu0 0.0
    %2819 = vmatpush.msra.mxu0 0.0
    %2820 = vmatpush.msra.mxu0 0.0
    %2821 = vmatpush.msra.mxu0 0.0
    %2822 = vmatpush.msra.mxu0 0.0
    %2823 = vmatpush.msra.mxu0 0.0
    %2824 = vmatpush.msra.mxu0 0.0
    %2825 = vmatpush.msra.mxu0 0.0
    %2826 = vmatpush.msra.mxu0 0.0
    %2827 = vmatpush.msra.mxu0 %v2804
    %2828 = vmatpush.msra.mxu0 %v2802
    %2829 = vmatmul.f32.gmra.mxu0 %v2808
    %v2830 = vpop.f32.mrf.mxu0
    %v2831 = vadd.f32 0.0, %v2830
    %2832 = vmatmul.f32.gmra.mxu0 %v2811
    %v2833 = vpop.f32.mrf.mxu0
    %v2834 = vadd.f32 0.0, %v2833
    %2835 = vdwg.mxu0
    %2836 = vrot.lane.b32.xlu0 %v248, 64
    %v2837 = vpop.permute.xlu0 %2836
    %2838 = vrot.lane.b32.xlu0 %v251, 64
    %v2839 = vpop.permute.xlu0 %2838
    %v2843 = vsel %vm270, %v2735, 0
    %v2846 = vsel %vm270, %v2737, 0
    %2848 = vmatpush.msra.mxu0 0.0
    %2849 = vmatpush.msra.mxu0 0.0
    %2850 = vmatpush.msra.mxu0 0.0
    %2851 = vmatpush.msra.mxu0 0.0
    %2852 = vmatpush.msra.mxu0 0.0
    %2853 = vmatpush.msra.mxu0 0.0
    %2854 = vmatpush.msra.mxu0 0.0
    %2855 = vmatpush.msra.mxu0 0.0
    %2856 = vmatpush.msra.mxu0 0.0
    %2857 = vmatpush.msra.mxu0 0.0
    %2858 = vmatpush.msra.mxu0 0.0
    %2859 = vmatpush.msra.mxu0 0.0
    %2860 = vmatpush.msra.mxu0 0.0
    %2861 = vmatpush.msra.mxu0 0.0
    %2862 = vmatpush.msra.mxu0 %v2839
    %2863 = vmatpush.msra.mxu0 %v2837
    %2864 = vmatmul.f32.gmra.mxu0 %v2843
    %v2865 = vpop.f32.mrf.mxu0
    %v2866 = vadd.f32 0.0, %v2865
    %2867 = vmatmul.f32.gmra.mxu0 %v2846
    %v2868 = vpop.f32.mrf.mxu0
    %v2869 = vadd.f32 0.0, %v2868
    %2870 = vdwg.mxu0
    %2871 = vrot.lane.b32.xlu0 %v254, 64
    %v2872 = vpop.permute.xlu0 %2871
    %2873 = vrot.lane.b32.xlu0 %v257, 64
    %v2874 = vpop.permute.xlu0 %2873
    %v2878 = vsel %vm270, %v2739, 0
    %v2881 = vsel %vm270, %v2741, 0
    %2883 = vmatpush.msra.mxu0 0.0
    %2884 = vmatpush.msra.mxu0 0.0
    %2885 = vmatpush.msra.mxu0 0.0
    %2886 = vmatpush.msra.mxu0 0.0
    %2887 = vmatpush.msra.mxu0 0.0
    %2888 = vmatpush.msra.mxu0 0.0
    %2889 = vmatpush.msra.mxu0 0.0
    %2890 = vmatpush.msra.mxu0 0.0
    %2891 = vmatpush.msra.mxu0 0.0
    %2892 = vmatpush.msra.mxu0 0.0
    %2893 = vmatpush.msra.mxu0 0.0
    %2894 = vmatpush.msra.mxu0 0.0
    %2895 = vmatpush.msra.mxu0 0.0
    %2896 = vmatpush.msra.mxu0 0.0
    %2897 = vmatpush.msra.mxu0 %v2874
    %2898 = vmatpush.msra.mxu0 %v2872
    %2899 = vmatmul.f32.gmra.mxu0 %v2878
    %v2900 = vpop.f32.mrf.mxu0
    %v2901 = vadd.f32 0.0, %v2900
    %2902 = vmatmul.f32.gmra.mxu0 %v2881
    %v2903 = vpop.f32.mrf.mxu0
    %v2904 = vadd.f32 0.0, %v2903
    %2905 = vdwg.mxu0
    %v2906 = vrcp.pop %v2744
    %v2907 = vmul.f32 %v2744, %v2906
    %v2908 = vsub.f32 1.0, %v2907
    %v2909 = vmul.f32 %v2906, %v2908
    %v2910 = vadd.f32 %v2906, %v2909
    %vm2911 = vweird.f32 %v2744
    %vm2912 = vweird.f32 %v2906
    %vm2913 = vmor %vm2911, %vm2912
    %v2914 = vsel %vm2913, %v2906, %v2910
    %v2915 = vand.u32 2147483647, %v2744
    %vm2916 = vcmp.eq.f32.partialorder %v2915, 8.507059e+37
    %v2917 = vand.u32 %v2744, 2147483648
    %v2918 = vor.u32 1.1754944e-38, %v2917
    %v2919 = vsel %vm2916, %v2918, %v2914
    %v2920 = vmul.f32 %v2796, %v2919
    %v2921 = vrcp.pop %v2747
    %v2922 = vmul.f32 %v2747, %v2921
    %v2923 = vsub.f32 1.0, %v2922
    %v2924 = vmul.f32 %v2921, %v2923
    %v2925 = vadd.f32 %v2921, %v2924
    %vm2926 = vweird.f32 %v2747
    %vm2927 = vweird.f32 %v2921
    %vm2928 = vmor %vm2926, %vm2927
    %v2929 = vsel %vm2928, %v2921, %v2925
    %v2930 = vand.u32 2147483647, %v2747
    %vm2931 = vcmp.eq.f32.partialorder %v2930, 8.507059e+37
    %v2932 = vand.u32 %v2747, 2147483648
    %v2933 = vor.u32 1.1754944e-38, %v2932
    %v2934 = vsel %vm2931, %v2933, %v2929
    %v2935 = vmul.f32 %v2799, %v2934
    %v2936 = vrcp.pop %v2750
    %v2937 = vmul.f32 %v2750, %v2936
    %v2938 = vsub.f32 1.0, %v2937
    %v2939 = vmul.f32 %v2936, %v2938
    %v2940 = vadd.f32 %v2936, %v2939
    %vm2941 = vweird.f32 %v2750
    %vm2942 = vweird.f32 %v2936
    %vm2943 = vmor %vm2941, %vm2942
    %v2944 = vsel %vm2943, %v2936, %v2940
    %v2945 = vand.u32 2147483647, %v2750
    %vm2946 = vcmp.eq.f32.partialorder %v2945, 8.507059e+37
    %v2947 = vand.u32 %v2750, 2147483648
    %v2948 = vor.u32 1.1754944e-38, %v2947
    %v2949 = vsel %vm2946, %v2948, %v2944
    %v2950 = vmul.f32 %v2831, %v2949
    %v2951 = vrcp.pop %v2753
    %v2952 = vmul.f32 %v2753, %v2951
    %v2953 = vsub.f32 1.0, %v2952
    %v2954 = vmul.f32 %v2951, %v2953
    %v2955 = vadd.f32 %v2951, %v2954
    %vm2956 = vweird.f32 %v2753
    %vm2957 = vweird.f32 %v2951
    %vm2958 = vmor %vm2956, %vm2957
    %v2959 = vsel %vm2958, %v2951, %v2955
    %v2960 = vand.u32 2147483647, %v2753
    %vm2961 = vcmp.eq.f32.partialorder %v2960, 8.507059e+37
    %v2962 = vand.u32 %v2753, 2147483648
    %v2963 = vor.u32 1.1754944e-38, %v2962
    %v2964 = vsel %vm2961, %v2963, %v2959
    %v2965 = vmul.f32 %v2834, %v2964
    %v2966 = vrcp.pop %v2756
    %v2967 = vmul.f32 %v2756, %v2966
    %v2968 = vsub.f32 1.0, %v2967
    %v2969 = vmul.f32 %v2966, %v2968
    %v2970 = vadd.f32 %v2966, %v2969
    %vm2971 = vweird.f32 %v2756
    %vm2972 = vweird.f32 %v2966
    %vm2973 = vmor %vm2971, %vm2972
    %v2974 = vsel %vm2973, %v2966, %v2970
    %v2975 = vand.u32 2147483647, %v2756
    %vm2976 = vcmp.eq.f32.partialorder %v2975, 8.507059e+37
    %v2977 = vand.u32 %v2756, 2147483648
    %v2978 = vor.u32 1.1754944e-38, %v2977
    %v2979 = vsel %vm2976, %v2978, %v2974
    %v2980 = vmul.f32 %v2866, %v2979
    %v2981 = vrcp.pop %v2759
    %v2982 = vmul.f32 %v2759, %v2981
    %v2983 = vsub.f32 1.0, %v2982
    %v2984 = vmul.f32 %v2981, %v2983
    %v2985 = vadd.f32 %v2981, %v2984
    %vm2986 = vweird.f32 %v2759
    %vm2987 = vweird.f32 %v2981
    %vm2988 = vmor %vm2986, %vm2987
    %v2989 = vsel %vm2988, %v2981, %v2985
    %v2990 = vand.u32 2147483647, %v2759
    %vm2991 = vcmp.eq.f32.partialorder %v2990, 8.507059e+37
    %v2992 = vand.u32 %v2759, 2147483648
    %v2993 = vor.u32 1.1754944e-38, %v2992
    %v2994 = vsel %vm2991, %v2993, %v2989
    %v2995 = vmul.f32 %v2869, %v2994
    %v2996 = vrcp.pop %v2762
    %v2997 = vmul.f32 %v2762, %v2996
    %v2998 = vsub.f32 1.0, %v2997
    %v2999 = vmul.f32 %v2996, %v2998
    %v3000 = vadd.f32 %v2996, %v2999
    %vm3001 = vweird.f32 %v2762
    %vm3002 = vweird.f32 %v2996
    %vm3003 = vmor %vm3001, %vm3002
    %v3004 = vsel %vm3003, %v2996, %v3000
    %v3005 = vand.u32 2147483647, %v2762
    %vm3006 = vcmp.eq.f32.partialorder %v3005, 8.507059e+37
    %v3007 = vand.u32 %v2762, 2147483648
    %v3008 = vor.u32 1.1754944e-38, %v3007
    %v3009 = vsel %vm3006, %v3008, %v3004
    %v3010 = vmul.f32 %v2901, %v3009
    %v3011 = vrcp.pop %v2765
    %v3012 = vmul.f32 %v2765, %v3011
    %v3013 = vsub.f32 1.0, %v3012
    %v3014 = vmul.f32 %v3011, %v3013
    %v3015 = vadd.f32 %v3011, %v3014
    %vm3016 = vweird.f32 %v2765
    %vm3017 = vweird.f32 %v3011
    %vm3018 = vmor %vm3016, %vm3017
    %v3019 = vsel %vm3018, %v3011, %v3015
    %v3020 = vand.u32 2147483647, %v2765
    %vm3021 = vcmp.eq.f32.partialorder %v3020, 8.507059e+37
    %v3022 = vand.u32 %v2765, 2147483648
    %v3023 = vor.u32 1.1754944e-38, %v3022
    %v3024 = vsel %vm3021, %v3023, %v3019
    %v3025 = vmul.f32 %v2904, %v3024
    %s3026 = scalar_lea.vmem [#allocation7], 64
    %v3027 = vld [vmem:[%s3026] sm:$0xff]
    %v3028 = vld [vmem:[%s3026 + $0x8] sm:$0xff]
    %v3030 = vsel %vm270, %v2920, 0
    %v3033 = vsel %vm270, %v2935, 0
    %v3036 = vsel %vm270, %v2950, 0
    %v3039 = vsel %vm270, %v2965, 0
    %v3042 = vsel %vm270, %v2980, 0
    %v3045 = vsel %vm270, %v2995, 0
    %v3048 = vsel %vm270, %v3010, 0
    %v3051 = vsel %vm270, %v3025, 0
    %3053 = vmatpush.msra.mxu0 0.0
    %3054 = vmatpush.msra.mxu0 0.0
    %3055 = vmatpush.msra.mxu0 0.0
    %3056 = vmatpush.msra.mxu0 0.0
    %3057 = vmatpush.msra.mxu0 0.0
    %3058 = vmatpush.msra.mxu0 0.0
    %3059 = vmatpush.msra.mxu0 0.0
    %3060 = vmatpush.msra.mxu0 0.0
    %3061 = vmatpush.msra.mxu0 0.0
    %3062 = vmatpush.msra.mxu0 0.0
    %3063 = vmatpush.msra.mxu0 0.0
    %3064 = vmatpush.msra.mxu0 0.0
    %3065 = vmatpush.msra.mxu0 0.0
    %3066 = vmatpush.msra.mxu0 0.0
    %3067 = vmatpush.msra.mxu0 %v3028
    %3068 = vmatpush.msra.mxu0 %v3027
    %3069 = vmatmul.f32.gmra.mxu0 %v3030
    %v3070 = vpop.f32.mrf.mxu0
    %v3071 = vadd.f32 0.0, %v3070
    %3072 = vmatmul.f32.gmra.mxu0 %v3033
    %v3073 = vpop.f32.mrf.mxu0
    %v3074 = vadd.f32 0.0, %v3073
    %3075 = vmatmul.f32.gmra.mxu0 %v3036
    %v3076 = vpop.f32.mrf.mxu0
    %v3077 = vadd.f32 0.0, %v3076
    %3078 = vmatmul.f32.gmra.mxu0 %v3039
    %v3079 = vpop.f32.mrf.mxu0
    %v3080 = vadd.f32 0.0, %v3079
    %3081 = vmatmul.f32.gmra.mxu0 %v3042
    %v3082 = vpop.f32.mrf.mxu0
    %v3083 = vadd.f32 0.0, %v3082
    %3084 = vmatmul.f32.gmra.mxu0 %v3045
    %v3085 = vpop.f32.mrf.mxu0
    %v3086 = vadd.f32 0.0, %v3085
    %3087 = vmatmul.f32.gmra.mxu0 %v3048
    %v3088 = vpop.f32.mrf.mxu0
    %v3089 = vadd.f32 0.0, %v3088
    %3090 = vmatmul.f32.gmra.mxu0 %v3051
    %v3091 = vpop.f32.mrf.mxu0
    %v3092 = vadd.f32 0.0, %v3091
    %3093 = vdwg.mxu0
    %v3094 = vadd.f32 %v2522, %v3071
    %v3095 = vadd.f32 %v2523, %v3074
    %v3096 = vadd.f32 %v2524, %v3077
    %v3097 = vadd.f32 %v2525, %v3080
    %v3098 = vadd.f32 %v2526, %v3083
    %v3099 = vadd.f32 %v2527, %v3086
    %v3100 = vadd.f32 %v2528, %v3089
    %v3101 = vadd.f32 %v2529, %v3092
    %3102 = vrot.lane.b32.xlu0 %v128, 48
    %v3103 = vpop.permute.xlu0 %3102
    %3104 = vrot.lane.b32.xlu0 %v131, 48
    %v3105 = vpop.permute.xlu0 %3104
    %3106 = vrot.lane.b32.xlu0 %v182, 48
    %v3107 = vpop.permute.xlu0 %3106
    %3108 = vrot.lane.b32.xlu0 %v185, 48
    %v3109 = vpop.permute.xlu0 %3108
    %v3110 = vsel %vm270, %v3103, 0
    %v3112 = vsel %vm270, %v3105, 0
    %v3114 = vsel %vm270, %v3107, 0
    %v3116 = vsel %vm270, %v3109, 0
    %3118 = vmatpush.xpose.msra.mxu0 0.0
    %3119 = vmatpush.xpose.msra.mxu0 0.0
    %3120 = vmatpush.xpose.msra.mxu0 0.0
    %3121 = vmatpush.xpose.msra.mxu0 0.0
    %3122 = vmatpush.xpose.msra.mxu0 0.0
    %3123 = vmatpush.xpose.msra.mxu0 0.0
    %3124 = vmatpush.xpose.msra.mxu0 0.0
    %3125 = vmatpush.xpose.msra.mxu0 0.0
    %3126 = vmatpush.xpose.msra.mxu0 0.0
    %3127 = vmatpush.xpose.msra.mxu0 0.0
    %3128 = vmatpush.xpose.msra.mxu0 0.0
    %3129 = vmatpush.xpose.msra.mxu0 0.0
    %3130 = vmatpush.xpose.msra.mxu0 0.0
    %3131 = vmatpush.xpose.msra.mxu0 0.0
    %3132 = vmatpush.xpose.msra.mxu0 %v3116
    %3133 = vmatpush.xpose.msra.mxu0 %v3114
    %3134 = vmatmul.f32.gmra.mxu0 %v3110
    %v3135 = vpop.f32.mrf.mxu0
    %v3136 = vadd.f32 0.0, %v3135
    %3137 = vmatmul.f32.gmra.mxu0 %v3112
    %v3138 = vpop.f32.mrf.mxu0
    %v3139 = vadd.f32 0.0, %v3138
    %3140 = vdwg.mxu0
    %3141 = vrot.lane.b32.xlu0 %v134, 48
    %v3142 = vpop.permute.xlu0 %3141
    %3143 = vrot.lane.b32.xlu0 %v137, 48
    %v3144 = vpop.permute.xlu0 %3143
    %3145 = vrot.lane.b32.xlu0 %v188, 48
    %v3146 = vpop.permute.xlu0 %3145
    %3147 = vrot.lane.b32.xlu0 %v191, 48
    %v3148 = vpop.permute.xlu0 %3147
    %v3149 = vsel %vm270, %v3142, 0
    %v3151 = vsel %vm270, %v3144, 0
    %v3153 = vsel %vm270, %v3146, 0
    %v3155 = vsel %vm270, %v3148, 0
    %3157 = vmatpush.xpose.msra.mxu0 0.0
    %3158 = vmatpush.xpose.msra.mxu0 0.0
    %3159 = vmatpush.xpose.msra.mxu0 0.0
    %3160 = vmatpush.xpose.msra.mxu0 0.0
    %3161 = vmatpush.xpose.msra.mxu0 0.0
    %3162 = vmatpush.xpose.msra.mxu0 0.0
    %3163 = vmatpush.xpose.msra.mxu0 0.0
    %3164 = vmatpush.xpose.msra.mxu0 0.0
    %3165 = vmatpush.xpose.msra.mxu0 0.0
    %3166 = vmatpush.xpose.msra.mxu0 0.0
    %3167 = vmatpush.xpose.msra.mxu0 0.0
    %3168 = vmatpush.xpose.msra.mxu0 0.0
    %3169 = vmatpush.xpose.msra.mxu0 0.0
    %3170 = vmatpush.xpose.msra.mxu0 0.0
    %3171 = vmatpush.xpose.msra.mxu0 %v3155
    %3172 = vmatpush.xpose.msra.mxu0 %v3153
    %3173 = vmatmul.f32.gmra.mxu0 %v3149
    %v3174 = vpop.f32.mrf.mxu0
    %v3175 = vadd.f32 0.0, %v3174
    %3176 = vmatmul.f32.gmra.mxu0 %v3151
    %v3177 = vpop.f32.mrf.mxu0
    %v3178 = vadd.f32 0.0, %v3177
    %3179 = vdwg.mxu0
    %3180 = vrot.lane.b32.xlu0 %v140, 48
    %v3181 = vpop.permute.xlu0 %3180
    %3182 = vrot.lane.b32.xlu0 %v143, 48
    %v3183 = vpop.permute.xlu0 %3182
    %3184 = vrot.lane.b32.xlu0 %v194, 48
    %v3185 = vpop.permute.xlu0 %3184
    %3186 = vrot.lane.b32.xlu0 %v197, 48
    %v3187 = vpop.permute.xlu0 %3186
    %v3188 = vsel %vm270, %v3181, 0
    %v3190 = vsel %vm270, %v3183, 0
    %v3192 = vsel %vm270, %v3185, 0
    %v3194 = vsel %vm270, %v3187, 0
    %3196 = vmatpush.xpose.msra.mxu0 0.0
    %3197 = vmatpush.xpose.msra.mxu0 0.0
    %3198 = vmatpush.xpose.msra.mxu0 0.0
    %3199 = vmatpush.xpose.msra.mxu0 0.0
    %3200 = vmatpush.xpose.msra.mxu0 0.0
    %3201 = vmatpush.xpose.msra.mxu0 0.0
    %3202 = vmatpush.xpose.msra.mxu0 0.0
    %3203 = vmatpush.xpose.msra.mxu0 0.0
    %3204 = vmatpush.xpose.msra.mxu0 0.0
    %3205 = vmatpush.xpose.msra.mxu0 0.0
    %3206 = vmatpush.xpose.msra.mxu0 0.0
    %3207 = vmatpush.xpose.msra.mxu0 0.0
    %3208 = vmatpush.xpose.msra.mxu0 0.0
    %3209 = vmatpush.xpose.msra.mxu0 0.0
    %3210 = vmatpush.xpose.msra.mxu0 %v3194
    %3211 = vmatpush.xpose.msra.mxu0 %v3192
    %3212 = vmatmul.f32.gmra.mxu0 %v3188
    %v3213 = vpop.f32.mrf.mxu0
    %v3214 = vadd.f32 0.0, %v3213
    %3215 = vmatmul.f32.gmra.mxu0 %v3190
    %v3216 = vpop.f32.mrf.mxu0
    %v3217 = vadd.f32 0.0, %v3216
    %3218 = vdwg.mxu0
    %3219 = vrot.lane.b32.xlu0 %v146, 48
    %v3220 = vpop.permute.xlu0 %3219
    %3221 = vrot.lane.b32.xlu0 %v149, 48
    %v3222 = vpop.permute.xlu0 %3221
    %3223 = vrot.lane.b32.xlu0 %v200, 48
    %v3224 = vpop.permute.xlu0 %3223
    %3225 = vrot.lane.b32.xlu0 %v203, 48
    %v3226 = vpop.permute.xlu0 %3225
    %v3227 = vsel %vm270, %v3220, 0
    %v3229 = vsel %vm270, %v3222, 0
    %v3231 = vsel %vm270, %v3224, 0
    %v3233 = vsel %vm270, %v3226, 0
    %3235 = vmatpush.xpose.msra.mxu0 0.0
    %3236 = vmatpush.xpose.msra.mxu0 0.0
    %3237 = vmatpush.xpose.msra.mxu0 0.0
    %3238 = vmatpush.xpose.msra.mxu0 0.0
    %3239 = vmatpush.xpose.msra.mxu0 0.0
    %3240 = vmatpush.xpose.msra.mxu0 0.0
    %3241 = vmatpush.xpose.msra.mxu0 0.0
    %3242 = vmatpush.xpose.msra.mxu0 0.0
    %3243 = vmatpush.xpose.msra.mxu0 0.0
    %3244 = vmatpush.xpose.msra.mxu0 0.0
    %3245 = vmatpush.xpose.msra.mxu0 0.0
    %3246 = vmatpush.xpose.msra.mxu0 0.0
    %3247 = vmatpush.xpose.msra.mxu0 0.0
    %3248 = vmatpush.xpose.msra.mxu0 0.0
    %3249 = vmatpush.xpose.msra.mxu0 %v3233
    %3250 = vmatpush.xpose.msra.mxu0 %v3231
    %3251 = vmatmul.f32.gmra.mxu0 %v3227
    %v3252 = vpop.f32.mrf.mxu0
    %v3253 = vadd.f32 0.0, %v3252
    %3254 = vmatmul.f32.gmra.mxu0 %v3229
    %v3255 = vpop.f32.mrf.mxu0
    %v3256 = vadd.f32 0.0, %v3255
    %3257 = vdwg.mxu0
    %v3258 = vsel %vm413, %v3136, -1e+30
    %v3259 = vsel %vm414, %v3139, -1e+30
    %v3260 = vsel %vm413, %v3175, -1e+30
    %v3261 = vsel %vm414, %v3178, -1e+30
    %v3262 = vsel %vm413, %v3214, -1e+30
    %v3263 = vsel %vm414, %v3217, -1e+30
    %v3264 = vsel %vm413, %v3253, -1e+30
    %v3265 = vsel %vm414, %v3256, -1e+30
    %v3266 = vsel %vm270, %v3258, -inf
    %3267 = vmax.xlane.f32.xlu0 %v3266
    %v3268 = vpop.xlane.xlu0 %3267
    %v3269 = vsel %vm270, %v3259, -inf
    %3270 = vmax.xlane.f32.xlu0 %v3269
    %v3271 = vpop.xlane.xlu0 %3270
    %v3272 = vsel %vm270, %v3260, -inf
    %3273 = vmax.xlane.f32.xlu0 %v3272
    %v3274 = vpop.xlane.xlu0 %3273
    %v3275 = vsel %vm270, %v3261, -inf
    %3276 = vmax.xlane.f32.xlu0 %v3275
    %v3277 = vpop.xlane.xlu0 %3276
    %v3278 = vsel %vm270, %v3262, -inf
    %3279 = vmax.xlane.f32.xlu0 %v3278
    %v3280 = vpop.xlane.xlu0 %3279
    %v3281 = vsel %vm270, %v3263, -inf
    %3282 = vmax.xlane.f32.xlu0 %v3281
    %v3283 = vpop.xlane.xlu0 %3282
    %v3284 = vsel %vm270, %v3264, -inf
    %3285 = vmax.xlane.f32.xlu0 %v3284
    %v3286 = vpop.xlane.xlu0 %3285
    %v3287 = vsel %vm270, %v3265, -inf
    %3288 = vmax.xlane.f32.xlu0 %v3287
    %v3289 = vpop.xlane.xlu0 %3288
    %v3290 = vsub.f32 %v3258, %v3268
    %v3291 = vsub.f32 %v3259, %v3271
    %v3292 = vsub.f32 %v3260, %v3274
    %v3293 = vsub.f32 %v3261, %v3277
    %v3294 = vsub.f32 %v3262, %v3280
    %v3295 = vsub.f32 %v3263, %v3283
    %v3296 = vsub.f32 %v3264, %v3286
    %v3297 = vsub.f32 %v3265, %v3289
    %v3298 = vmul.f32 %v3290, 1.442695
    %v3299 = vpow.pop %v3298
    %v3300 = vmul.f32 %v3291, 1.442695
    %v3301 = vpow.pop %v3300
    %v3302 = vmul.f32 %v3292, 1.442695
    %v3303 = vpow.pop %v3302
    %v3304 = vmul.f32 %v3293, 1.442695
    %v3305 = vpow.pop %v3304
    %v3306 = vmul.f32 %v3294, 1.442695
    %v3307 = vpow.pop %v3306
    %v3308 = vmul.f32 %v3295, 1.442695
    %v3309 = vpow.pop %v3308
    %v3310 = vmul.f32 %v3296, 1.442695
    %v3311 = vpow.pop %v3310
    %v3312 = vmul.f32 %v3297, 1.442695
    %v3313 = vpow.pop %v3312
    %v3314 = vsel %vm270, %v3299, 0.0
    %3315 = vadd.xlane.f32.xlu0 %v3314
    %v3316 = vpop.xlane.xlu0 %3315
    %v3317 = vsel %vm270, %v3301, 0.0
    %3318 = vadd.xlane.f32.xlu0 %v3317
    %v3319 = vpop.xlane.xlu0 %3318
    %v3320 = vsel %vm270, %v3303, 0.0
    %3321 = vadd.xlane.f32.xlu0 %v3320
    %v3322 = vpop.xlane.xlu0 %3321
    %v3323 = vsel %vm270, %v3305, 0.0
    %3324 = vadd.xlane.f32.xlu0 %v3323
    %v3325 = vpop.xlane.xlu0 %3324
    %v3326 = vsel %vm270, %v3307, 0.0
    %3327 = vadd.xlane.f32.xlu0 %v3326
    %v3328 = vpop.xlane.xlu0 %3327
    %v3329 = vsel %vm270, %v3309, 0.0
    %3330 = vadd.xlane.f32.xlu0 %v3329
    %v3331 = vpop.xlane.xlu0 %3330
    %v3332 = vsel %vm270, %v3311, 0.0
    %3333 = vadd.xlane.f32.xlu0 %v3332
    %v3334 = vpop.xlane.xlu0 %3333
    %v3335 = vsel %vm270, %v3313, 0.0
    %3336 = vadd.xlane.f32.xlu0 %v3335
    %v3337 = vpop.xlane.xlu0 %3336
    %3338 = vrot.lane.b32.xlu0 %v236, 48
    %v3339 = vpop.permute.xlu0 %3338
    %3340 = vrot.lane.b32.xlu0 %v239, 48
    %v3341 = vpop.permute.xlu0 %3340
    %v3345 = vsel %vm270, %v3299, 0
    %v3348 = vsel %vm270, %v3301, 0
    %3350 = vmatpush.msra.mxu0 0.0
    %3351 = vmatpush.msra.mxu0 0.0
    %3352 = vmatpush.msra.mxu0 0.0
    %3353 = vmatpush.msra.mxu0 0.0
    %3354 = vmatpush.msra.mxu0 0.0
    %3355 = vmatpush.msra.mxu0 0.0
    %3356 = vmatpush.msra.mxu0 0.0
    %3357 = vmatpush.msra.mxu0 0.0
    %3358 = vmatpush.msra.mxu0 0.0
    %3359 = vmatpush.msra.mxu0 0.0
    %3360 = vmatpush.msra.mxu0 0.0
    %3361 = vmatpush.msra.mxu0 0.0
    %3362 = vmatpush.msra.mxu0 0.0
    %3363 = vmatpush.msra.mxu0 0.0
    %3364 = vmatpush.msra.mxu0 %v3341
    %3365 = vmatpush.msra.mxu0 %v3339
    %3366 = vmatmul.f32.gmra.mxu0 %v3345
    %v3367 = vpop.f32.mrf.mxu0
    %v3368 = vadd.f32 0.0, %v3367
    %3369 = vmatmul.f32.gmra.mxu0 %v3348
    %v3370 = vpop.f32.mrf.mxu0
    %v3371 = vadd.f32 0.0, %v3370
    %3372 = vdwg.mxu0
    %3373 = vrot.lane.b32.xlu0 %v242, 48
    %v3374 = vpop.permute.xlu0 %3373
    %3375 = vrot.lane.b32.xlu0 %v245, 48
    %v3376 = vpop.permute.xlu0 %3375
    %v3380 = vsel %vm270, %v3303, 0
    %v3383 = vsel %vm270, %v3305, 0
    %3385 = vmatpush.msra.mxu0 0.0
    %3386 = vmatpush.msra.mxu0 0.0
    %3387 = vmatpush.msra.mxu0 0.0
    %3388 = vmatpush.msra.mxu0 0.0
    %3389 = vmatpush.msra.mxu0 0.0
    %3390 = vmatpush.msra.mxu0 0.0
    %3391 = vmatpush.msra.mxu0 0.0
    %3392 = vmatpush.msra.mxu0 0.0
    %3393 = vmatpush.msra.mxu0 0.0
    %3394 = vmatpush.msra.mxu0 0.0
    %3395 = vmatpush.msra.mxu0 0.0
    %3396 = vmatpush.msra.mxu0 0.0
    %3397 = vmatpush.msra.mxu0 0.0
    %3398 = vmatpush.msra.mxu0 0.0
    %3399 = vmatpush.msra.mxu0 %v3376
    %3400 = vmatpush.msra.mxu0 %v3374
    %3401 = vmatmul.f32.gmra.mxu0 %v3380
    %v3402 = vpop.f32.mrf.mxu0
    %v3403 = vadd.f32 0.0, %v3402
    %3404 = vmatmul.f32.gmra.mxu0 %v3383
    %v3405 = vpop.f32.mrf.mxu0
    %v3406 = vadd.f32 0.0, %v3405
    %3407 = vdwg.mxu0
    %3408 = vrot.lane.b32.xlu0 %v248, 48
    %v3409 = vpop.permute.xlu0 %3408
    %3410 = vrot.lane.b32.xlu0 %v251, 48
    %v3411 = vpop.permute.xlu0 %3410
    %v3415 = vsel %vm270, %v3307, 0
    %v3418 = vsel %vm270, %v3309, 0
    %3420 = vmatpush.msra.mxu0 0.0
    %3421 = vmatpush.msra.mxu0 0.0
    %3422 = vmatpush.msra.mxu0 0.0
    %3423 = vmatpush.msra.mxu0 0.0
    %3424 = vmatpush.msra.mxu0 0.0
    %3425 = vmatpush.msra.mxu0 0.0
    %3426 = vmatpush.msra.mxu0 0.0
    %3427 = vmatpush.msra.mxu0 0.0
    %3428 = vmatpush.msra.mxu0 0.0
    %3429 = vmatpush.msra.mxu0 0.0
    %3430 = vmatpush.msra.mxu0 0.0
    %3431 = vmatpush.msra.mxu0 0.0
    %3432 = vmatpush.msra.mxu0 0.0
    %3433 = vmatpush.msra.mxu0 0.0
    %3434 = vmatpush.msra.mxu0 %v3411
    %3435 = vmatpush.msra.mxu0 %v3409
    %3436 = vmatmul.f32.gmra.mxu0 %v3415
    %v3437 = vpop.f32.mrf.mxu0
    %v3438 = vadd.f32 0.0, %v3437
    %3439 = vmatmul.f32.gmra.mxu0 %v3418
    %v3440 = vpop.f32.mrf.mxu0
    %v3441 = vadd.f32 0.0, %v3440
    %3442 = vdwg.mxu0
    %3443 = vrot.lane.b32.xlu0 %v254, 48
    %v3444 = vpop.permute.xlu0 %3443
    %3445 = vrot.lane.b32.xlu0 %v257, 48
    %v3446 = vpop.permute.xlu0 %3445
    %v3450 = vsel %vm270, %v3311, 0
    %v3453 = vsel %vm270, %v3313, 0
    %3455 = vmatpush.msra.mxu0 0.0
    %3456 = vmatpush.msra.mxu0 0.0
    %3457 = vmatpush.msra.mxu0 0.0
    %3458 = vmatpush.msra.mxu0 0.0
    %3459 = vmatpush.msra.mxu0 0.0
    %3460 = vmatpush.msra.mxu0 0.0
    %3461 = vmatpush.msra.mxu0 0.0
    %3462 = vmatpush.msra.mxu0 0.0
    %3463 = vmatpush.msra.mxu0 0.0
    %3464 = vmatpush.msra.mxu0 0.0
    %3465 = vmatpush.msra.mxu0 0.0
    %3466 = vmatpush.msra.mxu0 0.0
    %3467 = vmatpush.msra.mxu0 0.0
    %3468 = vmatpush.msra.mxu0 0.0
    %3469 = vmatpush.msra.mxu0 %v3446
    %3470 = vmatpush.msra.mxu0 %v3444
    %3471 = vmatmul.f32.gmra.mxu0 %v3450
    %v3472 = vpop.f32.mrf.mxu0
    %v3473 = vadd.f32 0.0, %v3472
    %3474 = vmatmul.f32.gmra.mxu0 %v3453
    %v3475 = vpop.f32.mrf.mxu0
    %v3476 = vadd.f32 0.0, %v3475
    %3477 = vdwg.mxu0
    %v3478 = vrcp.pop %v3316
    %v3479 = vmul.f32 %v3316, %v3478
    %v3480 = vsub.f32 1.0, %v3479
    %v3481 = vmul.f32 %v3478, %v3480
    %v3482 = vadd.f32 %v3478, %v3481
    %vm3483 = vweird.f32 %v3316
    %vm3484 = vweird.f32 %v3478
    %vm3485 = vmor %vm3483, %vm3484
    %v3486 = vsel %vm3485, %v3478, %v3482
    %v3487 = vand.u32 2147483647, %v3316
    %vm3488 = vcmp.eq.f32.partialorder %v3487, 8.507059e+37
    %v3489 = vand.u32 %v3316, 2147483648
    %v3490 = vor.u32 1.1754944e-38, %v3489
    %v3491 = vsel %vm3488, %v3490, %v3486
    %v3492 = vmul.f32 %v3368, %v3491
    %v3493 = vrcp.pop %v3319
    %v3494 = vmul.f32 %v3319, %v3493
    %v3495 = vsub.f32 1.0, %v3494
    %v3496 = vmul.f32 %v3493, %v3495
    %v3497 = vadd.f32 %v3493, %v3496
    %vm3498 = vweird.f32 %v3319
    %vm3499 = vweird.f32 %v3493
    %vm3500 = vmor %vm3498, %vm3499
    %v3501 = vsel %vm3500, %v3493, %v3497
    %v3502 = vand.u32 2147483647, %v3319
    %vm3503 = vcmp.eq.f32.partialorder %v3502, 8.507059e+37
    %v3504 = vand.u32 %v3319, 2147483648
    %v3505 = vor.u32 1.1754944e-38, %v3504
    %v3506 = vsel %vm3503, %v3505, %v3501
    %v3507 = vmul.f32 %v3371, %v3506
    %v3508 = vrcp.pop %v3322
    %v3509 = vmul.f32 %v3322, %v3508
    %v3510 = vsub.f32 1.0, %v3509
    %v3511 = vmul.f32 %v3508, %v3510
    %v3512 = vadd.f32 %v3508, %v3511
    %vm3513 = vweird.f32 %v3322
    %vm3514 = vweird.f32 %v3508
    %vm3515 = vmor %vm3513, %vm3514
    %v3516 = vsel %vm3515, %v3508, %v3512
    %v3517 = vand.u32 2147483647, %v3322
    %vm3518 = vcmp.eq.f32.partialorder %v3517, 8.507059e+37
    %v3519 = vand.u32 %v3322, 2147483648
    %v3520 = vor.u32 1.1754944e-38, %v3519
    %v3521 = vsel %vm3518, %v3520, %v3516
    %v3522 = vmul.f32 %v3403, %v3521
    %v3523 = vrcp.pop %v3325
    %v3524 = vmul.f32 %v3325, %v3523
    %v3525 = vsub.f32 1.0, %v3524
    %v3526 = vmul.f32 %v3523, %v3525
    %v3527 = vadd.f32 %v3523, %v3526
    %vm3528 = vweird.f32 %v3325
    %vm3529 = vweird.f32 %v3523
    %vm3530 = vmor %vm3528, %vm3529
    %v3531 = vsel %vm3530, %v3523, %v3527
    %v3532 = vand.u32 2147483647, %v3325
    %vm3533 = vcmp.eq.f32.partialorder %v3532, 8.507059e+37
    %v3534 = vand.u32 %v3325, 2147483648
    %v3535 = vor.u32 1.1754944e-38, %v3534
    %v3536 = vsel %vm3533, %v3535, %v3531
    %v3537 = vmul.f32 %v3406, %v3536
    %v3538 = vrcp.pop %v3328
    %v3539 = vmul.f32 %v3328, %v3538
    %v3540 = vsub.f32 1.0, %v3539
    %v3541 = vmul.f32 %v3538, %v3540
    %v3542 = vadd.f32 %v3538, %v3541
    %vm3543 = vweird.f32 %v3328
    %vm3544 = vweird.f32 %v3538
    %vm3545 = vmor %vm3543, %vm3544
    %v3546 = vsel %vm3545, %v3538, %v3542
    %v3547 = vand.u32 2147483647, %v3328
    %vm3548 = vcmp.eq.f32.partialorder %v3547, 8.507059e+37
    %v3549 = vand.u32 %v3328, 2147483648
    %v3550 = vor.u32 1.1754944e-38, %v3549
    %v3551 = vsel %vm3548, %v3550, %v3546
    %v3552 = vmul.f32 %v3438, %v3551
    %v3553 = vrcp.pop %v3331
    %v3554 = vmul.f32 %v3331, %v3553
    %v3555 = vsub.f32 1.0, %v3554
    %v3556 = vmul.f32 %v3553, %v3555
    %v3557 = vadd.f32 %v3553, %v3556
    %vm3558 = vweird.f32 %v3331
    %vm3559 = vweird.f32 %v3553
    %vm3560 = vmor %vm3558, %vm3559
    %v3561 = vsel %vm3560, %v3553, %v3557
    %v3562 = vand.u32 2147483647, %v3331
    %vm3563 = vcmp.eq.f32.partialorder %v3562, 8.507059e+37
    %v3564 = vand.u32 %v3331, 2147483648
    %v3565 = vor.u32 1.1754944e-38, %v3564
    %v3566 = vsel %vm3563, %v3565, %v3561
    %v3567 = vmul.f32 %v3441, %v3566
    %v3568 = vrcp.pop %v3334
    %v3569 = vmul.f32 %v3334, %v3568
    %v3570 = vsub.f32 1.0, %v3569
    %v3571 = vmul.f32 %v3568, %v3570
    %v3572 = vadd.f32 %v3568, %v3571
    %vm3573 = vweird.f32 %v3334
    %vm3574 = vweird.f32 %v3568
    %vm3575 = vmor %vm3573, %vm3574
    %v3576 = vsel %vm3575, %v3568, %v3572
    %v3577 = vand.u32 2147483647, %v3334
    %vm3578 = vcmp.eq.f32.partialorder %v3577, 8.507059e+37
    %v3579 = vand.u32 %v3334, 2147483648
    %v3580 = vor.u32 1.1754944e-38, %v3579
    %v3581 = vsel %vm3578, %v3580, %v3576
    %v3582 = vmul.f32 %v3473, %v3581
    %v3583 = vrcp.pop %v3337
    %v3584 = vmul.f32 %v3337, %v3583
    %v3585 = vsub.f32 1.0, %v3584
    %v3586 = vmul.f32 %v3583, %v3585
    %v3587 = vadd.f32 %v3583, %v3586
    %vm3588 = vweird.f32 %v3337
    %vm3589 = vweird.f32 %v3583
    %vm3590 = vmor %vm3588, %vm3589
    %v3591 = vsel %vm3590, %v3583, %v3587
    %v3592 = vand.u32 2147483647, %v3337
    %vm3593 = vcmp.eq.f32.partialorder %v3592, 8.507059e+37
    %v3594 = vand.u32 %v3337, 2147483648
    %v3595 = vor.u32 1.1754944e-38, %v3594
    %v3596 = vsel %vm3593, %v3595, %v3591
    %v3597 = vmul.f32 %v3476, %v3596
    %s3598 = scalar_lea.vmem [#allocation7], 80
    %v3599 = vld [vmem:[%s3598] sm:$0xff]
    %v3600 = vld [vmem:[%s3598 + $0x8] sm:$0xff]
    %v3602 = vsel %vm270, %v3492, 0
    %v3605 = vsel %vm270, %v3507, 0
    %v3608 = vsel %vm270, %v3522, 0
    %v3611 = vsel %vm270, %v3537, 0
    %v3614 = vsel %vm270, %v3552, 0
    %v3617 = vsel %vm270, %v3567, 0
    %v3620 = vsel %vm270, %v3582, 0
    %v3623 = vsel %vm270, %v3597, 0
    %3625 = vmatpush.msra.mxu0 0.0
    %3626 = vmatpush.msra.mxu0 0.0
    %3627 = vmatpush.msra.mxu0 0.0
    %3628 = vmatpush.msra.mxu0 0.0
    %3629 = vmatpush.msra.mxu0 0.0
    %3630 = vmatpush.msra.mxu0 0.0
    %3631 = vmatpush.msra.mxu0 0.0
    %3632 = vmatpush.msra.mxu0 0.0
    %3633 = vmatpush.msra.mxu0 0.0
    %3634 = vmatpush.msra.mxu0 0.0
    %3635 = vmatpush.msra.mxu0 0.0
    %3636 = vmatpush.msra.mxu0 0.0
    %3637 = vmatpush.msra.mxu0 0.0
    %3638 = vmatpush.msra.mxu0 0.0
    %3639 = vmatpush.msra.mxu0 %v3600
    %3640 = vmatpush.msra.mxu0 %v3599
    %3641 = vmatmul.f32.gmra.mxu0 %v3602
    %v3642 = vpop.f32.mrf.mxu0
    %v3643 = vadd.f32 0.0, %v3642
    %3644 = vmatmul.f32.gmra.mxu0 %v3605
    %v3645 = vpop.f32.mrf.mxu0
    %v3646 = vadd.f32 0.0, %v3645
    %3647 = vmatmul.f32.gmra.mxu0 %v3608
    %v3648 = vpop.f32.mrf.mxu0
    %v3649 = vadd.f32 0.0, %v3648
    %3650 = vmatmul.f32.gmra.mxu0 %v3611
    %v3651 = vpop.f32.mrf.mxu0
    %v3652 = vadd.f32 0.0, %v3651
    %3653 = vmatmul.f32.gmra.mxu0 %v3614
    %v3654 = vpop.f32.mrf.mxu0
    %v3655 = vadd.f32 0.0, %v3654
    %3656 = vmatmul.f32.gmra.mxu0 %v3617
    %v3657 = vpop.f32.mrf.mxu0
    %v3658 = vadd.f32 0.0, %v3657
    %3659 = vmatmul.f32.gmra.mxu0 %v3620
    %v3660 = vpop.f32.mrf.mxu0
    %v3661 = vadd.f32 0.0, %v3660
    %3662 = vmatmul.f32.gmra.mxu0 %v3623
    %v3663 = vpop.f32.mrf.mxu0
    %v3664 = vadd.f32 0.0, %v3663
    %3665 = vdwg.mxu0
    %v3666 = vadd.f32 %v3094, %v3643
    %v3667 = vadd.f32 %v3095, %v3646
    %v3668 = vadd.f32 %v3096, %v3649
    %v3669 = vadd.f32 %v3097, %v3652
    %v3670 = vadd.f32 %v3098, %v3655
    %v3671 = vadd.f32 %v3099, %v3658
    %v3672 = vadd.f32 %v3100, %v3661
    %v3673 = vadd.f32 %v3101, %v3664
    %3674 = vst [vmem:[#allocation8] sm:$0xff] %v3666
    %3675 = vst [vmem:[#allocation8 + $0x8] sm:$0xff] %v3667
    %3676 = vst [vmem:[#allocation8 + $0x10] sm:$0xff] %v3668
    %3677 = vst [vmem:[#allocation8 + $0x18] sm:$0xff] %v3669
    %3678 = vst [vmem:[#allocation8 + $0x20] sm:$0xff] %v3670
    %3679 = vst [vmem:[#allocation8 + $0x28] sm:$0xff] %v3671
    %3680 = vst [vmem:[#allocation8 + $0x30] sm:$0xff] %v3672
    %3681 = vst [vmem:[#allocation8 + $0x38] sm:$0xff] %v3673
    // Predicated region
    $region30: #{tpu_custom_call.1} parent=1 // pred_check
      _
    $region31: #{tpu_custom_call.1} parent=1 // pred_check_branch
      %3683 = sbr.rel (0) target = $region33
    $region32: #{tpu_custom_call.1} parent=1 // pred_region
      %3685 = vsyncadd [#allocation4], 0
      %s3686 = sshll.u32 [#allocation8], 4
      %s3687 = int_to_ptr.vmem [resolvable:$true] %s3686
      %s3688 = sshll.u32 %s4, 4
      %s3689 = int_to_ptr.hbm [resolvable:$true] %s3688
      %3694 = dma.vmem_to_hbm [thread:$0]  %s3687, 1024, %s3689, [#allocation4], 128, 128, 8
    $region33: #{tpu_custom_call.1} parent=1 // pred_fallthru
      _
    // Predicated region
    $region34: #{tpu_custom_call.1} parent=1 // pred_check
      _
    $region35: #{tpu_custom_call.1} parent=1 // pred_check_branch
      %3696 = sbr.rel (0) target = $region37
    $region36: #{tpu_custom_call.1} parent=1 // pred_region
      %3698 = dma.done [#allocation4], 1024
    $region37: #{tpu_custom_call.1} parent=1 // pred_fallthru
      _
    %3699 = vsyncpa [#allocation3], 1
    %3700 = vsyncpa [#allocation6], 1
    %3701 = vsyncpa [#allocation4], 1

</llo_original>
